<compile_context>
chip_gen: v5e
topology: v5e:2x2
jax: 0.10.0
libtpu: 0.0.40
codegen_flags: <defaults>
</compile_context>

<pallas_src>
import numpy as np
import jax
import jax.numpy as jnp
from jax.experimental import pallas as pl
from jax.experimental.pallas import tpu as pltpu


# -----------------------------------------------------------------------------
# Fused Pallas kernel: whole decoder forward
# -----------------------------------------------------------------------------
def decoder_kernel(x_ref,
                   wih0f_ref, whh0f_ref, b0f_ref,
                   wih0b_ref, whh0b_ref, b0b_ref,
                   wih1f_ref, whh1f_ref, b1f_ref,
                   wih1b_ref, whh1b_ref, b1b_ref,
                   wd_ref, bd_ref,
                   out_ref,
                   o0f_sc, o0b_sc, o1f_sc, o1b_sc):
    """Whole decoder forward in a single kernel.

    x_ref  : (T, B, 20)  float32  (time-major, like nn.LSTM batch_first=False)
    wih*   : (in, 4H)    fused gate weights, gate order (i, f, g, o)
    whh*   : (H, 4H)
    b*     : (1, 4H)     pre-summed b_ih + b_hh
    wd_ref : (2H, 24), bd_ref: (1, 24)
    out_ref: (T, B, 24)
    o??_sc : (T, B, H)   VMEM scratch holding per-layer directional outputs
    """
    T, B, I = x_ref.shape
    H = whh0f_ref.shape[0]
    G = 4 * H

    def cell(gates, c):
        # gates: (B, 4H) -- slice the fused result (lane-static slices).
        i_g = jax.nn.sigmoid(gates[:, 0 * H:1 * H])
        f_g = jax.nn.sigmoid(gates[:, 1 * H:2 * H])
        g_g = jnp.tanh(gates[:, 2 * H:3 * H])
        o_g = jax.nn.sigmoid(gates[:, 3 * H:4 * H])
        c_new = f_g * c + i_g * g_g
        h_new = o_g * jnp.tanh(c_new)
        return h_new, c_new

    def bidir(xp_f, xp_b, w_hh_f, w_hh_b, out_f_sc, out_b_sc):
        """xp_*: (T, B, 4H) precomputed input projections (bias folded in).
        Both directions run in one fully-unrolled static loop; only the tiny
        (B,H)@(H,4H) recurrent matmul + gate math stay on the serial path."""
        h_f = jnp.zeros((B, H), jnp.float32)
        c_f = jnp.zeros((B, H), jnp.float32)
        h_b = jnp.zeros((B, H), jnp.float32)
        c_b = jnp.zeros((B, H), jnp.float32)
        for t in range(T):                       # T static -> fully unrolled
            tb = T - 1 - t
            g_f = xp_f[t] + jnp.dot(h_f, w_hh_f,
                                    preferred_element_type=jnp.float32)
            h_f, c_f = cell(g_f, c_f)
            out_f_sc[t] = h_f
            g_b = xp_b[tb] + jnp.dot(h_b, w_hh_b,
                                     preferred_element_type=jnp.float32)
            h_b, c_b = cell(g_b, c_b)
            out_b_sc[tb] = h_b

    x2d = x_ref[...].reshape(T * B, I)

    # ---- layer 0 (bidirectional): hoisted input projections ----
    xp0f = (jnp.dot(x2d, wih0f_ref[...], preferred_element_type=jnp.float32)
            + b0f_ref[...]).reshape(T, B, G)
    xp0b = (jnp.dot(x2d, wih0b_ref[...], preferred_element_type=jnp.float32)
            + b0b_ref[...]).reshape(T, B, G)
    bidir(xp0f, xp0b, whh0f_ref[...], whh0b_ref[...], o0f_sc, o0b_sc)
    h0f = o0f_sc[...].reshape(T * B, H)
    h0b = o0b_sc[...].reshape(T * B, H)

    # ---- layer 1 (bidirectional): W_ih is (2H, 4H); split it into the halves
    # fed by the fwd / bwd features of layer 0 -> no concat needed ----
    wih1f = wih1f_ref[...]
    wih1b = wih1b_ref[...]
    xp1f = (jnp.dot(h0f, wih1f[:H], preferred_element_type=jnp.float32)
            + jnp.dot(h0b, wih1f[H:], preferred_element_type=jnp.float32)
            + b1f_ref[...]).reshape(T, B, G)
    xp1b = (jnp.dot(h0f, wih1b[:H], preferred_element_type=jnp.float32)
            + jnp.dot(h0b, wih1b[H:], preferred_element_type=jnp.float32)
            + b1b_ref[...]).reshape(T, B, G)
    bidir(xp1f, xp1b, whh1f_ref[...], whh1b_ref[...], o1f_sc, o1b_sc)
    h1f = o1f_sc[...].reshape(T * B, H)
    h1b = o1b_sc[...].reshape(T * B, H)

    # ---- dense head as epilogue (also split along fwd/bwd feature halves) ----
    wd = wd_ref[...]
    y = (jnp.dot(h1f, wd[:H], preferred_element_type=jnp.float32)
         + jnp.dot(h1b, wd[H:], preferred_element_type=jnp.float32)
         + bd_ref[...])
    out_ref[...] = y.reshape(T, B, -1)


# -----------------------------------------------------------------------------
# Wrapper
# -----------------------------------------------------------------------------
def decoder_forward(x, params):
    """x: (T, B, 20) -> (T, B, 24), matching PyTorch Decoder.forward semantics."""
    T, B, _ = x.shape
    H = params["l0_fwd"][1].shape[0]
    O = params["dense_w"].shape[-1]
    vmem = pl.BlockSpec(memory_space=pltpu.MemorySpace.VMEM)
    args = (x,
            *params["l0_fwd"], *params["l0_bwd"],
            *params["l1_fwd"], *params["l1_bwd"],
            params["dense_w"], params["dense_b"])
    return pl.pallas_call(
        decoder_kernel,
        out_shape=jax.ShapeDtypeStruct((T, B, O), jnp.float32),
        in_specs=[vmem] * len(args),
        out_specs=vmem,
        scratch_shapes=[pltpu.VMEM((T, B, H), jnp.float32) for _ in range(4)],
    )(*args)


# -----------------------------------------------------------------------------
# Pure-JAX reference (same math / same parameter layout) for verification
# -----------------------------------------------------------------------------
def _lstm_dir_ref(x, w_ih, w_hh, b):
    B = x.shape[1]
    H = w_hh.shape[0]

    def step(carry, x_t):
        h, c = carry
        gates = x_t @ w_ih + h @ w_hh + b
        i_g = jax.nn.sigmoid(gates[:, 0 * H:1 * H])
        f_g = jax.nn.sigmoid(gates[:, 1 * H:2 * H])
        g_g = jnp.tanh(gates[:, 2 * H:3 * H])
        o_g = jax.nn.sigmoid(gates[:, 3 * H:4 * H])
        c = f_g * c + i_g * g_g
        h = o_g * jnp.tanh(c)
        return (h, c), h

    init = (jnp.zeros((B, H), jnp.float32), jnp.zeros((B, H), jnp.float32))
    _, ys = jax.lax.scan(step, init, x)
    return ys


def decoder_ref(x, params):
    h0f = _lstm_dir_ref(x, *params["l0_fwd"])
    h0b = jnp.flip(_lstm_dir_ref(jnp.flip(x, axis=0), *params["l0_bwd"]), axis=0)
    x1 = jnp.concatenate([h0f, h0b], axis=-1)
    h1f = _lstm_dir_ref(x1, *params["l1_fwd"])
    h1b = jnp.flip(_lstm_dir_ref(jnp.flip(x1, axis=0), *params["l1_bwd"]), axis=0)
    x2 = jnp.concatenate([h1f, h1b], axis=-1)
    return x2 @ params["dense_w"] + params["dense_b"]


# -----------------------------------------------------------------------------
# Deterministic parameter init (PyTorch-style uniform(-1/sqrt(H), 1/sqrt(H)))
# Gate weights are stored fused: (in, 4H), gate order (i, f, g, o); bias pre-summed.
# -----------------------------------------------------------------------------
def init_params(key, input_size=20, hidden=64, out_features=24):
    keys = iter(jax.random.split(key, 20))

    def lstm_dir_params(in_size):
        k = 1.0 / np.sqrt(hidden)
        w_ih = jax.random.uniform(next(keys), (in_size, 4 * hidden), jnp.float32, -k, k)
        w_hh = jax.random.uniform(next(keys), (hidden, 4 * hidden), jnp.float32, -k, k)
        b_ih = jax.random.uniform(next(keys), (1, 4 * hidden), jnp.float32, -k, k)
        b_hh = jax.random.uniform(next(keys), (1, 4 * hidden), jnp.float32, -k, k)
        return (w_ih, w_hh, b_ih + b_hh)

    params = {
        "l0_fwd": lstm_dir_params(input_size),
        "l0_bwd": lstm_dir_params(input_size),
        "l1_fwd": lstm_dir_params(2 * hidden),
        "l1_bwd": lstm_dir_params(2 * hidden),
    }
    kd = 1.0 / np.sqrt(2 * hidden)
    params["dense_w"] = jax.random.uniform(next(keys), (2 * hidden, out_features),
                                           jnp.float32, -kd, kd)
    params["dense_b"] = jax.random.uniform(next(keys), (1, out_features),
                                           jnp.float32, -kd, kd)
    return params


# -----------------------------------------------------------------------------
if __name__ == "__main__":
    key = jax.random.PRNGKey(0)
    pkey, xkey = jax.random.split(key)

    params = init_params(pkey)

    T, B, I = 8, 2, 20          # (seq_len, batch, input_size) — time-major like nn.LSTM
    x = jax.random.normal(xkey, (T, B, I), jnp.float32)

    y = decoder_forward(x, params)
    y = jax.block_until_ready(y)

    assert y.shape == (T, B, 24), y.shape

    y_ref = jax.block_until_ready(decoder_ref(x, params))
    np.testing.assert_allclose(np.asarray(y), np.asarray(y_ref), rtol=2e-3, atol=2e-3)

    print("KERNEL_OK")
</pallas_src>

<mosaic_0001>
module attributes {stable_mosaic.version = 11 : i64} {
  func.func @decoder_kernel(%arg0: memref<8x2x20xf32, #tpu.memory_space<vmem>>, %arg1: memref<20x256xf32, #tpu.memory_space<vmem>>, %arg2: memref<64x256xf32, #tpu.memory_space<vmem>>, %arg3: memref<1x256xf32, #tpu.memory_space<vmem>>, %arg4: memref<20x256xf32, #tpu.memory_space<vmem>>, %arg5: memref<64x256xf32, #tpu.memory_space<vmem>>, %arg6: memref<1x256xf32, #tpu.memory_space<vmem>>, %arg7: memref<128x256xf32, #tpu.memory_space<vmem>>, %arg8: memref<64x256xf32, #tpu.memory_space<vmem>>, %arg9: memref<1x256xf32, #tpu.memory_space<vmem>>, %arg10: memref<128x256xf32, #tpu.memory_space<vmem>>, %arg11: memref<64x256xf32, #tpu.memory_space<vmem>>, %arg12: memref<1x256xf32, #tpu.memory_space<vmem>>, %arg13: memref<128x24xf32, #tpu.memory_space<vmem>>, %arg14: memref<1x24xf32, #tpu.memory_space<vmem>>, %arg15: memref<8x2x24xf32, #tpu.memory_space<vmem>>, %arg16: memref<8x2x64xf32, #tpu.memory_space<vmem>>, %arg17: memref<8x2x64xf32, #tpu.memory_space<vmem>>, %arg18: memref<8x2x64xf32, #tpu.memory_space<vmem>>, %arg19: memref<8x2x64xf32, #tpu.memory_space<vmem>>) attributes {dimension_semantics = [], scalar_prefetch = 0 : i64, scratch_operands = 4 : i64, tpu.core_type = #tpu.core_type<tc>} {
    %c0 = arith.constant 0 : index
    %c0_0 = arith.constant 0 : index
    %c0_1 = arith.constant 0 : index
    %0 = vector.load %arg0[%c0, %c0_0, %c0_1] : memref<8x2x20xf32, #tpu.memory_space<vmem>>, vector<8x2x20xf32>
    %1 = vector.shape_cast %0 : vector<8x2x20xf32> to vector<16x20xf32>
    %c0_2 = arith.constant 0 : index
    %c0_3 = arith.constant 0 : index
    %2 = vector.load %arg1[%c0_2, %c0_3] : memref<20x256xf32, #tpu.memory_space<vmem>>, vector<20x256xf32>
    %cst = arith.constant dense<0.000000e+00> : vector<16x256xf32>
    %3 = tpu.matmul %1, %2, %cst {dimension_numbers = #tpu.dot_dimension_numbers<[1], [0], [0], [1], [0, 0, 1, 1], [], []>} : vector<16x20xf32>, vector<20x256xf32>, vector<16x256xf32> -> vector<16x256xf32>
    %c0_4 = arith.constant 0 : index
    %c0_5 = arith.constant 0 : index
    %4 = vector.load %arg3[%c0_4, %c0_5] : memref<1x256xf32, #tpu.memory_space<vmem>>, vector<1x256xf32>
    %5 = vector.broadcast %4 : vector<1x256xf32> to vector<16x256xf32>
    %6 = arith.addf %3, %5 : vector<16x256xf32>
    %7 = vector.shape_cast %6 : vector<16x256xf32> to vector<8x2x256xf32>
    %c0_6 = arith.constant 0 : index
    %c0_7 = arith.constant 0 : index
    %8 = vector.load %arg4[%c0_6, %c0_7] : memref<20x256xf32, #tpu.memory_space<vmem>>, vector<20x256xf32>
    %cst_8 = arith.constant dense<0.000000e+00> : vector<16x256xf32>
    %9 = tpu.matmul %1, %8, %cst_8 {dimension_numbers = #tpu.dot_dimension_numbers<[1], [0], [0], [1], [0, 0, 1, 1], [], []>} : vector<16x20xf32>, vector<20x256xf32>, vector<16x256xf32> -> vector<16x256xf32>
    %c0_9 = arith.constant 0 : index
    %c0_10 = arith.constant 0 : index
    %10 = vector.load %arg6[%c0_9, %c0_10] : memref<1x256xf32, #tpu.memory_space<vmem>>, vector<1x256xf32>
    %11 = vector.broadcast %10 : vector<1x256xf32> to vector<16x256xf32>
    %12 = arith.addf %9, %11 : vector<16x256xf32>
    %13 = vector.shape_cast %12 : vector<16x256xf32> to vector<8x2x256xf32>
    %c0_11 = arith.constant 0 : index
    %c0_12 = arith.constant 0 : index
    %14 = vector.load %arg2[%c0_11, %c0_12] : memref<64x256xf32, #tpu.memory_space<vmem>>, vector<64x256xf32>
    %c0_13 = arith.constant 0 : index
    %c0_14 = arith.constant 0 : index
    %15 = vector.load %arg5[%c0_13, %c0_14] : memref<64x256xf32, #tpu.memory_space<vmem>>, vector<64x256xf32>
    %cst_15 = arith.constant 0.000000e+00 : f32
    %16 = vector.broadcast %cst_15 : f32 to vector<2x64xf32>
    %cst_16 = arith.constant 0.000000e+00 : f32
    %17 = vector.broadcast %cst_16 : f32 to vector<2x64xf32>
    %cst_17 = arith.constant 0.000000e+00 : f32
    %18 = vector.broadcast %cst_17 : f32 to vector<2x64xf32>
    %cst_18 = arith.constant 0.000000e+00 : f32
    %19 = vector.broadcast %cst_18 : f32 to vector<2x64xf32>
    %20 = vector.extract_strided_slice %7 {offsets = [0, 0, 0], sizes = [1, 2, 256], strides = [1, 1, 1]} : vector<8x2x256xf32> to vector<1x2x256xf32>
    %21 = vector.shape_cast %20 : vector<1x2x256xf32> to vector<2x256xf32>
    %cst_19 = arith.constant dense<0.000000e+00> : vector<2x256xf32>
    %22 = tpu.matmul %16, %14, %cst_19 {dimension_numbers = #tpu.dot_dimension_numbers<[1], [0], [0], [1], [0, 0, 1, 1], [], []>} : vector<2x64xf32>, vector<64x256xf32>, vector<2x256xf32> -> vector<2x256xf32>
    %23 = arith.addf %21, %22 : vector<2x256xf32>
    %24 = vector.extract_strided_slice %23 {offsets = [0, 0], sizes = [2, 64], strides = [1, 1]} : vector<2x256xf32> to vector<2x64xf32>
    %25 = arith.negf %24 : vector<2x64xf32>
    %26 = math.exp %25 : vector<2x64xf32>
    %cst_20 = arith.constant 1.000000e+00 : f32
    %27 = vector.broadcast %cst_20 : f32 to vector<2x64xf32>
    %28 = arith.addf %27, %26 : vector<2x64xf32>
    %29 = arith.divf %27, %28 : vector<2x64xf32>
    %30 = vector.extract_strided_slice %23 {offsets = [0, 64], sizes = [2, 64], strides = [1, 1]} : vector<2x256xf32> to vector<2x64xf32>
    %31 = arith.negf %30 : vector<2x64xf32>
    %32 = math.exp %31 : vector<2x64xf32>
    %cst_21 = arith.constant 1.000000e+00 : f32
    %33 = vector.broadcast %cst_21 : f32 to vector<2x64xf32>
    %34 = arith.addf %33, %32 : vector<2x64xf32>
    %35 = arith.divf %33, %34 : vector<2x64xf32>
    %36 = vector.extract_strided_slice %23 {offsets = [0, 128], sizes = [2, 64], strides = [1, 1]} : vector<2x256xf32> to vector<2x64xf32>
    %37 = math.tanh %36 : vector<2x64xf32>
    %38 = vector.extract_strided_slice %23 {offsets = [0, 192], sizes = [2, 64], strides = [1, 1]} : vector<2x256xf32> to vector<2x64xf32>
    %39 = arith.negf %38 : vector<2x64xf32>
    %40 = math.exp %39 : vector<2x64xf32>
    %cst_22 = arith.constant 1.000000e+00 : f32
    %41 = vector.broadcast %cst_22 : f32 to vector<2x64xf32>
    %42 = arith.addf %41, %40 : vector<2x64xf32>
    %43 = arith.divf %41, %42 : vector<2x64xf32>
    %44 = arith.mulf %35, %17 : vector<2x64xf32>
    %45 = arith.mulf %29, %37 : vector<2x64xf32>
    %46 = arith.addf %44, %45 : vector<2x64xf32>
    %47 = math.tanh %46 : vector<2x64xf32>
    %48 = arith.mulf %43, %47 : vector<2x64xf32>
    %c0_23 = arith.constant 0 : index
    %c0_24 = arith.constant 0 : index
    %c0_25 = arith.constant 0 : index
    %49 = vector.load %arg16[%c0_23, %c0_24, %c0_25] : memref<8x2x64xf32, #tpu.memory_space<vmem>>, vector<1x2x64xf32>
    %50 = vector.shape_cast %49 : vector<1x2x64xf32> to vector<2x64xf32>
    %51 = vector.shape_cast %48 : vector<2x64xf32> to vector<1x2x64xf32>
    tpu.vector_store %arg16[%c0_23, %c0_24, %c0_25], %51 {strides = array<i32>} : memref<8x2x64xf32, #tpu.memory_space<vmem>>, vector<1x2x64xf32>,
    %52 = vector.extract_strided_slice %13 {offsets = [7, 0, 0], sizes = [1, 2, 256], strides = [1, 1, 1]} : vector<8x2x256xf32> to vector<1x2x256xf32>
    %53 = vector.shape_cast %52 : vector<1x2x256xf32> to vector<2x256xf32>
    %cst_26 = arith.constant dense<0.000000e+00> : vector<2x256xf32>
    %54 = tpu.matmul %18, %15, %cst_26 {dimension_numbers = #tpu.dot_dimension_numbers<[1], [0], [0], [1], [0, 0, 1, 1], [], []>} : vector<2x64xf32>, vector<64x256xf32>, vector<2x256xf32> -> vector<2x256xf32>
    %55 = arith.addf %53, %54 : vector<2x256xf32>
    %56 = vector.extract_strided_slice %55 {offsets = [0, 0], sizes = [2, 64], strides = [1, 1]} : vector<2x256xf32> to vector<2x64xf32>
    %57 = arith.negf %56 : vector<2x64xf32>
    %58 = math.exp %57 : vector<2x64xf32>
    %cst_27 = arith.constant 1.000000e+00 : f32
    %59 = vector.broadcast %cst_27 : f32 to vector<2x64xf32>
    %60 = arith.addf %59, %58 : vector<2x64xf32>
    %61 = arith.divf %59, %60 : vector<2x64xf32>
    %62 = vector.extract_strided_slice %55 {offsets = [0, 64], sizes = [2, 64], strides = [1, 1]} : vector<2x256xf32> to vector<2x64xf32>
    %63 = arith.negf %62 : vector<2x64xf32>
    %64 = math.exp %63 : vector<2x64xf32>
    %cst_28 = arith.constant 1.000000e+00 : f32
    %65 = vector.broadcast %cst_28 : f32 to vector<2x64xf32>
    %66 = arith.addf %65, %64 : vector<2x64xf32>
    %67 = arith.divf %65, %66 : vector<2x64xf32>
    %68 = vector.extract_strided_slice %55 {offsets = [0, 128], sizes = [2, 64], strides = [1, 1]} : vector<2x256xf32> to vector<2x64xf32>
    %69 = math.tanh %68 : vector<2x64xf32>
    %70 = vector.extract_strided_slice %55 {offsets = [0, 192], sizes = [2, 64], strides = [1, 1]} : vector<2x256xf32> to vector<2x64xf32>
    %71 = arith.negf %70 : vector<2x64xf32>
    %72 = math.exp %71 : vector<2x64xf32>
    %cst_29 = arith.constant 1.000000e+00 : f32
    %73 = vector.broadcast %cst_29 : f32 to vector<2x64xf32>
    %74 = arith.addf %73, %72 : vector<2x64xf32>
    %75 = arith.divf %73, %74 : vector<2x64xf32>
    %76 = arith.mulf %67, %19 : vector<2x64xf32>
    %77 = arith.mulf %61, %69 : vector<2x64xf32>
    %78 = arith.addf %76, %77 : vector<2x64xf32>
    %79 = math.tanh %78 : vector<2x64xf32>
    %80 = arith.mulf %75, %79 : vector<2x64xf32>
    %c7 = arith.constant 7 : index
    %c0_30 = arith.constant 0 : index
    %c0_31 = arith.constant 0 : index
    %81 = vector.load %arg17[%c7, %c0_30, %c0_31] : memref<8x2x64xf32, #tpu.memory_space<vmem>>, vector<1x2x64xf32>
    %82 = vector.shape_cast %81 : vector<1x2x64xf32> to vector<2x64xf32>
    %83 = vector.shape_cast %80 : vector<2x64xf32> to vector<1x2x64xf32>
    tpu.vector_store %arg17[%c7, %c0_30, %c0_31], %83 {strides = array<i32>} : memref<8x2x64xf32, #tpu.memory_space<vmem>>, vector<1x2x64xf32>,
    %84 = vector.extract_strided_slice %7 {offsets = [1, 0, 0], sizes = [1, 2, 256], strides = [1, 1, 1]} : vector<8x2x256xf32> to vector<1x2x256xf32>
    %85 = vector.shape_cast %84 : vector<1x2x256xf32> to vector<2x256xf32>
    %cst_32 = arith.constant dense<0.000000e+00> : vector<2x256xf32>
    %86 = tpu.matmul %48, %14, %cst_32 {dimension_numbers = #tpu.dot_dimension_numbers<[1], [0], [0], [1], [0, 0, 1, 1], [], []>} : vector<2x64xf32>, vector<64x256xf32>, vector<2x256xf32> -> vector<2x256xf32>
    %87 = arith.addf %85, %86 : vector<2x256xf32>
    %88 = vector.extract_strided_slice %87 {offsets = [0, 0], sizes = [2, 64], strides = [1, 1]} : vector<2x256xf32> to vector<2x64xf32>
    %89 = arith.negf %88 : vector<2x64xf32>
    %90 = math.exp %89 : vector<2x64xf32>
    %cst_33 = arith.constant 1.000000e+00 : f32
    %91 = vector.broadcast %cst_33 : f32 to vector<2x64xf32>
    %92 = arith.addf %91, %90 : vector<2x64xf32>
    %93 = arith.divf %91, %92 : vector<2x64xf32>
    %94 = vector.extract_strided_slice %87 {offsets = [0, 64], sizes = [2, 64], strides = [1, 1]} : vector<2x256xf32> to vector<2x64xf32>
    %95 = arith.negf %94 : vector<2x64xf32>
    %96 = math.exp %95 : vector<2x64xf32>
    %cst_34 = arith.constant 1.000000e+00 : f32
    %97 = vector.broadcast %cst_34 : f32 to vector<2x64xf32>
    %98 = arith.addf %97, %96 : vector<2x64xf32>
    %99 = arith.divf %97, %98 : vector<2x64xf32>
    %100 = vector.extract_strided_slice %87 {offsets = [0, 128], sizes = [2, 64], strides = [1, 1]} : vector<2x256xf32> to vector<2x64xf32>
    %101 = math.tanh %100 : vector<2x64xf32>
    %102 = vector.extract_strided_slice %87 {offsets = [0, 192], sizes = [2, 64], strides = [1, 1]} : vector<2x256xf32> to vector<2x64xf32>
    %103 = arith.negf %102 : vector<2x64xf32>
    %104 = math.exp %103 : vector<2x64xf32>
    %cst_35 = arith.constant 1.000000e+00 : f32
    %105 = vector.broadcast %cst_35 : f32 to vector<2x64xf32>
    %106 = arith.addf %105, %104 : vector<2x64xf32>
    %107 = arith.divf %105, %106 : vector<2x64xf32>
    %108 = arith.mulf %99, %46 : vector<2x64xf32>
    %109 = arith.mulf %93, %101 : vector<2x64xf32>
    %110 = arith.addf %108, %109 : vector<2x64xf32>
    %111 = math.tanh %110 : vector<2x64xf32>
    %112 = arith.mulf %107, %111 : vector<2x64xf32>
    %c1 = arith.constant 1 : index
    %c0_36 = arith.constant 0 : index
    %c0_37 = arith.constant 0 : index
    %113 = vector.load %arg16[%c1, %c0_36, %c0_37] : memref<8x2x64xf32, #tpu.memory_space<vmem>>, vector<1x2x64xf32>
    %114 = vector.shape_cast %113 : vector<1x2x64xf32> to vector<2x64xf32>
    %115 = vector.shape_cast %112 : vector<2x64xf32> to vector<1x2x64xf32>
    tpu.vector_store %arg16[%c1, %c0_36, %c0_37], %115 {strides = array<i32>} : memref<8x2x64xf32, #tpu.memory_space<vmem>>, vector<1x2x64xf32>,
    %116 = vector.extract_strided_slice %13 {offsets = [6, 0, 0], sizes = [1, 2, 256], strides = [1, 1, 1]} : vector<8x2x256xf32> to vector<1x2x256xf32>
    %117 = vector.shape_cast %116 : vector<1x2x256xf32> to vector<2x256xf32>
    %cst_38 = arith.constant dense<0.000000e+00> : vector<2x256xf32>
    %118 = tpu.matmul %80, %15, %cst_38 {dimension_numbers = #tpu.dot_dimension_numbers<[1], [0], [0], [1], [0, 0, 1, 1], [], []>} : vector<2x64xf32>, vector<64x256xf32>, vector<2x256xf32> -> vector<2x256xf32>
    %119 = arith.addf %117, %118 : vector<2x256xf32>
    %120 = vector.extract_strided_slice %119 {offsets = [0, 0], sizes = [2, 64], strides = [1, 1]} : vector<2x256xf32> to vector<2x64xf32>
    %121 = arith.negf %120 : vector<2x64xf32>
    %122 = math.exp %121 : vector<2x64xf32>
    %cst_39 = arith.constant 1.000000e+00 : f32
    %123 = vector.broadcast %cst_39 : f32 to vector<2x64xf32>
    %124 = arith.addf %123, %122 : vector<2x64xf32>
    %125 = arith.divf %123, %124 : vector<2x64xf32>
    %126 = vector.extract_strided_slice %119 {offsets = [0, 64], sizes = [2, 64], strides = [1, 1]} : vector<2x256xf32> to vector<2x64xf32>
    %127 = arith.negf %126 : vector<2x64xf32>
    %128 = math.exp %127 : vector<2x64xf32>
    %cst_40 = arith.constant 1.000000e+00 : f32
    %129 = vector.broadcast %cst_40 : f32 to vector<2x64xf32>
    %130 = arith.addf %129, %128 : vector<2x64xf32>
    %131 = arith.divf %129, %130 : vector<2x64xf32>
    %132 = vector.extract_strided_slice %119 {offsets = [0, 128], sizes = [2, 64], strides = [1, 1]} : vector<2x256xf32> to vector<2x64xf32>
    %133 = math.tanh %132 : vector<2x64xf32>
    %134 = vector.extract_strided_slice %119 {offsets = [0, 192], sizes = [2, 64], strides = [1, 1]} : vector<2x256xf32> to vector<2x64xf32>
    %135 = arith.negf %134 : vector<2x64xf32>
    %136 = math.exp %135 : vector<2x64xf32>
    %cst_41 = arith.constant 1.000000e+00 : f32
    %137 = vector.broadcast %cst_41 : f32 to vector<2x64xf32>
    %138 = arith.addf %137, %136 : vector<2x64xf32>
    %139 = arith.divf %137, %138 : vector<2x64xf32>
    %140 = arith.mulf %131, %78 : vector<2x64xf32>
    %141 = arith.mulf %125, %133 : vector<2x64xf32>
    %142 = arith.addf %140, %141 : vector<2x64xf32>
    %143 = math.tanh %142 : vector<2x64xf32>
    %144 = arith.mulf %139, %143 : vector<2x64xf32>
    %c6 = arith.constant 6 : index
    %c0_42 = arith.constant 0 : index
    %c0_43 = arith.constant 0 : index
    %145 = vector.load %arg17[%c6, %c0_42, %c0_43] : memref<8x2x64xf32, #tpu.memory_space<vmem>>, vector<1x2x64xf32>
    %146 = vector.shape_cast %145 : vector<1x2x64xf32> to vector<2x64xf32>
    %147 = vector.shape_cast %144 : vector<2x64xf32> to vector<1x2x64xf32>
    tpu.vector_store %arg17[%c6, %c0_42, %c0_43], %147 {strides = array<i32>} : memref<8x2x64xf32, #tpu.memory_space<vmem>>, vector<1x2x64xf32>,
    %148 = vector.extract_strided_slice %7 {offsets = [2, 0, 0], sizes = [1, 2, 256], strides = [1, 1, 1]} : vector<8x2x256xf32> to vector<1x2x256xf32>
    %149 = vector.shape_cast %148 : vector<1x2x256xf32> to vector<2x256xf32>
    %cst_44 = arith.constant dense<0.000000e+00> : vector<2x256xf32>
    %150 = tpu.matmul %112, %14, %cst_44 {dimension_numbers = #tpu.dot_dimension_numbers<[1], [0], [0], [1], [0, 0, 1, 1], [], []>} : vector<2x64xf32>, vector<64x256xf32>, vector<2x256xf32> -> vector<2x256xf32>
    %151 = arith.addf %149, %150 : vector<2x256xf32>
    %152 = vector.extract_strided_slice %151 {offsets = [0, 0], sizes = [2, 64], strides = [1, 1]} : vector<2x256xf32> to vector<2x64xf32>
    %153 = arith.negf %152 : vector<2x64xf32>
    %154 = math.exp %153 : vector<2x64xf32>
    %cst_45 = arith.constant 1.000000e+00 : f32
    %155 = vector.broadcast %cst_45 : f32 to vector<2x64xf32>
    %156 = arith.addf %155, %154 : vector<2x64xf32>
    %157 = arith.divf %155, %156 : vector<2x64xf32>
    %158 = vector.extract_strided_slice %151 {offsets = [0, 64], sizes = [2, 64], strides = [1, 1]} : vector<2x256xf32> to vector<2x64xf32>
    %159 = arith.negf %158 : vector<2x64xf32>
    %160 = math.exp %159 : vector<2x64xf32>
    %cst_46 = arith.constant 1.000000e+00 : f32
    %161 = vector.broadcast %cst_46 : f32 to vector<2x64xf32>
    %162 = arith.addf %161, %160 : vector<2x64xf32>
    %163 = arith.divf %161, %162 : vector<2x64xf32>
    %164 = vector.extract_strided_slice %151 {offsets = [0, 128], sizes = [2, 64], strides = [1, 1]} : vector<2x256xf32> to vector<2x64xf32>
    %165 = math.tanh %164 : vector<2x64xf32>
    %166 = vector.extract_strided_slice %151 {offsets = [0, 192], sizes = [2, 64], strides = [1, 1]} : vector<2x256xf32> to vector<2x64xf32>
    %167 = arith.negf %166 : vector<2x64xf32>
    %168 = math.exp %167 : vector<2x64xf32>
    %cst_47 = arith.constant 1.000000e+00 : f32
    %169 = vector.broadcast %cst_47 : f32 to vector<2x64xf32>
    %170 = arith.addf %169, %168 : vector<2x64xf32>
    %171 = arith.divf %169, %170 : vector<2x64xf32>
    %172 = arith.mulf %163, %110 : vector<2x64xf32>
    %173 = arith.mulf %157, %165 : vector<2x64xf32>
    %174 = arith.addf %172, %173 : vector<2x64xf32>
    %175 = math.tanh %174 : vector<2x64xf32>
    %176 = arith.mulf %171, %175 : vector<2x64xf32>
    %c2 = arith.constant 2 : index
    %c0_48 = arith.constant 0 : index
    %c0_49 = arith.constant 0 : index
    %177 = vector.load %arg16[%c2, %c0_48, %c0_49] : memref<8x2x64xf32, #tpu.memory_space<vmem>>, vector<1x2x64xf32>
    %178 = vector.shape_cast %177 : vector<1x2x64xf32> to vector<2x64xf32>
    %179 = vector.shape_cast %176 : vector<2x64xf32> to vector<1x2x64xf32>
    tpu.vector_store %arg16[%c2, %c0_48, %c0_49], %179 {strides = array<i32>} : memref<8x2x64xf32, #tpu.memory_space<vmem>>, vector<1x2x64xf32>,
    %180 = vector.extract_strided_slice %13 {offsets = [5, 0, 0], sizes = [1, 2, 256], strides = [1, 1, 1]} : vector<8x2x256xf32> to vector<1x2x256xf32>
    %181 = vector.shape_cast %180 : vector<1x2x256xf32> to vector<2x256xf32>
    %cst_50 = arith.constant dense<0.000000e+00> : vector<2x256xf32>
    %182 = tpu.matmul %144, %15, %cst_50 {dimension_numbers = #tpu.dot_dimension_numbers<[1], [0], [0], [1], [0, 0, 1, 1], [], []>} : vector<2x64xf32>, vector<64x256xf32>, vector<2x256xf32> -> vector<2x256xf32>
    %183 = arith.addf %181, %182 : vector<2x256xf32>
    %184 = vector.extract_strided_slice %183 {offsets = [0, 0], sizes = [2, 64], strides = [1, 1]} : vector<2x256xf32> to vector<2x64xf32>
    %185 = arith.negf %184 : vector<2x64xf32>
    %186 = math.exp %185 : vector<2x64xf32>
    %cst_51 = arith.constant 1.000000e+00 : f32
    %187 = vector.broadcast %cst_51 : f32 to vector<2x64xf32>
    %188 = arith.addf %187, %186 : vector<2x64xf32>
    %189 = arith.divf %187, %188 : vector<2x64xf32>
    %190 = vector.extract_strided_slice %183 {offsets = [0, 64], sizes = [2, 64], strides = [1, 1]} : vector<2x256xf32> to vector<2x64xf32>
    %191 = arith.negf %190 : vector<2x64xf32>
    %192 = math.exp %191 : vector<2x64xf32>
    %cst_52 = arith.constant 1.000000e+00 : f32
    %193 = vector.broadcast %cst_52 : f32 to vector<2x64xf32>
    %194 = arith.addf %193, %192 : vector<2x64xf32>
    %195 = arith.divf %193, %194 : vector<2x64xf32>
    %196 = vector.extract_strided_slice %183 {offsets = [0, 128], sizes = [2, 64], strides = [1, 1]} : vector<2x256xf32> to vector<2x64xf32>
    %197 = math.tanh %196 : vector<2x64xf32>
    %198 = vector.extract_strided_slice %183 {offsets = [0, 192], sizes = [2, 64], strides = [1, 1]} : vector<2x256xf32> to vector<2x64xf32>
    %199 = arith.negf %198 : vector<2x64xf32>
    %200 = math.exp %199 : vector<2x64xf32>
    %cst_53 = arith.constant 1.000000e+00 : f32
    %201 = vector.broadcast %cst_53 : f32 to vector<2x64xf32>
    %202 = arith.addf %201, %200 : vector<2x64xf32>
    %203 = arith.divf %201, %202 : vector<2x64xf32>
    %204 = arith.mulf %195, %142 : vector<2x64xf32>
    %205 = arith.mulf %189, %197 : vector<2x64xf32>
    %206 = arith.addf %204, %205 : vector<2x64xf32>
    %207 = math.tanh %206 : vector<2x64xf32>
    %208 = arith.mulf %203, %207 : vector<2x64xf32>
    %c5 = arith.constant 5 : index
    %c0_54 = arith.constant 0 : index
    %c0_55 = arith.constant 0 : index
    %209 = vector.load %arg17[%c5, %c0_54, %c0_55] : memref<8x2x64xf32, #tpu.memory_space<vmem>>, vector<1x2x64xf32>
    %210 = vector.shape_cast %209 : vector<1x2x64xf32> to vector<2x64xf32>
    %211 = vector.shape_cast %208 : vector<2x64xf32> to vector<1x2x64xf32>
    tpu.vector_store %arg17[%c5, %c0_54, %c0_55], %211 {strides = array<i32>} : memref<8x2x64xf32, #tpu.memory_space<vmem>>, vector<1x2x64xf32>,
    %212 = vector.extract_strided_slice %7 {offsets = [3, 0, 0], sizes = [1, 2, 256], strides = [1, 1, 1]} : vector<8x2x256xf32> to vector<1x2x256xf32>
    %213 = vector.shape_cast %212 : vector<1x2x256xf32> to vector<2x256xf32>
    %cst_56 = arith.constant dense<0.000000e+00> : vector<2x256xf32>
    %214 = tpu.matmul %176, %14, %cst_56 {dimension_numbers = #tpu.dot_dimension_numbers<[1], [0], [0], [1], [0, 0, 1, 1], [], []>} : vector<2x64xf32>, vector<64x256xf32>, vector<2x256xf32> -> vector<2x256xf32>
    %215 = arith.addf %213, %214 : vector<2x256xf32>
    %216 = vector.extract_strided_slice %215 {offsets = [0, 0], sizes = [2, 64], strides = [1, 1]} : vector<2x256xf32> to vector<2x64xf32>
    %217 = arith.negf %216 : vector<2x64xf32>
    %218 = math.exp %217 : vector<2x64xf32>
    %cst_57 = arith.constant 1.000000e+00 : f32
    %219 = vector.broadcast %cst_57 : f32 to vector<2x64xf32>
    %220 = arith.addf %219, %218 : vector<2x64xf32>
    %221 = arith.divf %219, %220 : vector<2x64xf32>
    %222 = vector.extract_strided_slice %215 {offsets = [0, 64], sizes = [2, 64], strides = [1, 1]} : vector<2x256xf32> to vector<2x64xf32>
    %223 = arith.negf %222 : vector<2x64xf32>
    %224 = math.exp %223 : vector<2x64xf32>
    %cst_58 = arith.constant 1.000000e+00 : f32
    %225 = vector.broadcast %cst_58 : f32 to vector<2x64xf32>
    %226 = arith.addf %225, %224 : vector<2x64xf32>
    %227 = arith.divf %225, %226 : vector<2x64xf32>
    %228 = vector.extract_strided_slice %215 {offsets = [0, 128], sizes = [2, 64], strides = [1, 1]} : vector<2x256xf32> to vector<2x64xf32>
    %229 = math.tanh %228 : vector<2x64xf32>
    %230 = vector.extract_strided_slice %215 {offsets = [0, 192], sizes = [2, 64], strides = [1, 1]} : vector<2x256xf32> to vector<2x64xf32>
    %231 = arith.negf %230 : vector<2x64xf32>
    %232 = math.exp %231 : vector<2x64xf32>
    %cst_59 = arith.constant 1.000000e+00 : f32
    %233 = vector.broadcast %cst_59 : f32 to vector<2x64xf32>
    %234 = arith.addf %233, %232 : vector<2x64xf32>
    %235 = arith.divf %233, %234 : vector<2x64xf32>
    %236 = arith.mulf %227, %174 : vector<2x64xf32>
    %237 = arith.mulf %221, %229 : vector<2x64xf32>
    %238 = arith.addf %236, %237 : vector<2x64xf32>
    %239 = math.tanh %238 : vector<2x64xf32>
    %240 = arith.mulf %235, %239 : vector<2x64xf32>
    %c3 = arith.constant 3 : index
    %c0_60 = arith.constant 0 : index
    %c0_61 = arith.constant 0 : index
    %241 = vector.load %arg16[%c3, %c0_60, %c0_61] : memref<8x2x64xf32, #tpu.memory_space<vmem>>, vector<1x2x64xf32>
    %242 = vector.shape_cast %241 : vector<1x2x64xf32> to vector<2x64xf32>
    %243 = vector.shape_cast %240 : vector<2x64xf32> to vector<1x2x64xf32>
    tpu.vector_store %arg16[%c3, %c0_60, %c0_61], %243 {strides = array<i32>} : memref<8x2x64xf32, #tpu.memory_space<vmem>>, vector<1x2x64xf32>,
    %244 = vector.extract_strided_slice %13 {offsets = [4, 0, 0], sizes = [1, 2, 256], strides = [1, 1, 1]} : vector<8x2x256xf32> to vector<1x2x256xf32>
    %245 = vector.shape_cast %244 : vector<1x2x256xf32> to vector<2x256xf32>
    %cst_62 = arith.constant dense<0.000000e+00> : vector<2x256xf32>
    %246 = tpu.matmul %208, %15, %cst_62 {dimension_numbers = #tpu.dot_dimension_numbers<[1], [0], [0], [1], [0, 0, 1, 1], [], []>} : vector<2x64xf32>, vector<64x256xf32>, vector<2x256xf32> -> vector<2x256xf32>
    %247 = arith.addf %245, %246 : vector<2x256xf32>
    %248 = vector.extract_strided_slice %247 {offsets = [0, 0], sizes = [2, 64], strides = [1, 1]} : vector<2x256xf32> to vector<2x64xf32>
    %249 = arith.negf %248 : vector<2x64xf32>
    %250 = math.exp %249 : vector<2x64xf32>
    %cst_63 = arith.constant 1.000000e+00 : f32
    %251 = vector.broadcast %cst_63 : f32 to vector<2x64xf32>
    %252 = arith.addf %251, %250 : vector<2x64xf32>
    %253 = arith.divf %251, %252 : vector<2x64xf32>
    %254 = vector.extract_strided_slice %247 {offsets = [0, 64], sizes = [2, 64], strides = [1, 1]} : vector<2x256xf32> to vector<2x64xf32>
    %255 = arith.negf %254 : vector<2x64xf32>
    %256 = math.exp %255 : vector<2x64xf32>
    %cst_64 = arith.constant 1.000000e+00 : f32
    %257 = vector.broadcast %cst_64 : f32 to vector<2x64xf32>
    %258 = arith.addf %257, %256 : vector<2x64xf32>
    %259 = arith.divf %257, %258 : vector<2x64xf32>
    %260 = vector.extract_strided_slice %247 {offsets = [0, 128], sizes = [2, 64], strides = [1, 1]} : vector<2x256xf32> to vector<2x64xf32>
    %261 = math.tanh %260 : vector<2x64xf32>
    %262 = vector.extract_strided_slice %247 {offsets = [0, 192], sizes = [2, 64], strides = [1, 1]} : vector<2x256xf32> to vector<2x64xf32>
    %263 = arith.negf %262 : vector<2x64xf32>
    %264 = math.exp %263 : vector<2x64xf32>
    %cst_65 = arith.constant 1.000000e+00 : f32
    %265 = vector.broadcast %cst_65 : f32 to vector<2x64xf32>
    %266 = arith.addf %265, %264 : vector<2x64xf32>
    %267 = arith.divf %265, %266 : vector<2x64xf32>
    %268 = arith.mulf %259, %206 : vector<2x64xf32>
    %269 = arith.mulf %253, %261 : vector<2x64xf32>
    %270 = arith.addf %268, %269 : vector<2x64xf32>
    %271 = math.tanh %270 : vector<2x64xf32>
    %272 = arith.mulf %267, %271 : vector<2x64xf32>
    %c4 = arith.constant 4 : index
    %c0_66 = arith.constant 0 : index
    %c0_67 = arith.constant 0 : index
    %273 = vector.load %arg17[%c4, %c0_66, %c0_67] : memref<8x2x64xf32, #tpu.memory_space<vmem>>, vector<1x2x64xf32>
    %274 = vector.shape_cast %273 : vector<1x2x64xf32> to vector<2x64xf32>
    %275 = vector.shape_cast %272 : vector<2x64xf32> to vector<1x2x64xf32>
    tpu.vector_store %arg17[%c4, %c0_66, %c0_67], %275 {strides = array<i32>} : memref<8x2x64xf32, #tpu.memory_space<vmem>>, vector<1x2x64xf32>,
    %276 = vector.extract_strided_slice %7 {offsets = [4, 0, 0], sizes = [1, 2, 256], strides = [1, 1, 1]} : vector<8x2x256xf32> to vector<1x2x256xf32>
    %277 = vector.shape_cast %276 : vector<1x2x256xf32> to vector<2x256xf32>
    %cst_68 = arith.constant dense<0.000000e+00> : vector<2x256xf32>
    %278 = tpu.matmul %240, %14, %cst_68 {dimension_numbers = #tpu.dot_dimension_numbers<[1], [0], [0], [1], [0, 0, 1, 1], [], []>} : vector<2x64xf32>, vector<64x256xf32>, vector<2x256xf32> -> vector<2x256xf32>
    %279 = arith.addf %277, %278 : vector<2x256xf32>
    %280 = vector.extract_strided_slice %279 {offsets = [0, 0], sizes = [2, 64], strides = [1, 1]} : vector<2x256xf32> to vector<2x64xf32>
    %281 = arith.negf %280 : vector<2x64xf32>
    %282 = math.exp %281 : vector<2x64xf32>
    %cst_69 = arith.constant 1.000000e+00 : f32
    %283 = vector.broadcast %cst_69 : f32 to vector<2x64xf32>
    %284 = arith.addf %283, %282 : vector<2x64xf32>
    %285 = arith.divf %283, %284 : vector<2x64xf32>
    %286 = vector.extract_strided_slice %279 {offsets = [0, 64], sizes = [2, 64], strides = [1, 1]} : vector<2x256xf32> to vector<2x64xf32>
    %287 = arith.negf %286 : vector<2x64xf32>
    %288 = math.exp %287 : vector<2x64xf32>
    %cst_70 = arith.constant 1.000000e+00 : f32
    %289 = vector.broadcast %cst_70 : f32 to vector<2x64xf32>
    %290 = arith.addf %289, %288 : vector<2x64xf32>
    %291 = arith.divf %289, %290 : vector<2x64xf32>
    %292 = vector.extract_strided_slice %279 {offsets = [0, 128], sizes = [2, 64], strides = [1, 1]} : vector<2x256xf32> to vector<2x64xf32>
    %293 = math.tanh %292 : vector<2x64xf32>
    %294 = vector.extract_strided_slice %279 {offsets = [0, 192], sizes = [2, 64], strides = [1, 1]} : vector<2x256xf32> to vector<2x64xf32>
    %295 = arith.negf %294 : vector<2x64xf32>
    %296 = math.exp %295 : vector<2x64xf32>
    %cst_71 = arith.constant 1.000000e+00 : f32
    %297 = vector.broadcast %cst_71 : f32 to vector<2x64xf32>
    %298 = arith.addf %297, %296 : vector<2x64xf32>
    %299 = arith.divf %297, %298 : vector<2x64xf32>
    %300 = arith.mulf %291, %238 : vector<2x64xf32>
    %301 = arith.mulf %285, %293 : vector<2x64xf32>
    %302 = arith.addf %300, %301 : vector<2x64xf32>
    %303 = math.tanh %302 : vector<2x64xf32>
    %304 = arith.mulf %299, %303 : vector<2x64xf32>
    %c4_72 = arith.constant 4 : index
    %c0_73 = arith.constant 0 : index
    %c0_74 = arith.constant 0 : index
    %305 = vector.load %arg16[%c4_72, %c0_73, %c0_74] : memref<8x2x64xf32, #tpu.memory_space<vmem>>, vector<1x2x64xf32>
    %306 = vector.shape_cast %305 : vector<1x2x64xf32> to vector<2x64xf32>
    %307 = vector.shape_cast %304 : vector<2x64xf32> to vector<1x2x64xf32>
    tpu.vector_store %arg16[%c4_72, %c0_73, %c0_74], %307 {strides = array<i32>} : memref<8x2x64xf32, #tpu.memory_space<vmem>>, vector<1x2x64xf32>,
    %308 = vector.extract_strided_slice %13 {offsets = [3, 0, 0], sizes = [1, 2, 256], strides = [1, 1, 1]} : vector<8x2x256xf32> to vector<1x2x256xf32>
    %309 = vector.shape_cast %308 : vector<1x2x256xf32> to vector<2x256xf32>
    %cst_75 = arith.constant dense<0.000000e+00> : vector<2x256xf32>
    %310 = tpu.matmul %272, %15, %cst_75 {dimension_numbers = #tpu.dot_dimension_numbers<[1], [0], [0], [1], [0, 0, 1, 1], [], []>} : vector<2x64xf32>, vector<64x256xf32>, vector<2x256xf32> -> vector<2x256xf32>
    %311 = arith.addf %309, %310 : vector<2x256xf32>
    %312 = vector.extract_strided_slice %311 {offsets = [0, 0], sizes = [2, 64], strides = [1, 1]} : vector<2x256xf32> to vector<2x64xf32>
    %313 = arith.negf %312 : vector<2x64xf32>
    %314 = math.exp %313 : vector<2x64xf32>
    %cst_76 = arith.constant 1.000000e+00 : f32
    %315 = vector.broadcast %cst_76 : f32 to vector<2x64xf32>
    %316 = arith.addf %315, %314 : vector<2x64xf32>
    %317 = arith.divf %315, %316 : vector<2x64xf32>
    %318 = vector.extract_strided_slice %311 {offsets = [0, 64], sizes = [2, 64], strides = [1, 1]} : vector<2x256xf32> to vector<2x64xf32>
    %319 = arith.negf %318 : vector<2x64xf32>
    %320 = math.exp %319 : vector<2x64xf32>
    %cst_77 = arith.constant 1.000000e+00 : f32
    %321 = vector.broadcast %cst_77 : f32 to vector<2x64xf32>
    %322 = arith.addf %321, %320 : vector<2x64xf32>
    %323 = arith.divf %321, %322 : vector<2x64xf32>
    %324 = vector.extract_strided_slice %311 {offsets = [0, 128], sizes = [2, 64], strides = [1, 1]} : vector<2x256xf32> to vector<2x64xf32>
    %325 = math.tanh %324 : vector<2x64xf32>
    %326 = vector.extract_strided_slice %311 {offsets = [0, 192], sizes = [2, 64], strides = [1, 1]} : vector<2x256xf32> to vector<2x64xf32>
    %327 = arith.negf %326 : vector<2x64xf32>
    %328 = math.exp %327 : vector<2x64xf32>
    %cst_78 = arith.constant 1.000000e+00 : f32
    %329 = vector.broadcast %cst_78 : f32 to vector<2x64xf32>
    %330 = arith.addf %329, %328 : vector<2x64xf32>
    %331 = arith.divf %329, %330 : vector<2x64xf32>
    %332 = arith.mulf %323, %270 : vector<2x64xf32>
    %333 = arith.mulf %317, %325 : vector<2x64xf32>
    %334 = arith.addf %332, %333 : vector<2x64xf32>
    %335 = math.tanh %334 : vector<2x64xf32>
    %336 = arith.mulf %331, %335 : vector<2x64xf32>
    %c3_79 = arith.constant 3 : index
    %c0_80 = arith.constant 0 : index
    %c0_81 = arith.constant 0 : index
    %337 = vector.load %arg17[%c3_79, %c0_80, %c0_81] : memref<8x2x64xf32, #tpu.memory_space<vmem>>, vector<1x2x64xf32>
    %338 = vector.shape_cast %337 : vector<1x2x64xf32> to vector<2x64xf32>
    %339 = vector.shape_cast %336 : vector<2x64xf32> to vector<1x2x64xf32>
    tpu.vector_store %arg17[%c3_79, %c0_80, %c0_81], %339 {strides = array<i32>} : memref<8x2x64xf32, #tpu.memory_space<vmem>>, vector<1x2x64xf32>,
    %340 = vector.extract_strided_slice %7 {offsets = [5, 0, 0], sizes = [1, 2, 256], strides = [1, 1, 1]} : vector<8x2x256xf32> to vector<1x2x256xf32>
    %341 = vector.shape_cast %340 : vector<1x2x256xf32> to vector<2x256xf32>
    %cst_82 = arith.constant dense<0.000000e+00> : vector<2x256xf32>
    %342 = tpu.matmul %304, %14, %cst_82 {dimension_numbers = #tpu.dot_dimension_numbers<[1], [0], [0], [1], [0, 0, 1, 1], [], []>} : vector<2x64xf32>, vector<64x256xf32>, vector<2x256xf32> -> vector<2x256xf32>
    %343 = arith.addf %341, %342 : vector<2x256xf32>
    %344 = vector.extract_strided_slice %343 {offsets = [0, 0], sizes = [2, 64], strides = [1, 1]} : vector<2x256xf32> to vector<2x64xf32>
    %345 = arith.negf %344 : vector<2x64xf32>
    %346 = math.exp %345 : vector<2x64xf32>
    %cst_83 = arith.constant 1.000000e+00 : f32
    %347 = vector.broadcast %cst_83 : f32 to vector<2x64xf32>
    %348 = arith.addf %347, %346 : vector<2x64xf32>
    %349 = arith.divf %347, %348 : vector<2x64xf32>
    %350 = vector.extract_strided_slice %343 {offsets = [0, 64], sizes = [2, 64], strides = [1, 1]} : vector<2x256xf32> to vector<2x64xf32>
    %351 = arith.negf %350 : vector<2x64xf32>
    %352 = math.exp %351 : vector<2x64xf32>
    %cst_84 = arith.constant 1.000000e+00 : f32
    %353 = vector.broadcast %cst_84 : f32 to vector<2x64xf32>
    %354 = arith.addf %353, %352 : vector<2x64xf32>
    %355 = arith.divf %353, %354 : vector<2x64xf32>
    %356 = vector.extract_strided_slice %343 {offsets = [0, 128], sizes = [2, 64], strides = [1, 1]} : vector<2x256xf32> to vector<2x64xf32>
    %357 = math.tanh %356 : vector<2x64xf32>
    %358 = vector.extract_strided_slice %343 {offsets = [0, 192], sizes = [2, 64], strides = [1, 1]} : vector<2x256xf32> to vector<2x64xf32>
    %359 = arith.negf %358 : vector<2x64xf32>
    %360 = math.exp %359 : vector<2x64xf32>
    %cst_85 = arith.constant 1.000000e+00 : f32
    %361 = vector.broadcast %cst_85 : f32 to vector<2x64xf32>
    %362 = arith.addf %361, %360 : vector<2x64xf32>
    %363 = arith.divf %361, %362 : vector<2x64xf32>
    %364 = arith.mulf %355, %302 : vector<2x64xf32>
    %365 = arith.mulf %349, %357 : vector<2x64xf32>
    %366 = arith.addf %364, %365 : vector<2x64xf32>
    %367 = math.tanh %366 : vector<2x64xf32>
    %368 = arith.mulf %363, %367 : vector<2x64xf32>
    %c5_86 = arith.constant 5 : index
    %c0_87 = arith.constant 0 : index
    %c0_88 = arith.constant 0 : index
    %369 = vector.load %arg16[%c5_86, %c0_87, %c0_88] : memref<8x2x64xf32, #tpu.memory_space<vmem>>, vector<1x2x64xf32>
    %370 = vector.shape_cast %369 : vector<1x2x64xf32> to vector<2x64xf32>
    %371 = vector.shape_cast %368 : vector<2x64xf32> to vector<1x2x64xf32>
    tpu.vector_store %arg16[%c5_86, %c0_87, %c0_88], %371 {strides = array<i32>} : memref<8x2x64xf32, #tpu.memory_space<vmem>>, vector<1x2x64xf32>,
    %372 = vector.extract_strided_slice %13 {offsets = [2, 0, 0], sizes = [1, 2, 256], strides = [1, 1, 1]} : vector<8x2x256xf32> to vector<1x2x256xf32>
    %373 = vector.shape_cast %372 : vector<1x2x256xf32> to vector<2x256xf32>
    %cst_89 = arith.constant dense<0.000000e+00> : vector<2x256xf32>
    %374 = tpu.matmul %336, %15, %cst_89 {dimension_numbers = #tpu.dot_dimension_numbers<[1], [0], [0], [1], [0, 0, 1, 1], [], []>} : vector<2x64xf32>, vector<64x256xf32>, vector<2x256xf32> -> vector<2x256xf32>
    %375 = arith.addf %373, %374 : vector<2x256xf32>
    %376 = vector.extract_strided_slice %375 {offsets = [0, 0], sizes = [2, 64], strides = [1, 1]} : vector<2x256xf32> to vector<2x64xf32>
    %377 = arith.negf %376 : vector<2x64xf32>
    %378 = math.exp %377 : vector<2x64xf32>
    %cst_90 = arith.constant 1.000000e+00 : f32
    %379 = vector.broadcast %cst_90 : f32 to vector<2x64xf32>
    %380 = arith.addf %379, %378 : vector<2x64xf32>
    %381 = arith.divf %379, %380 : vector<2x64xf32>
    %382 = vector.extract_strided_slice %375 {offsets = [0, 64], sizes = [2, 64], strides = [1, 1]} : vector<2x256xf32> to vector<2x64xf32>
    %383 = arith.negf %382 : vector<2x64xf32>
    %384 = math.exp %383 : vector<2x64xf32>
    %cst_91 = arith.constant 1.000000e+00 : f32
    %385 = vector.broadcast %cst_91 : f32 to vector<2x64xf32>
    %386 = arith.addf %385, %384 : vector<2x64xf32>
    %387 = arith.divf %385, %386 : vector<2x64xf32>
    %388 = vector.extract_strided_slice %375 {offsets = [0, 128], sizes = [2, 64], strides = [1, 1]} : vector<2x256xf32> to vector<2x64xf32>
    %389 = math.tanh %388 : vector<2x64xf32>
    %390 = vector.extract_strided_slice %375 {offsets = [0, 192], sizes = [2, 64], strides = [1, 1]} : vector<2x256xf32> to vector<2x64xf32>
    %391 = arith.negf %390 : vector<2x64xf32>
    %392 = math.exp %391 : vector<2x64xf32>
    %cst_92 = arith.constant 1.000000e+00 : f32
    %393 = vector.broadcast %cst_92 : f32 to vector<2x64xf32>
    %394 = arith.addf %393, %392 : vector<2x64xf32>
    %395 = arith.divf %393, %394 : vector<2x64xf32>
    %396 = arith.mulf %387, %334 : vector<2x64xf32>
    %397 = arith.mulf %381, %389 : vector<2x64xf32>
    %398 = arith.addf %396, %397 : vector<2x64xf32>
    %399 = math.tanh %398 : vector<2x64xf32>
    %400 = arith.mulf %395, %399 : vector<2x64xf32>
    %c2_93 = arith.constant 2 : index
    %c0_94 = arith.constant 0 : index
    %c0_95 = arith.constant 0 : index
    %401 = vector.load %arg17[%c2_93, %c0_94, %c0_95] : memref<8x2x64xf32, #tpu.memory_space<vmem>>, vector<1x2x64xf32>
    %402 = vector.shape_cast %401 : vector<1x2x64xf32> to vector<2x64xf32>
    %403 = vector.shape_cast %400 : vector<2x64xf32> to vector<1x2x64xf32>
    tpu.vector_store %arg17[%c2_93, %c0_94, %c0_95], %403 {strides = array<i32>} : memref<8x2x64xf32, #tpu.memory_space<vmem>>, vector<1x2x64xf32>,
    %404 = vector.extract_strided_slice %7 {offsets = [6, 0, 0], sizes = [1, 2, 256], strides = [1, 1, 1]} : vector<8x2x256xf32> to vector<1x2x256xf32>
    %405 = vector.shape_cast %404 : vector<1x2x256xf32> to vector<2x256xf32>
    %cst_96 = arith.constant dense<0.000000e+00> : vector<2x256xf32>
    %406 = tpu.matmul %368, %14, %cst_96 {dimension_numbers = #tpu.dot_dimension_numbers<[1], [0], [0], [1], [0, 0, 1, 1], [], []>} : vector<2x64xf32>, vector<64x256xf32>, vector<2x256xf32> -> vector<2x256xf32>
    %407 = arith.addf %405, %406 : vector<2x256xf32>
    %408 = vector.extract_strided_slice %407 {offsets = [0, 0], sizes = [2, 64], strides = [1, 1]} : vector<2x256xf32> to vector<2x64xf32>
    %409 = arith.negf %408 : vector<2x64xf32>
    %410 = math.exp %409 : vector<2x64xf32>
    %cst_97 = arith.constant 1.000000e+00 : f32
    %411 = vector.broadcast %cst_97 : f32 to vector<2x64xf32>
    %412 = arith.addf %411, %410 : vector<2x64xf32>
    %413 = arith.divf %411, %412 : vector<2x64xf32>
    %414 = vector.extract_strided_slice %407 {offsets = [0, 64], sizes = [2, 64], strides = [1, 1]} : vector<2x256xf32> to vector<2x64xf32>
    %415 = arith.negf %414 : vector<2x64xf32>
    %416 = math.exp %415 : vector<2x64xf32>
    %cst_98 = arith.constant 1.000000e+00 : f32
    %417 = vector.broadcast %cst_98 : f32 to vector<2x64xf32>
    %418 = arith.addf %417, %416 : vector<2x64xf32>
    %419 = arith.divf %417, %418 : vector<2x64xf32>
    %420 = vector.extract_strided_slice %407 {offsets = [0, 128], sizes = [2, 64], strides = [1, 1]} : vector<2x256xf32> to vector<2x64xf32>
    %421 = math.tanh %420 : vector<2x64xf32>
    %422 = vector.extract_strided_slice %407 {offsets = [0, 192], sizes = [2, 64], strides = [1, 1]} : vector<2x256xf32> to vector<2x64xf32>
    %423 = arith.negf %422 : vector<2x64xf32>
    %424 = math.exp %423 : vector<2x64xf32>
    %cst_99 = arith.constant 1.000000e+00 : f32
    %425 = vector.broadcast %cst_99 : f32 to vector<2x64xf32>
    %426 = arith.addf %425, %424 : vector<2x64xf32>
    %427 = arith.divf %425, %426 : vector<2x64xf32>
    %428 = arith.mulf %419, %366 : vector<2x64xf32>
    %429 = arith.mulf %413, %421 : vector<2x64xf32>
    %430 = arith.addf %428, %429 : vector<2x64xf32>
    %431 = math.tanh %430 : vector<2x64xf32>
    %432 = arith.mulf %427, %431 : vector<2x64xf32>
    %c6_100 = arith.constant 6 : index
    %c0_101 = arith.constant 0 : index
    %c0_102 = arith.constant 0 : index
    %433 = vector.load %arg16[%c6_100, %c0_101, %c0_102] : memref<8x2x64xf32, #tpu.memory_space<vmem>>, vector<1x2x64xf32>
    %434 = vector.shape_cast %433 : vector<1x2x64xf32> to vector<2x64xf32>
    %435 = vector.shape_cast %432 : vector<2x64xf32> to vector<1x2x64xf32>
    tpu.vector_store %arg16[%c6_100, %c0_101, %c0_102], %435 {strides = array<i32>} : memref<8x2x64xf32, #tpu.memory_space<vmem>>, vector<1x2x64xf32>,
    %436 = vector.extract_strided_slice %13 {offsets = [1, 0, 0], sizes = [1, 2, 256], strides = [1, 1, 1]} : vector<8x2x256xf32> to vector<1x2x256xf32>
    %437 = vector.shape_cast %436 : vector<1x2x256xf32> to vector<2x256xf32>
    %cst_103 = arith.constant dense<0.000000e+00> : vector<2x256xf32>
    %438 = tpu.matmul %400, %15, %cst_103 {dimension_numbers = #tpu.dot_dimension_numbers<[1], [0], [0], [1], [0, 0, 1, 1], [], []>} : vector<2x64xf32>, vector<64x256xf32>, vector<2x256xf32> -> vector<2x256xf32>
    %439 = arith.addf %437, %438 : vector<2x256xf32>
    %440 = vector.extract_strided_slice %439 {offsets = [0, 0], sizes = [2, 64], strides = [1, 1]} : vector<2x256xf32> to vector<2x64xf32>
    %441 = arith.negf %440 : vector<2x64xf32>
    %442 = math.exp %441 : vector<2x64xf32>
    %cst_104 = arith.constant 1.000000e+00 : f32
    %443 = vector.broadcast %cst_104 : f32 to vector<2x64xf32>
    %444 = arith.addf %443, %442 : vector<2x64xf32>
    %445 = arith.divf %443, %444 : vector<2x64xf32>
    %446 = vector.extract_strided_slice %439 {offsets = [0, 64], sizes = [2, 64], strides = [1, 1]} : vector<2x256xf32> to vector<2x64xf32>
    %447 = arith.negf %446 : vector<2x64xf32>
    %448 = math.exp %447 : vector<2x64xf32>
    %cst_105 = arith.constant 1.000000e+00 : f32
    %449 = vector.broadcast %cst_105 : f32 to vector<2x64xf32>
    %450 = arith.addf %449, %448 : vector<2x64xf32>
    %451 = arith.divf %449, %450 : vector<2x64xf32>
    %452 = vector.extract_strided_slice %439 {offsets = [0, 128], sizes = [2, 64], strides = [1, 1]} : vector<2x256xf32> to vector<2x64xf32>
    %453 = math.tanh %452 : vector<2x64xf32>
    %454 = vector.extract_strided_slice %439 {offsets = [0, 192], sizes = [2, 64], strides = [1, 1]} : vector<2x256xf32> to vector<2x64xf32>
    %455 = arith.negf %454 : vector<2x64xf32>
    %456 = math.exp %455 : vector<2x64xf32>
    %cst_106 = arith.constant 1.000000e+00 : f32
    %457 = vector.broadcast %cst_106 : f32 to vector<2x64xf32>
    %458 = arith.addf %457, %456 : vector<2x64xf32>
    %459 = arith.divf %457, %458 : vector<2x64xf32>
    %460 = arith.mulf %451, %398 : vector<2x64xf32>
    %461 = arith.mulf %445, %453 : vector<2x64xf32>
    %462 = arith.addf %460, %461 : vector<2x64xf32>
    %463 = math.tanh %462 : vector<2x64xf32>
    %464 = arith.mulf %459, %463 : vector<2x64xf32>
    %c1_107 = arith.constant 1 : index
    %c0_108 = arith.constant 0 : index
    %c0_109 = arith.constant 0 : index
    %465 = vector.load %arg17[%c1_107, %c0_108, %c0_109] : memref<8x2x64xf32, #tpu.memory_space<vmem>>, vector<1x2x64xf32>
    %466 = vector.shape_cast %465 : vector<1x2x64xf32> to vector<2x64xf32>
    %467 = vector.shape_cast %464 : vector<2x64xf32> to vector<1x2x64xf32>
    tpu.vector_store %arg17[%c1_107, %c0_108, %c0_109], %467 {strides = array<i32>} : memref<8x2x64xf32, #tpu.memory_space<vmem>>, vector<1x2x64xf32>,
    %468 = vector.extract_strided_slice %7 {offsets = [7, 0, 0], sizes = [1, 2, 256], strides = [1, 1, 1]} : vector<8x2x256xf32> to vector<1x2x256xf32>
    %469 = vector.shape_cast %468 : vector<1x2x256xf32> to vector<2x256xf32>
    %cst_110 = arith.constant dense<0.000000e+00> : vector<2x256xf32>
    %470 = tpu.matmul %432, %14, %cst_110 {dimension_numbers = #tpu.dot_dimension_numbers<[1], [0], [0], [1], [0, 0, 1, 1], [], []>} : vector<2x64xf32>, vector<64x256xf32>, vector<2x256xf32> -> vector<2x256xf32>
    %471 = arith.addf %469, %470 : vector<2x256xf32>
    %472 = vector.extract_strided_slice %471 {offsets = [0, 0], sizes = [2, 64], strides = [1, 1]} : vector<2x256xf32> to vector<2x64xf32>
    %473 = arith.negf %472 : vector<2x64xf32>
    %474 = math.exp %473 : vector<2x64xf32>
    %cst_111 = arith.constant 1.000000e+00 : f32
    %475 = vector.broadcast %cst_111 : f32 to vector<2x64xf32>
    %476 = arith.addf %475, %474 : vector<2x64xf32>
    %477 = arith.divf %475, %476 : vector<2x64xf32>
    %478 = vector.extract_strided_slice %471 {offsets = [0, 64], sizes = [2, 64], strides = [1, 1]} : vector<2x256xf32> to vector<2x64xf32>
    %479 = arith.negf %478 : vector<2x64xf32>
    %480 = math.exp %479 : vector<2x64xf32>
    %cst_112 = arith.constant 1.000000e+00 : f32
    %481 = vector.broadcast %cst_112 : f32 to vector<2x64xf32>
    %482 = arith.addf %481, %480 : vector<2x64xf32>
    %483 = arith.divf %481, %482 : vector<2x64xf32>
    %484 = vector.extract_strided_slice %471 {offsets = [0, 128], sizes = [2, 64], strides = [1, 1]} : vector<2x256xf32> to vector<2x64xf32>
    %485 = math.tanh %484 : vector<2x64xf32>
    %486 = vector.extract_strided_slice %471 {offsets = [0, 192], sizes = [2, 64], strides = [1, 1]} : vector<2x256xf32> to vector<2x64xf32>
    %487 = arith.negf %486 : vector<2x64xf32>
    %488 = math.exp %487 : vector<2x64xf32>
    %cst_113 = arith.constant 1.000000e+00 : f32
    %489 = vector.broadcast %cst_113 : f32 to vector<2x64xf32>
    %490 = arith.addf %489, %488 : vector<2x64xf32>
    %491 = arith.divf %489, %490 : vector<2x64xf32>
    %492 = arith.mulf %483, %430 : vector<2x64xf32>
    %493 = arith.mulf %477, %485 : vector<2x64xf32>
    %494 = arith.addf %492, %493 : vector<2x64xf32>
    %495 = math.tanh %494 : vector<2x64xf32>
    %496 = arith.mulf %491, %495 : vector<2x64xf32>
    %c7_114 = arith.constant 7 : index
    %c0_115 = arith.constant 0 : index
    %c0_116 = arith.constant 0 : index
    %497 = vector.load %arg16[%c7_114, %c0_115, %c0_116] : memref<8x2x64xf32, #tpu.memory_space<vmem>>, vector<1x2x64xf32>
    %498 = vector.shape_cast %497 : vector<1x2x64xf32> to vector<2x64xf32>
    %499 = vector.shape_cast %496 : vector<2x64xf32> to vector<1x2x64xf32>
    tpu.vector_store %arg16[%c7_114, %c0_115, %c0_116], %499 {strides = array<i32>} : memref<8x2x64xf32, #tpu.memory_space<vmem>>, vector<1x2x64xf32>,
    %500 = vector.extract_strided_slice %13 {offsets = [0, 0, 0], sizes = [1, 2, 256], strides = [1, 1, 1]} : vector<8x2x256xf32> to vector<1x2x256xf32>
    %501 = vector.shape_cast %500 : vector<1x2x256xf32> to vector<2x256xf32>
    %cst_117 = arith.constant dense<0.000000e+00> : vector<2x256xf32>
    %502 = tpu.matmul %464, %15, %cst_117 {dimension_numbers = #tpu.dot_dimension_numbers<[1], [0], [0], [1], [0, 0, 1, 1], [], []>} : vector<2x64xf32>, vector<64x256xf32>, vector<2x256xf32> -> vector<2x256xf32>
    %503 = arith.addf %501, %502 : vector<2x256xf32>
    %504 = vector.extract_strided_slice %503 {offsets = [0, 0], sizes = [2, 64], strides = [1, 1]} : vector<2x256xf32> to vector<2x64xf32>
    %505 = arith.negf %504 : vector<2x64xf32>
    %506 = math.exp %505 : vector<2x64xf32>
    %cst_118 = arith.constant 1.000000e+00 : f32
    %507 = vector.broadcast %cst_118 : f32 to vector<2x64xf32>
    %508 = arith.addf %507, %506 : vector<2x64xf32>
    %509 = arith.divf %507, %508 : vector<2x64xf32>
    %510 = vector.extract_strided_slice %503 {offsets = [0, 64], sizes = [2, 64], strides = [1, 1]} : vector<2x256xf32> to vector<2x64xf32>
    %511 = arith.negf %510 : vector<2x64xf32>
    %512 = math.exp %511 : vector<2x64xf32>
    %cst_119 = arith.constant 1.000000e+00 : f32
    %513 = vector.broadcast %cst_119 : f32 to vector<2x64xf32>
    %514 = arith.addf %513, %512 : vector<2x64xf32>
    %515 = arith.divf %513, %514 : vector<2x64xf32>
    %516 = vector.extract_strided_slice %503 {offsets = [0, 128], sizes = [2, 64], strides = [1, 1]} : vector<2x256xf32> to vector<2x64xf32>
    %517 = math.tanh %516 : vector<2x64xf32>
    %518 = vector.extract_strided_slice %503 {offsets = [0, 192], sizes = [2, 64], strides = [1, 1]} : vector<2x256xf32> to vector<2x64xf32>
    %519 = arith.negf %518 : vector<2x64xf32>
    %520 = math.exp %519 : vector<2x64xf32>
    %cst_120 = arith.constant 1.000000e+00 : f32
    %521 = vector.broadcast %cst_120 : f32 to vector<2x64xf32>
    %522 = arith.addf %521, %520 : vector<2x64xf32>
    %523 = arith.divf %521, %522 : vector<2x64xf32>
    %524 = arith.mulf %515, %462 : vector<2x64xf32>
    %525 = arith.mulf %509, %517 : vector<2x64xf32>
    %526 = arith.addf %524, %525 : vector<2x64xf32>
    %527 = math.tanh %526 : vector<2x64xf32>
    %528 = arith.mulf %523, %527 : vector<2x64xf32>
    %c0_121 = arith.constant 0 : index
    %c0_122 = arith.constant 0 : index
    %c0_123 = arith.constant 0 : index
    %529 = vector.load %arg17[%c0_121, %c0_122, %c0_123] : memref<8x2x64xf32, #tpu.memory_space<vmem>>, vector<1x2x64xf32>
    %530 = vector.shape_cast %529 : vector<1x2x64xf32> to vector<2x64xf32>
    %531 = vector.shape_cast %528 : vector<2x64xf32> to vector<1x2x64xf32>
    tpu.vector_store %arg17[%c0_121, %c0_122, %c0_123], %531 {strides = array<i32>} : memref<8x2x64xf32, #tpu.memory_space<vmem>>, vector<1x2x64xf32>,
    %c0_124 = arith.constant 0 : index
    %c0_125 = arith.constant 0 : index
    %c0_126 = arith.constant 0 : index
    %532 = vector.load %arg16[%c0_124, %c0_125, %c0_126] : memref<8x2x64xf32, #tpu.memory_space<vmem>>, vector<8x2x64xf32>
    %533 = vector.shape_cast %532 : vector<8x2x64xf32> to vector<16x64xf32>
    %c0_127 = arith.constant 0 : index
    %c0_128 = arith.constant 0 : index
    %c0_129 = arith.constant 0 : index
    %534 = vector.load %arg17[%c0_127, %c0_128, %c0_129] : memref<8x2x64xf32, #tpu.memory_space<vmem>>, vector<8x2x64xf32>
    %535 = vector.shape_cast %534 : vector<8x2x64xf32> to vector<16x64xf32>
    %c0_130 = arith.constant 0 : index
    %c0_131 = arith.constant 0 : index
    %536 = vector.load %arg7[%c0_130, %c0_131] : memref<128x256xf32, #tpu.memory_space<vmem>>, vector<128x256xf32>
    %c0_132 = arith.constant 0 : index
    %c0_133 = arith.constant 0 : index
    %537 = vector.load %arg10[%c0_132, %c0_133] : memref<128x256xf32, #tpu.memory_space<vmem>>, vector<128x256xf32>
    %538 = vector.extract_strided_slice %536 {offsets = [0, 0], sizes = [64, 256], strides = [1, 1]} : vector<128x256xf32> to vector<64x256xf32>
    %cst_134 = arith.constant dense<0.000000e+00> : vector<16x256xf32>
    %539 = tpu.matmul %533, %538, %cst_134 {dimension_numbers = #tpu.dot_dimension_numbers<[1], [0], [0], [1], [0, 0, 1, 1], [], []>} : vector<16x64xf32>, vector<64x256xf32>, vector<16x256xf32> -> vector<16x256xf32>
    %540 = vector.extract_strided_slice %536 {offsets = [64, 0], sizes = [64, 256], strides = [1, 1]} : vector<128x256xf32> to vector<64x256xf32>
    %cst_135 = arith.constant dense<0.000000e+00> : vector<16x256xf32>
    %541 = tpu.matmul %535, %540, %cst_135 {dimension_numbers = #tpu.dot_dimension_numbers<[1], [0], [0], [1], [0, 0, 1, 1], [], []>} : vector<16x64xf32>, vector<64x256xf32>, vector<16x256xf32> -> vector<16x256xf32>
    %542 = arith.addf %539, %541 : vector<16x256xf32>
    %c0_136 = arith.constant 0 : index
    %c0_137 = arith.constant 0 : index
    %543 = vector.load %arg9[%c0_136, %c0_137] : memref<1x256xf32, #tpu.memory_space<vmem>>, vector<1x256xf32>
    %544 = vector.broadcast %543 : vector<1x256xf32> to vector<16x256xf32>
    %545 = arith.addf %542, %544 : vector<16x256xf32>
    %546 = vector.shape_cast %545 : vector<16x256xf32> to vector<8x2x256xf32>
    %547 = vector.extract_strided_slice %537 {offsets = [0, 0], sizes = [64, 256], strides = [1, 1]} : vector<128x256xf32> to vector<64x256xf32>
    %cst_138 = arith.constant dense<0.000000e+00> : vector<16x256xf32>
    %548 = tpu.matmul %533, %547, %cst_138 {dimension_numbers = #tpu.dot_dimension_numbers<[1], [0], [0], [1], [0, 0, 1, 1], [], []>} : vector<16x64xf32>, vector<64x256xf32>, vector<16x256xf32> -> vector<16x256xf32>
    %549 = vector.extract_strided_slice %537 {offsets = [64, 0], sizes = [64, 256], strides = [1, 1]} : vector<128x256xf32> to vector<64x256xf32>
    %cst_139 = arith.constant dense<0.000000e+00> : vector<16x256xf32>
    %550 = tpu.matmul %535, %549, %cst_139 {dimension_numbers = #tpu.dot_dimension_numbers<[1], [0], [0], [1], [0, 0, 1, 1], [], []>} : vector<16x64xf32>, vector<64x256xf32>, vector<16x256xf32> -> vector<16x256xf32>
    %551 = arith.addf %548, %550 : vector<16x256xf32>
    %c0_140 = arith.constant 0 : index
    %c0_141 = arith.constant 0 : index
    %552 = vector.load %arg12[%c0_140, %c0_141] : memref<1x256xf32, #tpu.memory_space<vmem>>, vector<1x256xf32>
    %553 = vector.broadcast %552 : vector<1x256xf32> to vector<16x256xf32>
    %554 = arith.addf %551, %553 : vector<16x256xf32>
    %555 = vector.shape_cast %554 : vector<16x256xf32> to vector<8x2x256xf32>
    %c0_142 = arith.constant 0 : index
    %c0_143 = arith.constant 0 : index
    %556 = vector.load %arg8[%c0_142, %c0_143] : memref<64x256xf32, #tpu.memory_space<vmem>>, vector<64x256xf32>
    %c0_144 = arith.constant 0 : index
    %c0_145 = arith.constant 0 : index
    %557 = vector.load %arg11[%c0_144, %c0_145] : memref<64x256xf32, #tpu.memory_space<vmem>>, vector<64x256xf32>
    %cst_146 = arith.constant 0.000000e+00 : f32
    %558 = vector.broadcast %cst_146 : f32 to vector<2x64xf32>
    %cst_147 = arith.constant 0.000000e+00 : f32
    %559 = vector.broadcast %cst_147 : f32 to vector<2x64xf32>
    %cst_148 = arith.constant 0.000000e+00 : f32
    %560 = vector.broadcast %cst_148 : f32 to vector<2x64xf32>
    %cst_149 = arith.constant 0.000000e+00 : f32
    %561 = vector.broadcast %cst_149 : f32 to vector<2x64xf32>
    %562 = vector.extract_strided_slice %546 {offsets = [0, 0, 0], sizes = [1, 2, 256], strides = [1, 1, 1]} : vector<8x2x256xf32> to vector<1x2x256xf32>
    %563 = vector.shape_cast %562 : vector<1x2x256xf32> to vector<2x256xf32>
    %cst_150 = arith.constant dense<0.000000e+00> : vector<2x256xf32>
    %564 = tpu.matmul %558, %556, %cst_150 {dimension_numbers = #tpu.dot_dimension_numbers<[1], [0], [0], [1], [0, 0, 1, 1], [], []>} : vector<2x64xf32>, vector<64x256xf32>, vector<2x256xf32> -> vector<2x256xf32>
    %565 = arith.addf %563, %564 : vector<2x256xf32>
    %566 = vector.extract_strided_slice %565 {offsets = [0, 0], sizes = [2, 64], strides = [1, 1]} : vector<2x256xf32> to vector<2x64xf32>
    %567 = arith.negf %566 : vector<2x64xf32>
    %568 = math.exp %567 : vector<2x64xf32>
    %cst_151 = arith.constant 1.000000e+00 : f32
    %569 = vector.broadcast %cst_151 : f32 to vector<2x64xf32>
    %570 = arith.addf %569, %568 : vector<2x64xf32>
    %571 = arith.divf %569, %570 : vector<2x64xf32>
    %572 = vector.extract_strided_slice %565 {offsets = [0, 64], sizes = [2, 64], strides = [1, 1]} : vector<2x256xf32> to vector<2x64xf32>
    %573 = arith.negf %572 : vector<2x64xf32>
    %574 = math.exp %573 : vector<2x64xf32>
    %cst_152 = arith.constant 1.000000e+00 : f32
    %575 = vector.broadcast %cst_152 : f32 to vector<2x64xf32>
    %576 = arith.addf %575, %574 : vector<2x64xf32>
    %577 = arith.divf %575, %576 : vector<2x64xf32>
    %578 = vector.extract_strided_slice %565 {offsets = [0, 128], sizes = [2, 64], strides = [1, 1]} : vector<2x256xf32> to vector<2x64xf32>
    %579 = math.tanh %578 : vector<2x64xf32>
    %580 = vector.extract_strided_slice %565 {offsets = [0, 192], sizes = [2, 64], strides = [1, 1]} : vector<2x256xf32> to vector<2x64xf32>
    %581 = arith.negf %580 : vector<2x64xf32>
    %582 = math.exp %581 : vector<2x64xf32>
    %cst_153 = arith.constant 1.000000e+00 : f32
    %583 = vector.broadcast %cst_153 : f32 to vector<2x64xf32>
    %584 = arith.addf %583, %582 : vector<2x64xf32>
    %585 = arith.divf %583, %584 : vector<2x64xf32>
    %586 = arith.mulf %577, %559 : vector<2x64xf32>
    %587 = arith.mulf %571, %579 : vector<2x64xf32>
    %588 = arith.addf %586, %587 : vector<2x64xf32>
    %589 = math.tanh %588 : vector<2x64xf32>
    %590 = arith.mulf %585, %589 : vector<2x64xf32>
    %c0_154 = arith.constant 0 : index
    %c0_155 = arith.constant 0 : index
    %c0_156 = arith.constant 0 : index
    %591 = vector.load %arg18[%c0_154, %c0_155, %c0_156] : memref<8x2x64xf32, #tpu.memory_space<vmem>>, vector<1x2x64xf32>
    %592 = vector.shape_cast %591 : vector<1x2x64xf32> to vector<2x64xf32>
    %593 = vector.shape_cast %590 : vector<2x64xf32> to vector<1x2x64xf32>
    tpu.vector_store %arg18[%c0_154, %c0_155, %c0_156], %593 {strides = array<i32>} : memref<8x2x64xf32, #tpu.memory_space<vmem>>, vector<1x2x64xf32>,
    %594 = vector.extract_strided_slice %555 {offsets = [7, 0, 0], sizes = [1, 2, 256], strides = [1, 1, 1]} : vector<8x2x256xf32> to vector<1x2x256xf32>
    %595 = vector.shape_cast %594 : vector<1x2x256xf32> to vector<2x256xf32>
    %cst_157 = arith.constant dense<0.000000e+00> : vector<2x256xf32>
    %596 = tpu.matmul %560, %557, %cst_157 {dimension_numbers = #tpu.dot_dimension_numbers<[1], [0], [0], [1], [0, 0, 1, 1], [], []>} : vector<2x64xf32>, vector<64x256xf32>, vector<2x256xf32> -> vector<2x256xf32>
    %597 = arith.addf %595, %596 : vector<2x256xf32>
    %598 = vector.extract_strided_slice %597 {offsets = [0, 0], sizes = [2, 64], strides = [1, 1]} : vector<2x256xf32> to vector<2x64xf32>
    %599 = arith.negf %598 : vector<2x64xf32>
    %600 = math.exp %599 : vector<2x64xf32>
    %cst_158 = arith.constant 1.000000e+00 : f32
    %601 = vector.broadcast %cst_158 : f32 to vector<2x64xf32>
    %602 = arith.addf %601, %600 : vector<2x64xf32>
    %603 = arith.divf %601, %602 : vector<2x64xf32>
    %604 = vector.extract_strided_slice %597 {offsets = [0, 64], sizes = [2, 64], strides = [1, 1]} : vector<2x256xf32> to vector<2x64xf32>
    %605 = arith.negf %604 : vector<2x64xf32>
    %606 = math.exp %605 : vector<2x64xf32>
    %cst_159 = arith.constant 1.000000e+00 : f32
    %607 = vector.broadcast %cst_159 : f32 to vector<2x64xf32>
    %608 = arith.addf %607, %606 : vector<2x64xf32>
    %609 = arith.divf %607, %608 : vector<2x64xf32>
    %610 = vector.extract_strided_slice %597 {offsets = [0, 128], sizes = [2, 64], strides = [1, 1]} : vector<2x256xf32> to vector<2x64xf32>
    %611 = math.tanh %610 : vector<2x64xf32>
    %612 = vector.extract_strided_slice %597 {offsets = [0, 192], sizes = [2, 64], strides = [1, 1]} : vector<2x256xf32> to vector<2x64xf32>
    %613 = arith.negf %612 : vector<2x64xf32>
    %614 = math.exp %613 : vector<2x64xf32>
    %cst_160 = arith.constant 1.000000e+00 : f32
    %615 = vector.broadcast %cst_160 : f32 to vector<2x64xf32>
    %616 = arith.addf %615, %614 : vector<2x64xf32>
    %617 = arith.divf %615, %616 : vector<2x64xf32>
    %618 = arith.mulf %609, %561 : vector<2x64xf32>
    %619 = arith.mulf %603, %611 : vector<2x64xf32>
    %620 = arith.addf %618, %619 : vector<2x64xf32>
    %621 = math.tanh %620 : vector<2x64xf32>
    %622 = arith.mulf %617, %621 : vector<2x64xf32>
    %c7_161 = arith.constant 7 : index
    %c0_162 = arith.constant 0 : index
    %c0_163 = arith.constant 0 : index
    %623 = vector.load %arg19[%c7_161, %c0_162, %c0_163] : memref<8x2x64xf32, #tpu.memory_space<vmem>>, vector<1x2x64xf32>
    %624 = vector.shape_cast %623 : vector<1x2x64xf32> to vector<2x64xf32>
    %625 = vector.shape_cast %622 : vector<2x64xf32> to vector<1x2x64xf32>
    tpu.vector_store %arg19[%c7_161, %c0_162, %c0_163], %625 {strides = array<i32>} : memref<8x2x64xf32, #tpu.memory_space<vmem>>, vector<1x2x64xf32>,
    %626 = vector.extract_strided_slice %546 {offsets = [1, 0, 0], sizes = [1, 2, 256], strides = [1, 1, 1]} : vector<8x2x256xf32> to vector<1x2x256xf32>
    %627 = vector.shape_cast %626 : vector<1x2x256xf32> to vector<2x256xf32>
    %cst_164 = arith.constant dense<0.000000e+00> : vector<2x256xf32>
    %628 = tpu.matmul %590, %556, %cst_164 {dimension_numbers = #tpu.dot_dimension_numbers<[1], [0], [0], [1], [0, 0, 1, 1], [], []>} : vector<2x64xf32>, vector<64x256xf32>, vector<2x256xf32> -> vector<2x256xf32>
    %629 = arith.addf %627, %628 : vector<2x256xf32>
    %630 = vector.extract_strided_slice %629 {offsets = [0, 0], sizes = [2, 64], strides = [1, 1]} : vector<2x256xf32> to vector<2x64xf32>
    %631 = arith.negf %630 : vector<2x64xf32>
    %632 = math.exp %631 : vector<2x64xf32>
    %cst_165 = arith.constant 1.000000e+00 : f32
    %633 = vector.broadcast %cst_165 : f32 to vector<2x64xf32>
    %634 = arith.addf %633, %632 : vector<2x64xf32>
    %635 = arith.divf %633, %634 : vector<2x64xf32>
    %636 = vector.extract_strided_slice %629 {offsets = [0, 64], sizes = [2, 64], strides = [1, 1]} : vector<2x256xf32> to vector<2x64xf32>
    %637 = arith.negf %636 : vector<2x64xf32>
    %638 = math.exp %637 : vector<2x64xf32>
    %cst_166 = arith.constant 1.000000e+00 : f32
    %639 = vector.broadcast %cst_166 : f32 to vector<2x64xf32>
    %640 = arith.addf %639, %638 : vector<2x64xf32>
    %641 = arith.divf %639, %640 : vector<2x64xf32>
    %642 = vector.extract_strided_slice %629 {offsets = [0, 128], sizes = [2, 64], strides = [1, 1]} : vector<2x256xf32> to vector<2x64xf32>
    %643 = math.tanh %642 : vector<2x64xf32>
    %644 = vector.extract_strided_slice %629 {offsets = [0, 192], sizes = [2, 64], strides = [1, 1]} : vector<2x256xf32> to vector<2x64xf32>
    %645 = arith.negf %644 : vector<2x64xf32>
    %646 = math.exp %645 : vector<2x64xf32>
    %cst_167 = arith.constant 1.000000e+00 : f32
    %647 = vector.broadcast %cst_167 : f32 to vector<2x64xf32>
    %648 = arith.addf %647, %646 : vector<2x64xf32>
    %649 = arith.divf %647, %648 : vector<2x64xf32>
    %650 = arith.mulf %641, %588 : vector<2x64xf32>
    %651 = arith.mulf %635, %643 : vector<2x64xf32>
    %652 = arith.addf %650, %651 : vector<2x64xf32>
    %653 = math.tanh %652 : vector<2x64xf32>
    %654 = arith.mulf %649, %653 : vector<2x64xf32>
    %c1_168 = arith.constant 1 : index
    %c0_169 = arith.constant 0 : index
    %c0_170 = arith.constant 0 : index
    %655 = vector.load %arg18[%c1_168, %c0_169, %c0_170] : memref<8x2x64xf32, #tpu.memory_space<vmem>>, vector<1x2x64xf32>
    %656 = vector.shape_cast %655 : vector<1x2x64xf32> to vector<2x64xf32>
    %657 = vector.shape_cast %654 : vector<2x64xf32> to vector<1x2x64xf32>
    tpu.vector_store %arg18[%c1_168, %c0_169, %c0_170], %657 {strides = array<i32>} : memref<8x2x64xf32, #tpu.memory_space<vmem>>, vector<1x2x64xf32>,
    %658 = vector.extract_strided_slice %555 {offsets = [6, 0, 0], sizes = [1, 2, 256], strides = [1, 1, 1]} : vector<8x2x256xf32> to vector<1x2x256xf32>
    %659 = vector.shape_cast %658 : vector<1x2x256xf32> to vector<2x256xf32>
    %cst_171 = arith.constant dense<0.000000e+00> : vector<2x256xf32>
    %660 = tpu.matmul %622, %557, %cst_171 {dimension_numbers = #tpu.dot_dimension_numbers<[1], [0], [0], [1], [0, 0, 1, 1], [], []>} : vector<2x64xf32>, vector<64x256xf32>, vector<2x256xf32> -> vector<2x256xf32>
    %661 = arith.addf %659, %660 : vector<2x256xf32>
    %662 = vector.extract_strided_slice %661 {offsets = [0, 0], sizes = [2, 64], strides = [1, 1]} : vector<2x256xf32> to vector<2x64xf32>
    %663 = arith.negf %662 : vector<2x64xf32>
    %664 = math.exp %663 : vector<2x64xf32>
    %cst_172 = arith.constant 1.000000e+00 : f32
    %665 = vector.broadcast %cst_172 : f32 to vector<2x64xf32>
    %666 = arith.addf %665, %664 : vector<2x64xf32>
    %667 = arith.divf %665, %666 : vector<2x64xf32>
    %668 = vector.extract_strided_slice %661 {offsets = [0, 64], sizes = [2, 64], strides = [1, 1]} : vector<2x256xf32> to vector<2x64xf32>
    %669 = arith.negf %668 : vector<2x64xf32>
    %670 = math.exp %669 : vector<2x64xf32>
    %cst_173 = arith.constant 1.000000e+00 : f32
    %671 = vector.broadcast %cst_173 : f32 to vector<2x64xf32>
    %672 = arith.addf %671, %670 : vector<2x64xf32>
    %673 = arith.divf %671, %672 : vector<2x64xf32>
    %674 = vector.extract_strided_slice %661 {offsets = [0, 128], sizes = [2, 64], strides = [1, 1]} : vector<2x256xf32> to vector<2x64xf32>
    %675 = math.tanh %674 : vector<2x64xf32>
    %676 = vector.extract_strided_slice %661 {offsets = [0, 192], sizes = [2, 64], strides = [1, 1]} : vector<2x256xf32> to vector<2x64xf32>
    %677 = arith.negf %676 : vector<2x64xf32>
    %678 = math.exp %677 : vector<2x64xf32>
    %cst_174 = arith.constant 1.000000e+00 : f32
    %679 = vector.broadcast %cst_174 : f32 to vector<2x64xf32>
    %680 = arith.addf %679, %678 : vector<2x64xf32>
    %681 = arith.divf %679, %680 : vector<2x64xf32>
    %682 = arith.mulf %673, %620 : vector<2x64xf32>
    %683 = arith.mulf %667, %675 : vector<2x64xf32>
    %684 = arith.addf %682, %683 : vector<2x64xf32>
    %685 = math.tanh %684 : vector<2x64xf32>
    %686 = arith.mulf %681, %685 : vector<2x64xf32>
    %c6_175 = arith.constant 6 : index
    %c0_176 = arith.constant 0 : index
    %c0_177 = arith.constant 0 : index
    %687 = vector.load %arg19[%c6_175, %c0_176, %c0_177] : memref<8x2x64xf32, #tpu.memory_space<vmem>>, vector<1x2x64xf32>
    %688 = vector.shape_cast %687 : vector<1x2x64xf32> to vector<2x64xf32>
    %689 = vector.shape_cast %686 : vector<2x64xf32> to vector<1x2x64xf32>
    tpu.vector_store %arg19[%c6_175, %c0_176, %c0_177], %689 {strides = array<i32>} : memref<8x2x64xf32, #tpu.memory_space<vmem>>, vector<1x2x64xf32>,
    %690 = vector.extract_strided_slice %546 {offsets = [2, 0, 0], sizes = [1, 2, 256], strides = [1, 1, 1]} : vector<8x2x256xf32> to vector<1x2x256xf32>
    %691 = vector.shape_cast %690 : vector<1x2x256xf32> to vector<2x256xf32>
    %cst_178 = arith.constant dense<0.000000e+00> : vector<2x256xf32>
    %692 = tpu.matmul %654, %556, %cst_178 {dimension_numbers = #tpu.dot_dimension_numbers<[1], [0], [0], [1], [0, 0, 1, 1], [], []>} : vector<2x64xf32>, vector<64x256xf32>, vector<2x256xf32> -> vector<2x256xf32>
    %693 = arith.addf %691, %692 : vector<2x256xf32>
    %694 = vector.extract_strided_slice %693 {offsets = [0, 0], sizes = [2, 64], strides = [1, 1]} : vector<2x256xf32> to vector<2x64xf32>
    %695 = arith.negf %694 : vector<2x64xf32>
    %696 = math.exp %695 : vector<2x64xf32>
    %cst_179 = arith.constant 1.000000e+00 : f32
    %697 = vector.broadcast %cst_179 : f32 to vector<2x64xf32>
    %698 = arith.addf %697, %696 : vector<2x64xf32>
    %699 = arith.divf %697, %698 : vector<2x64xf32>
    %700 = vector.extract_strided_slice %693 {offsets = [0, 64], sizes = [2, 64], strides = [1, 1]} : vector<2x256xf32> to vector<2x64xf32>
    %701 = arith.negf %700 : vector<2x64xf32>
    %702 = math.exp %701 : vector<2x64xf32>
    %cst_180 = arith.constant 1.000000e+00 : f32
    %703 = vector.broadcast %cst_180 : f32 to vector<2x64xf32>
    %704 = arith.addf %703, %702 : vector<2x64xf32>
    %705 = arith.divf %703, %704 : vector<2x64xf32>
    %706 = vector.extract_strided_slice %693 {offsets = [0, 128], sizes = [2, 64], strides = [1, 1]} : vector<2x256xf32> to vector<2x64xf32>
    %707 = math.tanh %706 : vector<2x64xf32>
    %708 = vector.extract_strided_slice %693 {offsets = [0, 192], sizes = [2, 64], strides = [1, 1]} : vector<2x256xf32> to vector<2x64xf32>
    %709 = arith.negf %708 : vector<2x64xf32>
    %710 = math.exp %709 : vector<2x64xf32>
    %cst_181 = arith.constant 1.000000e+00 : f32
    %711 = vector.broadcast %cst_181 : f32 to vector<2x64xf32>
    %712 = arith.addf %711, %710 : vector<2x64xf32>
    %713 = arith.divf %711, %712 : vector<2x64xf32>
    %714 = arith.mulf %705, %652 : vector<2x64xf32>
    %715 = arith.mulf %699, %707 : vector<2x64xf32>
    %716 = arith.addf %714, %715 : vector<2x64xf32>
    %717 = math.tanh %716 : vector<2x64xf32>
    %718 = arith.mulf %713, %717 : vector<2x64xf32>
    %c2_182 = arith.constant 2 : index
    %c0_183 = arith.constant 0 : index
    %c0_184 = arith.constant 0 : index
    %719 = vector.load %arg18[%c2_182, %c0_183, %c0_184] : memref<8x2x64xf32, #tpu.memory_space<vmem>>, vector<1x2x64xf32>
    %720 = vector.shape_cast %719 : vector<1x2x64xf32> to vector<2x64xf32>
    %721 = vector.shape_cast %718 : vector<2x64xf32> to vector<1x2x64xf32>
    tpu.vector_store %arg18[%c2_182, %c0_183, %c0_184], %721 {strides = array<i32>} : memref<8x2x64xf32, #tpu.memory_space<vmem>>, vector<1x2x64xf32>,
    %722 = vector.extract_strided_slice %555 {offsets = [5, 0, 0], sizes = [1, 2, 256], strides = [1, 1, 1]} : vector<8x2x256xf32> to vector<1x2x256xf32>
    %723 = vector.shape_cast %722 : vector<1x2x256xf32> to vector<2x256xf32>
    %cst_185 = arith.constant dense<0.000000e+00> : vector<2x256xf32>
    %724 = tpu.matmul %686, %557, %cst_185 {dimension_numbers = #tpu.dot_dimension_numbers<[1], [0], [0], [1], [0, 0, 1, 1], [], []>} : vector<2x64xf32>, vector<64x256xf32>, vector<2x256xf32> -> vector<2x256xf32>
    %725 = arith.addf %723, %724 : vector<2x256xf32>
    %726 = vector.extract_strided_slice %725 {offsets = [0, 0], sizes = [2, 64], strides = [1, 1]} : vector<2x256xf32> to vector<2x64xf32>
    %727 = arith.negf %726 : vector<2x64xf32>
    %728 = math.exp %727 : vector<2x64xf32>
    %cst_186 = arith.constant 1.000000e+00 : f32
    %729 = vector.broadcast %cst_186 : f32 to vector<2x64xf32>
    %730 = arith.addf %729, %728 : vector<2x64xf32>
    %731 = arith.divf %729, %730 : vector<2x64xf32>
    %732 = vector.extract_strided_slice %725 {offsets = [0, 64], sizes = [2, 64], strides = [1, 1]} : vector<2x256xf32> to vector<2x64xf32>
    %733 = arith.negf %732 : vector<2x64xf32>
    %734 = math.exp %733 : vector<2x64xf32>
    %cst_187 = arith.constant 1.000000e+00 : f32
    %735 = vector.broadcast %cst_187 : f32 to vector<2x64xf32>
    %736 = arith.addf %735, %734 : vector<2x64xf32>
    %737 = arith.divf %735, %736 : vector<2x64xf32>
    %738 = vector.extract_strided_slice %725 {offsets = [0, 128], sizes = [2, 64], strides = [1, 1]} : vector<2x256xf32> to vector<2x64xf32>
    %739 = math.tanh %738 : vector<2x64xf32>
    %740 = vector.extract_strided_slice %725 {offsets = [0, 192], sizes = [2, 64], strides = [1, 1]} : vector<2x256xf32> to vector<2x64xf32>
    %741 = arith.negf %740 : vector<2x64xf32>
    %742 = math.exp %741 : vector<2x64xf32>
    %cst_188 = arith.constant 1.000000e+00 : f32
    %743 = vector.broadcast %cst_188 : f32 to vector<2x64xf32>
    %744 = arith.addf %743, %742 : vector<2x64xf32>
    %745 = arith.divf %743, %744 : vector<2x64xf32>
    %746 = arith.mulf %737, %684 : vector<2x64xf32>
    %747 = arith.mulf %731, %739 : vector<2x64xf32>
    %748 = arith.addf %746, %747 : vector<2x64xf32>
    %749 = math.tanh %748 : vector<2x64xf32>
    %750 = arith.mulf %745, %749 : vector<2x64xf32>
    %c5_189 = arith.constant 5 : index
    %c0_190 = arith.constant 0 : index
    %c0_191 = arith.constant 0 : index
    %751 = vector.load %arg19[%c5_189, %c0_190, %c0_191] : memref<8x2x64xf32, #tpu.memory_space<vmem>>, vector<1x2x64xf32>
    %752 = vector.shape_cast %751 : vector<1x2x64xf32> to vector<2x64xf32>
    %753 = vector.shape_cast %750 : vector<2x64xf32> to vector<1x2x64xf32>
    tpu.vector_store %arg19[%c5_189, %c0_190, %c0_191], %753 {strides = array<i32>} : memref<8x2x64xf32, #tpu.memory_space<vmem>>, vector<1x2x64xf32>,
    %754 = vector.extract_strided_slice %546 {offsets = [3, 0, 0], sizes = [1, 2, 256], strides = [1, 1, 1]} : vector<8x2x256xf32> to vector<1x2x256xf32>
    %755 = vector.shape_cast %754 : vector<1x2x256xf32> to vector<2x256xf32>
    %cst_192 = arith.constant dense<0.000000e+00> : vector<2x256xf32>
    %756 = tpu.matmul %718, %556, %cst_192 {dimension_numbers = #tpu.dot_dimension_numbers<[1], [0], [0], [1], [0, 0, 1, 1], [], []>} : vector<2x64xf32>, vector<64x256xf32>, vector<2x256xf32> -> vector<2x256xf32>
    %757 = arith.addf %755, %756 : vector<2x256xf32>
    %758 = vector.extract_strided_slice %757 {offsets = [0, 0], sizes = [2, 64], strides = [1, 1]} : vector<2x256xf32> to vector<2x64xf32>
    %759 = arith.negf %758 : vector<2x64xf32>
    %760 = math.exp %759 : vector<2x64xf32>
    %cst_193 = arith.constant 1.000000e+00 : f32
    %761 = vector.broadcast %cst_193 : f32 to vector<2x64xf32>
    %762 = arith.addf %761, %760 : vector<2x64xf32>
    %763 = arith.divf %761, %762 : vector<2x64xf32>
    %764 = vector.extract_strided_slice %757 {offsets = [0, 64], sizes = [2, 64], strides = [1, 1]} : vector<2x256xf32> to vector<2x64xf32>
    %765 = arith.negf %764 : vector<2x64xf32>
    %766 = math.exp %765 : vector<2x64xf32>
    %cst_194 = arith.constant 1.000000e+00 : f32
    %767 = vector.broadcast %cst_194 : f32 to vector<2x64xf32>
    %768 = arith.addf %767, %766 : vector<2x64xf32>
    %769 = arith.divf %767, %768 : vector<2x64xf32>
    %770 = vector.extract_strided_slice %757 {offsets = [0, 128], sizes = [2, 64], strides = [1, 1]} : vector<2x256xf32> to vector<2x64xf32>
    %771 = math.tanh %770 : vector<2x64xf32>
    %772 = vector.extract_strided_slice %757 {offsets = [0, 192], sizes = [2, 64], strides = [1, 1]} : vector<2x256xf32> to vector<2x64xf32>
    %773 = arith.negf %772 : vector<2x64xf32>
    %774 = math.exp %773 : vector<2x64xf32>
    %cst_195 = arith.constant 1.000000e+00 : f32
    %775 = vector.broadcast %cst_195 : f32 to vector<2x64xf32>
    %776 = arith.addf %775, %774 : vector<2x64xf32>
    %777 = arith.divf %775, %776 : vector<2x64xf32>
    %778 = arith.mulf %769, %716 : vector<2x64xf32>
    %779 = arith.mulf %763, %771 : vector<2x64xf32>
    %780 = arith.addf %778, %779 : vector<2x64xf32>
    %781 = math.tanh %780 : vector<2x64xf32>
    %782 = arith.mulf %777, %781 : vector<2x64xf32>
    %c3_196 = arith.constant 3 : index
    %c0_197 = arith.constant 0 : index
    %c0_198 = arith.constant 0 : index
    %783 = vector.load %arg18[%c3_196, %c0_197, %c0_198] : memref<8x2x64xf32, #tpu.memory_space<vmem>>, vector<1x2x64xf32>
    %784 = vector.shape_cast %783 : vector<1x2x64xf32> to vector<2x64xf32>
    %785 = vector.shape_cast %782 : vector<2x64xf32> to vector<1x2x64xf32>
    tpu.vector_store %arg18[%c3_196, %c0_197, %c0_198], %785 {strides = array<i32>} : memref<8x2x64xf32, #tpu.memory_space<vmem>>, vector<1x2x64xf32>,
    %786 = vector.extract_strided_slice %555 {offsets = [4, 0, 0], sizes = [1, 2, 256], strides = [1, 1, 1]} : vector<8x2x256xf32> to vector<1x2x256xf32>
    %787 = vector.shape_cast %786 : vector<1x2x256xf32> to vector<2x256xf32>
    %cst_199 = arith.constant dense<0.000000e+00> : vector<2x256xf32>
    %788 = tpu.matmul %750, %557, %cst_199 {dimension_numbers = #tpu.dot_dimension_numbers<[1], [0], [0], [1], [0, 0, 1, 1], [], []>} : vector<2x64xf32>, vector<64x256xf32>, vector<2x256xf32> -> vector<2x256xf32>
    %789 = arith.addf %787, %788 : vector<2x256xf32>
    %790 = vector.extract_strided_slice %789 {offsets = [0, 0], sizes = [2, 64], strides = [1, 1]} : vector<2x256xf32> to vector<2x64xf32>
    %791 = arith.negf %790 : vector<2x64xf32>
    %792 = math.exp %791 : vector<2x64xf32>
    %cst_200 = arith.constant 1.000000e+00 : f32
    %793 = vector.broadcast %cst_200 : f32 to vector<2x64xf32>
    %794 = arith.addf %793, %792 : vector<2x64xf32>
    %795 = arith.divf %793, %794 : vector<2x64xf32>
    %796 = vector.extract_strided_slice %789 {offsets = [0, 64], sizes = [2, 64], strides = [1, 1]} : vector<2x256xf32> to vector<2x64xf32>
    %797 = arith.negf %796 : vector<2x64xf32>
    %798 = math.exp %797 : vector<2x64xf32>
    %cst_201 = arith.constant 1.000000e+00 : f32
    %799 = vector.broadcast %cst_201 : f32 to vector<2x64xf32>
    %800 = arith.addf %799, %798 : vector<2x64xf32>
    %801 = arith.divf %799, %800 : vector<2x64xf32>
    %802 = vector.extract_strided_slice %789 {offsets = [0, 128], sizes = [2, 64], strides = [1, 1]} : vector<2x256xf32> to vector<2x64xf32>
    %803 = math.tanh %802 : vector<2x64xf32>
    %804 = vector.extract_strided_slice %789 {offsets = [0, 192], sizes = [2, 64], strides = [1, 1]} : vector<2x256xf32> to vector<2x64xf32>
    %805 = arith.negf %804 : vector<2x64xf32>
    %806 = math.exp %805 : vector<2x64xf32>
    %cst_202 = arith.constant 1.000000e+00 : f32
    %807 = vector.broadcast %cst_202 : f32 to vector<2x64xf32>
    %808 = arith.addf %807, %806 : vector<2x64xf32>
    %809 = arith.divf %807, %808 : vector<2x64xf32>
    %810 = arith.mulf %801, %748 : vector<2x64xf32>
    %811 = arith.mulf %795, %803 : vector<2x64xf32>
    %812 = arith.addf %810, %811 : vector<2x64xf32>
    %813 = math.tanh %812 : vector<2x64xf32>
    %814 = arith.mulf %809, %813 : vector<2x64xf32>
    %c4_203 = arith.constant 4 : index
    %c0_204 = arith.constant 0 : index
    %c0_205 = arith.constant 0 : index
    %815 = vector.load %arg19[%c4_203, %c0_204, %c0_205] : memref<8x2x64xf32, #tpu.memory_space<vmem>>, vector<1x2x64xf32>
    %816 = vector.shape_cast %815 : vector<1x2x64xf32> to vector<2x64xf32>
    %817 = vector.shape_cast %814 : vector<2x64xf32> to vector<1x2x64xf32>
    tpu.vector_store %arg19[%c4_203, %c0_204, %c0_205], %817 {strides = array<i32>} : memref<8x2x64xf32, #tpu.memory_space<vmem>>, vector<1x2x64xf32>,
    %818 = vector.extract_strided_slice %546 {offsets = [4, 0, 0], sizes = [1, 2, 256], strides = [1, 1, 1]} : vector<8x2x256xf32> to vector<1x2x256xf32>
    %819 = vector.shape_cast %818 : vector<1x2x256xf32> to vector<2x256xf32>
    %cst_206 = arith.constant dense<0.000000e+00> : vector<2x256xf32>
    %820 = tpu.matmul %782, %556, %cst_206 {dimension_numbers = #tpu.dot_dimension_numbers<[1], [0], [0], [1], [0, 0, 1, 1], [], []>} : vector<2x64xf32>, vector<64x256xf32>, vector<2x256xf32> -> vector<2x256xf32>
    %821 = arith.addf %819, %820 : vector<2x256xf32>
    %822 = vector.extract_strided_slice %821 {offsets = [0, 0], sizes = [2, 64], strides = [1, 1]} : vector<2x256xf32> to vector<2x64xf32>
    %823 = arith.negf %822 : vector<2x64xf32>
    %824 = math.exp %823 : vector<2x64xf32>
    %cst_207 = arith.constant 1.000000e+00 : f32
    %825 = vector.broadcast %cst_207 : f32 to vector<2x64xf32>
    %826 = arith.addf %825, %824 : vector<2x64xf32>
    %827 = arith.divf %825, %826 : vector<2x64xf32>
    %828 = vector.extract_strided_slice %821 {offsets = [0, 64], sizes = [2, 64], strides = [1, 1]} : vector<2x256xf32> to vector<2x64xf32>
    %829 = arith.negf %828 : vector<2x64xf32>
    %830 = math.exp %829 : vector<2x64xf32>
    %cst_208 = arith.constant 1.000000e+00 : f32
    %831 = vector.broadcast %cst_208 : f32 to vector<2x64xf32>
    %832 = arith.addf %831, %830 : vector<2x64xf32>
    %833 = arith.divf %831, %832 : vector<2x64xf32>
    %834 = vector.extract_strided_slice %821 {offsets = [0, 128], sizes = [2, 64], strides = [1, 1]} : vector<2x256xf32> to vector<2x64xf32>
    %835 = math.tanh %834 : vector<2x64xf32>
    %836 = vector.extract_strided_slice %821 {offsets = [0, 192], sizes = [2, 64], strides = [1, 1]} : vector<2x256xf32> to vector<2x64xf32>
    %837 = arith.negf %836 : vector<2x64xf32>
    %838 = math.exp %837 : vector<2x64xf32>
    %cst_209 = arith.constant 1.000000e+00 : f32
    %839 = vector.broadcast %cst_209 : f32 to vector<2x64xf32>
    %840 = arith.addf %839, %838 : vector<2x64xf32>
    %841 = arith.divf %839, %840 : vector<2x64xf32>
    %842 = arith.mulf %833, %780 : vector<2x64xf32>
    %843 = arith.mulf %827, %835 : vector<2x64xf32>
    %844 = arith.addf %842, %843 : vector<2x64xf32>
    %845 = math.tanh %844 : vector<2x64xf32>
    %846 = arith.mulf %841, %845 : vector<2x64xf32>
    %c4_210 = arith.constant 4 : index
    %c0_211 = arith.constant 0 : index
    %c0_212 = arith.constant 0 : index
    %847 = vector.load %arg18[%c4_210, %c0_211, %c0_212] : memref<8x2x64xf32, #tpu.memory_space<vmem>>, vector<1x2x64xf32>
    %848 = vector.shape_cast %847 : vector<1x2x64xf32> to vector<2x64xf32>
    %849 = vector.shape_cast %846 : vector<2x64xf32> to vector<1x2x64xf32>
    tpu.vector_store %arg18[%c4_210, %c0_211, %c0_212], %849 {strides = array<i32>} : memref<8x2x64xf32, #tpu.memory_space<vmem>>, vector<1x2x64xf32>,
    %850 = vector.extract_strided_slice %555 {offsets = [3, 0, 0], sizes = [1, 2, 256], strides = [1, 1, 1]} : vector<8x2x256xf32> to vector<1x2x256xf32>
    %851 = vector.shape_cast %850 : vector<1x2x256xf32> to vector<2x256xf32>
    %cst_213 = arith.constant dense<0.000000e+00> : vector<2x256xf32>
    %852 = tpu.matmul %814, %557, %cst_213 {dimension_numbers = #tpu.dot_dimension_numbers<[1], [0], [0], [1], [0, 0, 1, 1], [], []>} : vector<2x64xf32>, vector<64x256xf32>, vector<2x256xf32> -> vector<2x256xf32>
    %853 = arith.addf %851, %852 : vector<2x256xf32>
    %854 = vector.extract_strided_slice %853 {offsets = [0, 0], sizes = [2, 64], strides = [1, 1]} : vector<2x256xf32> to vector<2x64xf32>
    %855 = arith.negf %854 : vector<2x64xf32>
    %856 = math.exp %855 : vector<2x64xf32>
    %cst_214 = arith.constant 1.000000e+00 : f32
    %857 = vector.broadcast %cst_214 : f32 to vector<2x64xf32>
    %858 = arith.addf %857, %856 : vector<2x64xf32>
    %859 = arith.divf %857, %858 : vector<2x64xf32>
    %860 = vector.extract_strided_slice %853 {offsets = [0, 64], sizes = [2, 64], strides = [1, 1]} : vector<2x256xf32> to vector<2x64xf32>
    %861 = arith.negf %860 : vector<2x64xf32>
    %862 = math.exp %861 : vector<2x64xf32>
    %cst_215 = arith.constant 1.000000e+00 : f32
    %863 = vector.broadcast %cst_215 : f32 to vector<2x64xf32>
    %864 = arith.addf %863, %862 : vector<2x64xf32>
    %865 = arith.divf %863, %864 : vector<2x64xf32>
    %866 = vector.extract_strided_slice %853 {offsets = [0, 128], sizes = [2, 64], strides = [1, 1]} : vector<2x256xf32> to vector<2x64xf32>
    %867 = math.tanh %866 : vector<2x64xf32>
    %868 = vector.extract_strided_slice %853 {offsets = [0, 192], sizes = [2, 64], strides = [1, 1]} : vector<2x256xf32> to vector<2x64xf32>
    %869 = arith.negf %868 : vector<2x64xf32>
    %870 = math.exp %869 : vector<2x64xf32>
    %cst_216 = arith.constant 1.000000e+00 : f32
    %871 = vector.broadcast %cst_216 : f32 to vector<2x64xf32>
    %872 = arith.addf %871, %870 : vector<2x64xf32>
    %873 = arith.divf %871, %872 : vector<2x64xf32>
    %874 = arith.mulf %865, %812 : vector<2x64xf32>
    %875 = arith.mulf %859, %867 : vector<2x64xf32>
    %876 = arith.addf %874, %875 : vector<2x64xf32>
    %877 = math.tanh %876 : vector<2x64xf32>
    %878 = arith.mulf %873, %877 : vector<2x64xf32>
    %c3_217 = arith.constant 3 : index
    %c0_218 = arith.constant 0 : index
    %c0_219 = arith.constant 0 : index
    %879 = vector.load %arg19[%c3_217, %c0_218, %c0_219] : memref<8x2x64xf32, #tpu.memory_space<vmem>>, vector<1x2x64xf32>
    %880 = vector.shape_cast %879 : vector<1x2x64xf32> to vector<2x64xf32>
    %881 = vector.shape_cast %878 : vector<2x64xf32> to vector<1x2x64xf32>
    tpu.vector_store %arg19[%c3_217, %c0_218, %c0_219], %881 {strides = array<i32>} : memref<8x2x64xf32, #tpu.memory_space<vmem>>, vector<1x2x64xf32>,
    %882 = vector.extract_strided_slice %546 {offsets = [5, 0, 0], sizes = [1, 2, 256], strides = [1, 1, 1]} : vector<8x2x256xf32> to vector<1x2x256xf32>
    %883 = vector.shape_cast %882 : vector<1x2x256xf32> to vector<2x256xf32>
    %cst_220 = arith.constant dense<0.000000e+00> : vector<2x256xf32>
    %884 = tpu.matmul %846, %556, %cst_220 {dimension_numbers = #tpu.dot_dimension_numbers<[1], [0], [0], [1], [0, 0, 1, 1], [], []>} : vector<2x64xf32>, vector<64x256xf32>, vector<2x256xf32> -> vector<2x256xf32>
    %885 = arith.addf %883, %884 : vector<2x256xf32>
    %886 = vector.extract_strided_slice %885 {offsets = [0, 0], sizes = [2, 64], strides = [1, 1]} : vector<2x256xf32> to vector<2x64xf32>
    %887 = arith.negf %886 : vector<2x64xf32>
    %888 = math.exp %887 : vector<2x64xf32>
    %cst_221 = arith.constant 1.000000e+00 : f32
    %889 = vector.broadcast %cst_221 : f32 to vector<2x64xf32>
    %890 = arith.addf %889, %888 : vector<2x64xf32>
    %891 = arith.divf %889, %890 : vector<2x64xf32>
    %892 = vector.extract_strided_slice %885 {offsets = [0, 64], sizes = [2, 64], strides = [1, 1]} : vector<2x256xf32> to vector<2x64xf32>
    %893 = arith.negf %892 : vector<2x64xf32>
    %894 = math.exp %893 : vector<2x64xf32>
    %cst_222 = arith.constant 1.000000e+00 : f32
    %895 = vector.broadcast %cst_222 : f32 to vector<2x64xf32>
    %896 = arith.addf %895, %894 : vector<2x64xf32>
    %897 = arith.divf %895, %896 : vector<2x64xf32>
    %898 = vector.extract_strided_slice %885 {offsets = [0, 128], sizes = [2, 64], strides = [1, 1]} : vector<2x256xf32> to vector<2x64xf32>
    %899 = math.tanh %898 : vector<2x64xf32>
    %900 = vector.extract_strided_slice %885 {offsets = [0, 192], sizes = [2, 64], strides = [1, 1]} : vector<2x256xf32> to vector<2x64xf32>
    %901 = arith.negf %900 : vector<2x64xf32>
    %902 = math.exp %901 : vector<2x64xf32>
    %cst_223 = arith.constant 1.000000e+00 : f32
    %903 = vector.broadcast %cst_223 : f32 to vector<2x64xf32>
    %904 = arith.addf %903, %902 : vector<2x64xf32>
    %905 = arith.divf %903, %904 : vector<2x64xf32>
    %906 = arith.mulf %897, %844 : vector<2x64xf32>
    %907 = arith.mulf %891, %899 : vector<2x64xf32>
    %908 = arith.addf %906, %907 : vector<2x64xf32>
    %909 = math.tanh %908 : vector<2x64xf32>
    %910 = arith.mulf %905, %909 : vector<2x64xf32>
    %c5_224 = arith.constant 5 : index
    %c0_225 = arith.constant 0 : index
    %c0_226 = arith.constant 0 : index
    %911 = vector.load %arg18[%c5_224, %c0_225, %c0_226] : memref<8x2x64xf32, #tpu.memory_space<vmem>>, vector<1x2x64xf32>
    %912 = vector.shape_cast %911 : vector<1x2x64xf32> to vector<2x64xf32>
    %913 = vector.shape_cast %910 : vector<2x64xf32> to vector<1x2x64xf32>
    tpu.vector_store %arg18[%c5_224, %c0_225, %c0_226], %913 {strides = array<i32>} : memref<8x2x64xf32, #tpu.memory_space<vmem>>, vector<1x2x64xf32>,
    %914 = vector.extract_strided_slice %555 {offsets = [2, 0, 0], sizes = [1, 2, 256], strides = [1, 1, 1]} : vector<8x2x256xf32> to vector<1x2x256xf32>
    %915 = vector.shape_cast %914 : vector<1x2x256xf32> to vector<2x256xf32>
    %cst_227 = arith.constant dense<0.000000e+00> : vector<2x256xf32>
    %916 = tpu.matmul %878, %557, %cst_227 {dimension_numbers = #tpu.dot_dimension_numbers<[1], [0], [0], [1], [0, 0, 1, 1], [], []>} : vector<2x64xf32>, vector<64x256xf32>, vector<2x256xf32> -> vector<2x256xf32>
    %917 = arith.addf %915, %916 : vector<2x256xf32>
    %918 = vector.extract_strided_slice %917 {offsets = [0, 0], sizes = [2, 64], strides = [1, 1]} : vector<2x256xf32> to vector<2x64xf32>
    %919 = arith.negf %918 : vector<2x64xf32>
    %920 = math.exp %919 : vector<2x64xf32>
    %cst_228 = arith.constant 1.000000e+00 : f32
    %921 = vector.broadcast %cst_228 : f32 to vector<2x64xf32>
    %922 = arith.addf %921, %920 : vector<2x64xf32>
    %923 = arith.divf %921, %922 : vector<2x64xf32>
    %924 = vector.extract_strided_slice %917 {offsets = [0, 64], sizes = [2, 64], strides = [1, 1]} : vector<2x256xf32> to vector<2x64xf32>
    %925 = arith.negf %924 : vector<2x64xf32>
    %926 = math.exp %925 : vector<2x64xf32>
    %cst_229 = arith.constant 1.000000e+00 : f32
    %927 = vector.broadcast %cst_229 : f32 to vector<2x64xf32>
    %928 = arith.addf %927, %926 : vector<2x64xf32>
    %929 = arith.divf %927, %928 : vector<2x64xf32>
    %930 = vector.extract_strided_slice %917 {offsets = [0, 128], sizes = [2, 64], strides = [1, 1]} : vector<2x256xf32> to vector<2x64xf32>
    %931 = math.tanh %930 : vector<2x64xf32>
    %932 = vector.extract_strided_slice %917 {offsets = [0, 192], sizes = [2, 64], strides = [1, 1]} : vector<2x256xf32> to vector<2x64xf32>
    %933 = arith.negf %932 : vector<2x64xf32>
    %934 = math.exp %933 : vector<2x64xf32>
    %cst_230 = arith.constant 1.000000e+00 : f32
    %935 = vector.broadcast %cst_230 : f32 to vector<2x64xf32>
    %936 = arith.addf %935, %934 : vector<2x64xf32>
    %937 = arith.divf %935, %936 : vector<2x64xf32>
    %938 = arith.mulf %929, %876 : vector<2x64xf32>
    %939 = arith.mulf %923, %931 : vector<2x64xf32>
    %940 = arith.addf %938, %939 : vector<2x64xf32>
    %941 = math.tanh %940 : vector<2x64xf32>
    %942 = arith.mulf %937, %941 : vector<2x64xf32>
    %c2_231 = arith.constant 2 : index
    %c0_232 = arith.constant 0 : index
    %c0_233 = arith.constant 0 : index
    %943 = vector.load %arg19[%c2_231, %c0_232, %c0_233] : memref<8x2x64xf32, #tpu.memory_space<vmem>>, vector<1x2x64xf32>
    %944 = vector.shape_cast %943 : vector<1x2x64xf32> to vector<2x64xf32>
    %945 = vector.shape_cast %942 : vector<2x64xf32> to vector<1x2x64xf32>
    tpu.vector_store %arg19[%c2_231, %c0_232, %c0_233], %945 {strides = array<i32>} : memref<8x2x64xf32, #tpu.memory_space<vmem>>, vector<1x2x64xf32>,
    %946 = vector.extract_strided_slice %546 {offsets = [6, 0, 0], sizes = [1, 2, 256], strides = [1, 1, 1]} : vector<8x2x256xf32> to vector<1x2x256xf32>
    %947 = vector.shape_cast %946 : vector<1x2x256xf32> to vector<2x256xf32>
    %cst_234 = arith.constant dense<0.000000e+00> : vector<2x256xf32>
    %948 = tpu.matmul %910, %556, %cst_234 {dimension_numbers = #tpu.dot_dimension_numbers<[1], [0], [0], [1], [0, 0, 1, 1], [], []>} : vector<2x64xf32>, vector<64x256xf32>, vector<2x256xf32> -> vector<2x256xf32>
    %949 = arith.addf %947, %948 : vector<2x256xf32>
    %950 = vector.extract_strided_slice %949 {offsets = [0, 0], sizes = [2, 64], strides = [1, 1]} : vector<2x256xf32> to vector<2x64xf32>
    %951 = arith.negf %950 : vector<2x64xf32>
    %952 = math.exp %951 : vector<2x64xf32>
    %cst_235 = arith.constant 1.000000e+00 : f32
    %953 = vector.broadcast %cst_235 : f32 to vector<2x64xf32>
    %954 = arith.addf %953, %952 : vector<2x64xf32>
    %955 = arith.divf %953, %954 : vector<2x64xf32>
    %956 = vector.extract_strided_slice %949 {offsets = [0, 64], sizes = [2, 64], strides = [1, 1]} : vector<2x256xf32> to vector<2x64xf32>
    %957 = arith.negf %956 : vector<2x64xf32>
    %958 = math.exp %957 : vector<2x64xf32>
    %cst_236 = arith.constant 1.000000e+00 : f32
    %959 = vector.broadcast %cst_236 : f32 to vector<2x64xf32>
    %960 = arith.addf %959, %958 : vector<2x64xf32>
    %961 = arith.divf %959, %960 : vector<2x64xf32>
    %962 = vector.extract_strided_slice %949 {offsets = [0, 128], sizes = [2, 64], strides = [1, 1]} : vector<2x256xf32> to vector<2x64xf32>
    %963 = math.tanh %962 : vector<2x64xf32>
    %964 = vector.extract_strided_slice %949 {offsets = [0, 192], sizes = [2, 64], strides = [1, 1]} : vector<2x256xf32> to vector<2x64xf32>
    %965 = arith.negf %964 : vector<2x64xf32>
    %966 = math.exp %965 : vector<2x64xf32>
    %cst_237 = arith.constant 1.000000e+00 : f32
    %967 = vector.broadcast %cst_237 : f32 to vector<2x64xf32>
    %968 = arith.addf %967, %966 : vector<2x64xf32>
    %969 = arith.divf %967, %968 : vector<2x64xf32>
    %970 = arith.mulf %961, %908 : vector<2x64xf32>
    %971 = arith.mulf %955, %963 : vector<2x64xf32>
    %972 = arith.addf %970, %971 : vector<2x64xf32>
    %973 = math.tanh %972 : vector<2x64xf32>
    %974 = arith.mulf %969, %973 : vector<2x64xf32>
    %c6_238 = arith.constant 6 : index
    %c0_239 = arith.constant 0 : index
    %c0_240 = arith.constant 0 : index
    %975 = vector.load %arg18[%c6_238, %c0_239, %c0_240] : memref<8x2x64xf32, #tpu.memory_space<vmem>>, vector<1x2x64xf32>
    %976 = vector.shape_cast %975 : vector<1x2x64xf32> to vector<2x64xf32>
    %977 = vector.shape_cast %974 : vector<2x64xf32> to vector<1x2x64xf32>
    tpu.vector_store %arg18[%c6_238, %c0_239, %c0_240], %977 {strides = array<i32>} : memref<8x2x64xf32, #tpu.memory_space<vmem>>, vector<1x2x64xf32>,
    %978 = vector.extract_strided_slice %555 {offsets = [1, 0, 0], sizes = [1, 2, 256], strides = [1, 1, 1]} : vector<8x2x256xf32> to vector<1x2x256xf32>
    %979 = vector.shape_cast %978 : vector<1x2x256xf32> to vector<2x256xf32>
    %cst_241 = arith.constant dense<0.000000e+00> : vector<2x256xf32>
    %980 = tpu.matmul %942, %557, %cst_241 {dimension_numbers = #tpu.dot_dimension_numbers<[1], [0], [0], [1], [0, 0, 1, 1], [], []>} : vector<2x64xf32>, vector<64x256xf32>, vector<2x256xf32> -> vector<2x256xf32>
    %981 = arith.addf %979, %980 : vector<2x256xf32>
    %982 = vector.extract_strided_slice %981 {offsets = [0, 0], sizes = [2, 64], strides = [1, 1]} : vector<2x256xf32> to vector<2x64xf32>
    %983 = arith.negf %982 : vector<2x64xf32>
    %984 = math.exp %983 : vector<2x64xf32>
    %cst_242 = arith.constant 1.000000e+00 : f32
    %985 = vector.broadcast %cst_242 : f32 to vector<2x64xf32>
    %986 = arith.addf %985, %984 : vector<2x64xf32>
    %987 = arith.divf %985, %986 : vector<2x64xf32>
    %988 = vector.extract_strided_slice %981 {offsets = [0, 64], sizes = [2, 64], strides = [1, 1]} : vector<2x256xf32> to vector<2x64xf32>
    %989 = arith.negf %988 : vector<2x64xf32>
    %990 = math.exp %989 : vector<2x64xf32>
    %cst_243 = arith.constant 1.000000e+00 : f32
    %991 = vector.broadcast %cst_243 : f32 to vector<2x64xf32>
    %992 = arith.addf %991, %990 : vector<2x64xf32>
    %993 = arith.divf %991, %992 : vector<2x64xf32>
    %994 = vector.extract_strided_slice %981 {offsets = [0, 128], sizes = [2, 64], strides = [1, 1]} : vector<2x256xf32> to vector<2x64xf32>
    %995 = math.tanh %994 : vector<2x64xf32>
    %996 = vector.extract_strided_slice %981 {offsets = [0, 192], sizes = [2, 64], strides = [1, 1]} : vector<2x256xf32> to vector<2x64xf32>
    %997 = arith.negf %996 : vector<2x64xf32>
    %998 = math.exp %997 : vector<2x64xf32>
    %cst_244 = arith.constant 1.000000e+00 : f32
    %999 = vector.broadcast %cst_244 : f32 to vector<2x64xf32>
    %1000 = arith.addf %999, %998 : vector<2x64xf32>
    %1001 = arith.divf %999, %1000 : vector<2x64xf32>
    %1002 = arith.mulf %993, %940 : vector<2x64xf32>
    %1003 = arith.mulf %987, %995 : vector<2x64xf32>
    %1004 = arith.addf %1002, %1003 : vector<2x64xf32>
    %1005 = math.tanh %1004 : vector<2x64xf32>
    %1006 = arith.mulf %1001, %1005 : vector<2x64xf32>
    %c1_245 = arith.constant 1 : index
    %c0_246 = arith.constant 0 : index
    %c0_247 = arith.constant 0 : index
    %1007 = vector.load %arg19[%c1_245, %c0_246, %c0_247] : memref<8x2x64xf32, #tpu.memory_space<vmem>>, vector<1x2x64xf32>
    %1008 = vector.shape_cast %1007 : vector<1x2x64xf32> to vector<2x64xf32>
    %1009 = vector.shape_cast %1006 : vector<2x64xf32> to vector<1x2x64xf32>
    tpu.vector_store %arg19[%c1_245, %c0_246, %c0_247], %1009 {strides = array<i32>} : memref<8x2x64xf32, #tpu.memory_space<vmem>>, vector<1x2x64xf32>,
    %1010 = vector.extract_strided_slice %546 {offsets = [7, 0, 0], sizes = [1, 2, 256], strides = [1, 1, 1]} : vector<8x2x256xf32> to vector<1x2x256xf32>
    %1011 = vector.shape_cast %1010 : vector<1x2x256xf32> to vector<2x256xf32>
    %cst_248 = arith.constant dense<0.000000e+00> : vector<2x256xf32>
    %1012 = tpu.matmul %974, %556, %cst_248 {dimension_numbers = #tpu.dot_dimension_numbers<[1], [0], [0], [1], [0, 0, 1, 1], [], []>} : vector<2x64xf32>, vector<64x256xf32>, vector<2x256xf32> -> vector<2x256xf32>
    %1013 = arith.addf %1011, %1012 : vector<2x256xf32>
    %1014 = vector.extract_strided_slice %1013 {offsets = [0, 0], sizes = [2, 64], strides = [1, 1]} : vector<2x256xf32> to vector<2x64xf32>
    %1015 = arith.negf %1014 : vector<2x64xf32>
    %1016 = math.exp %1015 : vector<2x64xf32>
    %cst_249 = arith.constant 1.000000e+00 : f32
    %1017 = vector.broadcast %cst_249 : f32 to vector<2x64xf32>
    %1018 = arith.addf %1017, %1016 : vector<2x64xf32>
    %1019 = arith.divf %1017, %1018 : vector<2x64xf32>
    %1020 = vector.extract_strided_slice %1013 {offsets = [0, 64], sizes = [2, 64], strides = [1, 1]} : vector<2x256xf32> to vector<2x64xf32>
    %1021 = arith.negf %1020 : vector<2x64xf32>
    %1022 = math.exp %1021 : vector<2x64xf32>
    %cst_250 = arith.constant 1.000000e+00 : f32
    %1023 = vector.broadcast %cst_250 : f32 to vector<2x64xf32>
    %1024 = arith.addf %1023, %1022 : vector<2x64xf32>
    %1025 = arith.divf %1023, %1024 : vector<2x64xf32>
    %1026 = vector.extract_strided_slice %1013 {offsets = [0, 128], sizes = [2, 64], strides = [1, 1]} : vector<2x256xf32> to vector<2x64xf32>
    %1027 = math.tanh %1026 : vector<2x64xf32>
    %1028 = vector.extract_strided_slice %1013 {offsets = [0, 192], sizes = [2, 64], strides = [1, 1]} : vector<2x256xf32> to vector<2x64xf32>
    %1029 = arith.negf %1028 : vector<2x64xf32>
    %1030 = math.exp %1029 : vector<2x64xf32>
    %cst_251 = arith.constant 1.000000e+00 : f32
    %1031 = vector.broadcast %cst_251 : f32 to vector<2x64xf32>
    %1032 = arith.addf %1031, %1030 : vector<2x64xf32>
    %1033 = arith.divf %1031, %1032 : vector<2x64xf32>
    %1034 = arith.mulf %1025, %972 : vector<2x64xf32>
    %1035 = arith.mulf %1019, %1027 : vector<2x64xf32>
    %1036 = arith.addf %1034, %1035 : vector<2x64xf32>
    %1037 = math.tanh %1036 : vector<2x64xf32>
    %1038 = arith.mulf %1033, %1037 : vector<2x64xf32>
    %c7_252 = arith.constant 7 : index
    %c0_253 = arith.constant 0 : index
    %c0_254 = arith.constant 0 : index
    %1039 = vector.load %arg18[%c7_252, %c0_253, %c0_254] : memref<8x2x64xf32, #tpu.memory_space<vmem>>, vector<1x2x64xf32>
    %1040 = vector.shape_cast %1039 : vector<1x2x64xf32> to vector<2x64xf32>
    %1041 = vector.shape_cast %1038 : vector<2x64xf32> to vector<1x2x64xf32>
    tpu.vector_store %arg18[%c7_252, %c0_253, %c0_254], %1041 {strides = array<i32>} : memref<8x2x64xf32, #tpu.memory_space<vmem>>, vector<1x2x64xf32>,
    %1042 = vector.extract_strided_slice %555 {offsets = [0, 0, 0], sizes = [1, 2, 256], strides = [1, 1, 1]} : vector<8x2x256xf32> to vector<1x2x256xf32>
    %1043 = vector.shape_cast %1042 : vector<1x2x256xf32> to vector<2x256xf32>
    %cst_255 = arith.constant dense<0.000000e+00> : vector<2x256xf32>
    %1044 = tpu.matmul %1006, %557, %cst_255 {dimension_numbers = #tpu.dot_dimension_numbers<[1], [0], [0], [1], [0, 0, 1, 1], [], []>} : vector<2x64xf32>, vector<64x256xf32>, vector<2x256xf32> -> vector<2x256xf32>
    %1045 = arith.addf %1043, %1044 : vector<2x256xf32>
    %1046 = vector.extract_strided_slice %1045 {offsets = [0, 0], sizes = [2, 64], strides = [1, 1]} : vector<2x256xf32> to vector<2x64xf32>
    %1047 = arith.negf %1046 : vector<2x64xf32>
    %1048 = math.exp %1047 : vector<2x64xf32>
    %cst_256 = arith.constant 1.000000e+00 : f32
    %1049 = vector.broadcast %cst_256 : f32 to vector<2x64xf32>
    %1050 = arith.addf %1049, %1048 : vector<2x64xf32>
    %1051 = arith.divf %1049, %1050 : vector<2x64xf32>
    %1052 = vector.extract_strided_slice %1045 {offsets = [0, 64], sizes = [2, 64], strides = [1, 1]} : vector<2x256xf32> to vector<2x64xf32>
    %1053 = arith.negf %1052 : vector<2x64xf32>
    %1054 = math.exp %1053 : vector<2x64xf32>
    %cst_257 = arith.constant 1.000000e+00 : f32
    %1055 = vector.broadcast %cst_257 : f32 to vector<2x64xf32>
    %1056 = arith.addf %1055, %1054 : vector<2x64xf32>
    %1057 = arith.divf %1055, %1056 : vector<2x64xf32>
    %1058 = vector.extract_strided_slice %1045 {offsets = [0, 128], sizes = [2, 64], strides = [1, 1]} : vector<2x256xf32> to vector<2x64xf32>
    %1059 = math.tanh %1058 : vector<2x64xf32>
    %1060 = vector.extract_strided_slice %1045 {offsets = [0, 192], sizes = [2, 64], strides = [1, 1]} : vector<2x256xf32> to vector<2x64xf32>
    %1061 = arith.negf %1060 : vector<2x64xf32>
    %1062 = math.exp %1061 : vector<2x64xf32>
    %cst_258 = arith.constant 1.000000e+00 : f32
    %1063 = vector.broadcast %cst_258 : f32 to vector<2x64xf32>
    %1064 = arith.addf %1063, %1062 : vector<2x64xf32>
    %1065 = arith.divf %1063, %1064 : vector<2x64xf32>
    %1066 = arith.mulf %1057, %1004 : vector<2x64xf32>
    %1067 = arith.mulf %1051, %1059 : vector<2x64xf32>
    %1068 = arith.addf %1066, %1067 : vector<2x64xf32>
    %1069 = math.tanh %1068 : vector<2x64xf32>
    %1070 = arith.mulf %1065, %1069 : vector<2x64xf32>
    %c0_259 = arith.constant 0 : index
    %c0_260 = arith.constant 0 : index
    %c0_261 = arith.constant 0 : index
    %1071 = vector.load %arg19[%c0_259, %c0_260, %c0_261] : memref<8x2x64xf32, #tpu.memory_space<vmem>>, vector<1x2x64xf32>
    %1072 = vector.shape_cast %1071 : vector<1x2x64xf32> to vector<2x64xf32>
    %1073 = vector.shape_cast %1070 : vector<2x64xf32> to vector<1x2x64xf32>
    tpu.vector_store %arg19[%c0_259, %c0_260, %c0_261], %1073 {strides = array<i32>} : memref<8x2x64xf32, #tpu.memory_space<vmem>>, vector<1x2x64xf32>,
    %c0_262 = arith.constant 0 : index
    %c0_263 = arith.constant 0 : index
    %c0_264 = arith.constant 0 : index
    %1074 = vector.load %arg18[%c0_262, %c0_263, %c0_264] : memref<8x2x64xf32, #tpu.memory_space<vmem>>, vector<8x2x64xf32>
    %1075 = vector.shape_cast %1074 : vector<8x2x64xf32> to vector<16x64xf32>
    %c0_265 = arith.constant 0 : index
    %c0_266 = arith.constant 0 : index
    %c0_267 = arith.constant 0 : index
    %1076 = vector.load %arg19[%c0_265, %c0_266, %c0_267] : memref<8x2x64xf32, #tpu.memory_space<vmem>>, vector<8x2x64xf32>
    %1077 = vector.shape_cast %1076 : vector<8x2x64xf32> to vector<16x64xf32>
    %c0_268 = arith.constant 0 : index
    %c0_269 = arith.constant 0 : index
    %1078 = vector.load %arg13[%c0_268, %c0_269] : memref<128x24xf32, #tpu.memory_space<vmem>>, vector<128x24xf32>
    %1079 = vector.extract_strided_slice %1078 {offsets = [0, 0], sizes = [64, 24], strides = [1, 1]} : vector<128x24xf32> to vector<64x24xf32>
    %cst_270 = arith.constant dense<0.000000e+00> : vector<16x24xf32>
    %1080 = tpu.matmul %1075, %1079, %cst_270 {dimension_numbers = #tpu.dot_dimension_numbers<[1], [0], [0], [1], [0, 0, 1, 1], [], []>} : vector<16x64xf32>, vector<64x24xf32>, vector<16x24xf32> -> vector<16x24xf32>
    %1081 = vector.extract_strided_slice %1078 {offsets = [64, 0], sizes = [64, 24], strides = [1, 1]} : vector<128x24xf32> to vector<64x24xf32>
    %cst_271 = arith.constant dense<0.000000e+00> : vector<16x24xf32>
    %1082 = tpu.matmul %1077, %1081, %cst_271 {dimension_numbers = #tpu.dot_dimension_numbers<[1], [0], [0], [1], [0, 0, 1, 1], [], []>} : vector<16x64xf32>, vector<64x24xf32>, vector<16x24xf32> -> vector<16x24xf32>
    %1083 = arith.addf %1080, %1082 : vector<16x24xf32>
    %c0_272 = arith.constant 0 : index
    %c0_273 = arith.constant 0 : index
    %1084 = vector.load %arg14[%c0_272, %c0_273] : memref<1x24xf32, #tpu.memory_space<vmem>>, vector<1x24xf32>
    %1085 = vector.broadcast %1084 : vector<1x24xf32> to vector<16x24xf32>
    %1086 = arith.addf %1083, %1085 : vector<16x24xf32>
    %1087 = vector.shape_cast %1086 : vector<16x24xf32> to vector<8x2x24xf32>
    %c0_274 = arith.constant 0 : index
    %c0_275 = arith.constant 0 : index
    %c0_276 = arith.constant 0 : index
    %1088 = vector.load %arg15[%c0_274, %c0_275, %c0_276] : memref<8x2x24xf32, #tpu.memory_space<vmem>>, vector<8x2x24xf32>
    tpu.vector_store %arg15[%c0_274, %c0_275, %c0_276], %1087 {strides = array<i32>} : memref<8x2x24xf32, #tpu.memory_space<vmem>>, vector<8x2x24xf32>,
    return
  }
}

</mosaic_0001>

<llo_original>
// kernel: tpu_custom_call.1
$region0: #{tpu_custom_call.1}
  #allocation0 [shape = 'u32[]', space=smem, size = 0x4, offset = 0x4, fixed_abs, tag = 'smem constant byte address 0x4 - core index']
  #allocation1 [shape = 'u32[72,128]{1,0:T(1,128)}', space=vmem, size = 0x9000, scoped, tag = 'internal scratch']
  #allocation2 [shape = 'f32[8,2,64]{2,1,0:T(2,128)}', space=vmem, size = 0x2000, scoped, tag = 'scratch operand']
  #allocation3 [shape = 'f32[8,2,64]{2,1,0:T(2,128)}', space=vmem, size = 0x2000, scoped, tag = 'scratch operand']
  #allocation4 [shape = 'f32[8,2,64]{2,1,0:T(2,128)}', space=vmem, size = 0x2000, scoped, tag = 'scratch operand']
  #allocation5 [shape = 'f32[8,2,64]{2,1,0:T(2,128)}', space=vmem, size = 0x2000, scoped, tag = 'scratch operand']
  %s0 = inlined_call_operand.vmem [shape: f32[8,2,20], index: 0, kind: input, shape index: {}]
  %s1 = inlined_call_operand.hbm [shape: f32[20,256], index: 1, kind: input, shape index: {}]
  %s2 = inlined_call_operand.vmem [shape: f32[64,256], index: 2, kind: input, shape index: {}]
  %s3 = inlined_call_operand.vmem [shape: f32[1,256], index: 3, kind: input, shape index: {}]
  %s4 = inlined_call_operand.hbm [shape: f32[20,256], index: 4, kind: input, shape index: {}]
  %s5 = inlined_call_operand.hbm [shape: f32[64,256], index: 5, kind: input, shape index: {}]
  %s6 = inlined_call_operand.vmem [shape: f32[1,256], index: 6, kind: input, shape index: {}]
  %s7 = inlined_call_operand.hbm [shape: f32[128,256], index: 7, kind: input, shape index: {}]
  %s8 = inlined_call_operand.hbm [shape: f32[64,256], index: 8, kind: input, shape index: {}]
  %s9 = inlined_call_operand.vmem [shape: f32[1,256], index: 9, kind: input, shape index: {}]
  %s10 = inlined_call_operand.hbm [shape: f32[128,256], index: 10, kind: input, shape index: {}]
  %s11 = inlined_call_operand.hbm [shape: f32[64,256], index: 11, kind: input, shape index: {}]
  %s12 = inlined_call_operand.vmem [shape: f32[1,256], index: 12, kind: input, shape index: {}]
  %s13 = inlined_call_operand.vmem [shape: f32[128,24], index: 13, kind: input, shape index: {}]
  %s14 = inlined_call_operand.vmem [shape: f32[1,24], index: 14, kind: input, shape index: {}]
  %s15 = inlined_call_operand.hbm [shape: f32[8,2,24], index: 15, kind: output, shape index: {}]
  %s16 = sld [smem:[#allocation0]]
  $region98: #{tpu_custom_call.1} parent=0
    _
  %s18 = ssub.s32 1, %s16
  %s19 = scalar_select 0, %s18, %s16
  $region1: #{tpu_custom_call.1} parent=0
    #allocation6 [shape = 'u8[24576]{0}', space=vmem, size = 0x6000, scoped, tag = 'input window, operand 1, single buffered']
    #allocation7 [shape = 's32[1]{0}', space=sflag, size = 0x4, scoped, tag = 'scoped memory for tpu_custom_call.1']
    #allocation8 [shape = 's32[1]{0}', space=sflag, size = 0x4, scoped, tag = 'scoped memory for tpu_custom_call.1']
    #allocation9 [shape = 'u8[24576]{0}', space=vmem, size = 0x6000, scoped, tag = 'input window, operand 4, single buffered']
    #allocation10 [shape = 's32[1]{0}', space=sflag, size = 0x4, scoped, tag = 'scoped memory for tpu_custom_call.1']
    #allocation11 [shape = 'u8[65536]{0}', space=vmem, size = 0x10000, scoped, tag = 'input window, operand 5, single buffered']
    #allocation12 [shape = 'u8[131072]{0}', space=vmem, size = 0x20000, scoped, tag = 'input window, operand 7, single buffered']
    #allocation13 [shape = 's32[1]{0}', space=sflag, size = 0x4, scoped, tag = 'scoped memory for tpu_custom_call.1']
    #allocation14 [shape = 'u8[65536]{0}', space=vmem, size = 0x10000, scoped, tag = 'input window, operand 8, single buffered']
    #allocation15 [shape = 'u8[131072]{0}', space=vmem, size = 0x20000, scoped, tag = 'input window, operand 10, single buffered']
    #allocation16 [shape = 's32[1]{0}', space=sflag, size = 0x4, scoped, tag = 'scoped memory for tpu_custom_call.1']
    #allocation17 [shape = 'u8[65536]{0}', space=vmem, size = 0x10000, scoped, tag = 'input window, operand 11, single buffered']
    #allocation18 [shape = 'u8[8192]{0}', space=vmem, size = 0x2000, scoped, tag = 'output window, operand 0, single buffered']
    %20 = vsyncpa [#allocation7], 0
    %21 = vsyncpa [#allocation10], 0
    %22 = vsyncpa [#allocation13], 0
    %23 = vsyncpa [#allocation16], 0
    %24 = vsyncpa [#allocation8], 0
    // Predicated region
    $region2: #{tpu_custom_call.1} parent=1 // pred_check
      _
    $region3: #{tpu_custom_call.1} parent=1 // pred_check_branch
      %26 = sbr.rel (0) target = $region5
    $region4: #{tpu_custom_call.1} parent=1 // pred_region
      _
    $region5: #{tpu_custom_call.1} parent=1 // pred_fallthru
      _
    // Predicated region
    $region6: #{tpu_custom_call.1} parent=1 // pred_check
      _
    $region7: #{tpu_custom_call.1} parent=1 // pred_check_branch
      %28 = sbr.rel (0) target = $region9
    $region8: #{tpu_custom_call.1} parent=1 // pred_region
      %30 = vsyncadd [#allocation7], 0
      %s31 = sshll.u32 %s1, 4
      %s32 = int_to_ptr.hbm [resolvable:$true] %s31
      %s33 = sshll.u32 [#allocation6], 4
      %s34 = int_to_ptr.vmem [resolvable:$true] %s33
      %39 = dma.hbm_to_vmem [thread:$0]  %s32, 768, %s34, [#allocation7], 256, 256, 16
    $region9: #{tpu_custom_call.1} parent=1 // pred_fallthru
      _
    // Predicated region
    $region10: #{tpu_custom_call.1} parent=1 // pred_check
      _
    $region11: #{tpu_custom_call.1} parent=1 // pred_check_branch
      %41 = sbr.rel (0) target = $region13
    $region12: #{tpu_custom_call.1} parent=1 // pred_region
      _
    $region13: #{tpu_custom_call.1} parent=1 // pred_fallthru
      _
    // Predicated region
    $region14: #{tpu_custom_call.1} parent=1 // pred_check
      _
    $region15: #{tpu_custom_call.1} parent=1 // pred_check_branch
      %43 = sbr.rel (0) target = $region17
    $region16: #{tpu_custom_call.1} parent=1 // pred_region
      _
    $region17: #{tpu_custom_call.1} parent=1 // pred_fallthru
      _
    // Predicated region
    $region18: #{tpu_custom_call.1} parent=1 // pred_check
      _
    $region19: #{tpu_custom_call.1} parent=1 // pred_check_branch
      %45 = sbr.rel (0) target = $region21
    $region20: #{tpu_custom_call.1} parent=1 // pred_region
      %47 = vsyncadd [#allocation10], 0
      %s48 = sshll.u32 %s4, 4
      %s49 = int_to_ptr.hbm [resolvable:$true] %s48
      %s50 = sshll.u32 [#allocation9], 4
      %s51 = int_to_ptr.vmem [resolvable:$true] %s50
      %56 = dma.hbm_to_vmem [thread:$0]  %s49, 768, %s51, [#allocation10], 256, 256, 16
    $region21: #{tpu_custom_call.1} parent=1 // pred_fallthru
      _
    // Predicated region
    $region22: #{tpu_custom_call.1} parent=1 // pred_check
      _
    $region23: #{tpu_custom_call.1} parent=1 // pred_check_branch
      %58 = sbr.rel (0) target = $region25
    $region24: #{tpu_custom_call.1} parent=1 // pred_region
      %60 = vsyncadd [#allocation10], 0
      %s61 = sshll.u32 %s5, 4
      %s62 = int_to_ptr.hbm [resolvable:$true] %s61
      %s63 = sshll.u32 [#allocation11], 4
      %s64 = int_to_ptr.vmem [resolvable:$true] %s63
      %69 = dma.hbm_to_vmem [thread:$0]  %s62, 2048, %s64, [#allocation10], 256, 256, 16
    $region25: #{tpu_custom_call.1} parent=1 // pred_fallthru
      _
    // Predicated region
    $region26: #{tpu_custom_call.1} parent=1 // pred_check
      _
    $region27: #{tpu_custom_call.1} parent=1 // pred_check_branch
      %71 = sbr.rel (0) target = $region29
    $region28: #{tpu_custom_call.1} parent=1 // pred_region
      _
    $region29: #{tpu_custom_call.1} parent=1 // pred_fallthru
      _
    // Predicated region
    $region30: #{tpu_custom_call.1} parent=1 // pred_check
      _
    $region31: #{tpu_custom_call.1} parent=1 // pred_check_branch
      %73 = sbr.rel (0) target = $region33
    $region32: #{tpu_custom_call.1} parent=1 // pred_region
      %75 = vsyncadd [#allocation13], 0
      %s76 = sshll.u32 %s7, 4
      %s77 = int_to_ptr.hbm [resolvable:$true] %s76
      %s78 = sshll.u32 [#allocation12], 4
      %s79 = int_to_ptr.vmem [resolvable:$true] %s78
      %84 = dma.hbm_to_vmem [thread:$0]  %s77, 4096, %s79, [#allocation13], 256, 256, 16
    $region33: #{tpu_custom_call.1} parent=1 // pred_fallthru
      _
    // Predicated region
    $region34: #{tpu_custom_call.1} parent=1 // pred_check
      _
    $region35: #{tpu_custom_call.1} parent=1 // pred_check_branch
      %86 = sbr.rel (0) target = $region37
    $region36: #{tpu_custom_call.1} parent=1 // pred_region
      %88 = vsyncadd [#allocation13], 0
      %s89 = sshll.u32 %s8, 4
      %s90 = int_to_ptr.hbm [resolvable:$true] %s89
      %s91 = sshll.u32 [#allocation14], 4
      %s92 = int_to_ptr.vmem [resolvable:$true] %s91
      %97 = dma.hbm_to_vmem [thread:$0]  %s90, 2048, %s92, [#allocation13], 256, 256, 16
    $region37: #{tpu_custom_call.1} parent=1 // pred_fallthru
      _
    // Predicated region
    $region38: #{tpu_custom_call.1} parent=1 // pred_check
      _
    $region39: #{tpu_custom_call.1} parent=1 // pred_check_branch
      %99 = sbr.rel (0) target = $region41
    $region40: #{tpu_custom_call.1} parent=1 // pred_region
      _
    $region41: #{tpu_custom_call.1} parent=1 // pred_fallthru
      _
    // Predicated region
    $region42: #{tpu_custom_call.1} parent=1 // pred_check
      _
    $region43: #{tpu_custom_call.1} parent=1 // pred_check_branch
      %101 = sbr.rel (0) target = $region45
    $region44: #{tpu_custom_call.1} parent=1 // pred_region
      %103 = vsyncadd [#allocation16], 0
      %s104 = sshll.u32 %s10, 4
      %s105 = int_to_ptr.hbm [resolvable:$true] %s104
      %s106 = sshll.u32 [#allocation15], 4
      %s107 = int_to_ptr.vmem [resolvable:$true] %s106
      %112 = dma.hbm_to_vmem [thread:$0]  %s105, 4096, %s107, [#allocation16], 256, 256, 16
    $region45: #{tpu_custom_call.1} parent=1 // pred_fallthru
      _
    // Predicated region
    $region46: #{tpu_custom_call.1} parent=1 // pred_check
      _
    $region47: #{tpu_custom_call.1} parent=1 // pred_check_branch
      %114 = sbr.rel (0) target = $region49
    $region48: #{tpu_custom_call.1} parent=1 // pred_region
      %116 = vsyncadd [#allocation16], 0
      %s117 = sshll.u32 %s11, 4
      %s118 = int_to_ptr.hbm [resolvable:$true] %s117
      %s119 = sshll.u32 [#allocation17], 4
      %s120 = int_to_ptr.vmem [resolvable:$true] %s119
      %125 = dma.hbm_to_vmem [thread:$0]  %s118, 2048, %s120, [#allocation16], 256, 256, 16
    $region49: #{tpu_custom_call.1} parent=1 // pred_fallthru
      _
    // Predicated region
    $region50: #{tpu_custom_call.1} parent=1 // pred_check
      _
    $region51: #{tpu_custom_call.1} parent=1 // pred_check_branch
      %127 = sbr.rel (0) target = $region53
    $region52: #{tpu_custom_call.1} parent=1 // pred_region
      _
    $region53: #{tpu_custom_call.1} parent=1 // pred_fallthru
      _
    // Predicated region
    $region54: #{tpu_custom_call.1} parent=1 // pred_check
      _
    $region55: #{tpu_custom_call.1} parent=1 // pred_check_branch
      %129 = sbr.rel (0) target = $region57
    $region56: #{tpu_custom_call.1} parent=1 // pred_region
      _
    $region57: #{tpu_custom_call.1} parent=1 // pred_fallthru
      _
    // Predicated region
    $region58: #{tpu_custom_call.1} parent=1 // pred_check
      _
    $region59: #{tpu_custom_call.1} parent=1 // pred_check_branch
      %131 = sbr.rel (0) target = $region61
    $region60: #{tpu_custom_call.1} parent=1 // pred_region
      _
    $region61: #{tpu_custom_call.1} parent=1 // pred_fallthru
      _
    // Predicated region
    $region62: #{tpu_custom_call.1} parent=1 // pred_check
      _
    $region63: #{tpu_custom_call.1} parent=1 // pred_check_branch
      %133 = sbr.rel (0) target = $region65
    $region64: #{tpu_custom_call.1} parent=1 // pred_region
      %135 = dma.done [#allocation7], 768
    $region65: #{tpu_custom_call.1} parent=1 // pred_fallthru
      _
    // Predicated region
    $region66: #{tpu_custom_call.1} parent=1 // pred_check
      _
    $region67: #{tpu_custom_call.1} parent=1 // pred_check_branch
      %137 = sbr.rel (0) target = $region69
    $region68: #{tpu_custom_call.1} parent=1 // pred_region
      %139 = dma.done [#allocation10], 768
    $region69: #{tpu_custom_call.1} parent=1 // pred_fallthru
      _
    // Predicated region
    $region70: #{tpu_custom_call.1} parent=1 // pred_check
      _
    $region71: #{tpu_custom_call.1} parent=1 // pred_check_branch
      %141 = sbr.rel (0) target = $region73
    $region72: #{tpu_custom_call.1} parent=1 // pred_region
      %143 = dma.done [#allocation10], 2048
    $region73: #{tpu_custom_call.1} parent=1 // pred_fallthru
      _
    // Predicated region
    $region74: #{tpu_custom_call.1} parent=1 // pred_check
      _
    $region75: #{tpu_custom_call.1} parent=1 // pred_check_branch
      %145 = sbr.rel (0) target = $region77
    $region76: #{tpu_custom_call.1} parent=1 // pred_region
      %147 = dma.done [#allocation13], 4096
    $region77: #{tpu_custom_call.1} parent=1 // pred_fallthru
      _
    // Predicated region
    $region78: #{tpu_custom_call.1} parent=1 // pred_check
      _
    $region79: #{tpu_custom_call.1} parent=1 // pred_check_branch
      %149 = sbr.rel (0) target = $region81
    $region80: #{tpu_custom_call.1} parent=1 // pred_region
      %151 = dma.done [#allocation13], 2048
    $region81: #{tpu_custom_call.1} parent=1 // pred_fallthru
      _
    // Predicated region
    $region82: #{tpu_custom_call.1} parent=1 // pred_check
      _
    $region83: #{tpu_custom_call.1} parent=1 // pred_check_branch
      %153 = sbr.rel (0) target = $region85
    $region84: #{tpu_custom_call.1} parent=1 // pred_region
      %155 = dma.done [#allocation16], 4096
    $region85: #{tpu_custom_call.1} parent=1 // pred_fallthru
      _
    // Predicated region
    $region86: #{tpu_custom_call.1} parent=1 // pred_check
      _
    $region87: #{tpu_custom_call.1} parent=1 // pred_check_branch
      %157 = sbr.rel (0) target = $region89
    $region88: #{tpu_custom_call.1} parent=1 // pred_region
      %159 = dma.done [#allocation16], 2048
    $region89: #{tpu_custom_call.1} parent=1 // pred_fallthru
      _
    %v160 = vld [vmem:[%s0] sm:$0x3]
    %v161 = vld [vmem:[%s0 + $0x2] sm:$0x3]
    %v162 = vld [vmem:[%s0 + $0x4] sm:$0x3]
    %v163 = vld [vmem:[%s0 + $0x6] sm:$0x3]
    %v164 = vld [vmem:[%s0 + $0x8] sm:$0x3]
    %v165 = vld [vmem:[%s0 + $0xa] sm:$0x3]
    %v166 = vld [vmem:[%s0 + $0xc] sm:$0x3]
    %v167 = vld [vmem:[%s0 + $0xe] sm:$0x3]
    %v168 = vld [vmem:[#allocation6] sm:$0xff]
    %v169 = vld [vmem:[#allocation6 + $0x8] sm:$0xff]
    %v170 = vld [vmem:[#allocation6 + $0x10] sm:$0xff]
    %v171 = vld [vmem:[#allocation6 + $0x18] sm:$0xff]
    %v172 = vld [vmem:[#allocation6 + $0x20] sm:$0xf]
    %v173 = vld [vmem:[#allocation6 + $0x28] sm:$0xf]
    %v174 = vld [vmem:[%s3] sm:$0x3]
    %v176 = vperm.slane %v174, 0
    %v177 = vperm.slane %v174, 1
    %188 = vst [vmem:[#allocation1] ss:$4 sm:$0xff] %v160
    %s189 = scalar_lea.vmem [#allocation1], 1
    %190 = vst [vmem:[%s189] ss:$4 sm:$0xff] %v161
    %s191 = scalar_lea.vmem [#allocation1], 2
    %192 = vst [vmem:[%s191] ss:$4 sm:$0xff] %v162
    %s193 = scalar_lea.vmem [#allocation1], 3
    %194 = vst [vmem:[%s193] ss:$4 sm:$0xff] %v163
    %s195 = scalar_lea.vmem [#allocation1], 32
    %196 = vst [vmem:[%s195] ss:$4 sm:$0xff] %v164
    %s197 = scalar_lea.vmem [#allocation1], 33
    %198 = vst [vmem:[%s197] ss:$4 sm:$0xff] %v165
    %s199 = scalar_lea.vmem [#allocation1], 34
    %200 = vst [vmem:[%s199] ss:$4 sm:$0xff] %v166
    %s201 = scalar_lea.vmem [#allocation1], 35
    %202 = vst [vmem:[%s201] ss:$4 sm:$0xff] %v167
    %v203 = vld.sshfl [vmem:[#allocation1] sm:$0xff pattern:$0x73625140]
    %v204 = vld.sshfl [vmem:[#allocation1 + $0x20] sm:$0xff pattern:$0x73625140]
    %vm205 = vcmask 162816
    %v206 = vsel %vm205, %v203, 0
    %v208 = vsel %vm205, %v204, 0
    %vm210 = vcmask 1043456
    %v212 = vsel %vm210, %v172, 0
    %v215 = vsel %vm210, %v173, 0
    %217 = vmatpush.msra.mxu0 0.0
    %218 = vmatpush.msra.mxu0 0.0
    %219 = vmatpush.msra.mxu0 0.0
    %220 = vmatpush.msra.mxu0 0.0
    %221 = vmatpush.msra.mxu0 0.0
    %222 = vmatpush.msra.mxu0 0.0
    %223 = vmatpush.msra.mxu0 0.0
    %224 = vmatpush.msra.mxu0 0.0
    %225 = vmatpush.msra.mxu0 0.0
    %226 = vmatpush.msra.mxu0 0.0
    %227 = vmatpush.msra.mxu0 0.0
    %228 = vmatpush.msra.mxu0 0.0
    %229 = vmatpush.msra.mxu0 0.0
    %230 = vmatpush.msra.mxu0 %v212
    %231 = vmatpush.msra.mxu0 %v170
    %232 = vmatpush.msra.mxu0 %v168
    %233 = vmatmul.f32.gmra.mxu0 %v206
    %v234 = vpop.f32.mrf.mxu0
    %v235 = vadd.f32 %v176, %v234
    %236 = vmatmul.f32.gmra.mxu0 %v208
    %v237 = vpop.f32.mrf.mxu0
    %v238 = vadd.f32 %v176, %v237
    %239 = vdwg.mxu0
    %240 = vmatpush.msra.mxu0 0.0
    %241 = vmatpush.msra.mxu0 0.0
    %242 = vmatpush.msra.mxu0 0.0
    %243 = vmatpush.msra.mxu0 0.0
    %244 = vmatpush.msra.mxu0 0.0
    %245 = vmatpush.msra.mxu0 0.0
    %246 = vmatpush.msra.mxu0 0.0
    %247 = vmatpush.msra.mxu0 0.0
    %248 = vmatpush.msra.mxu0 0.0
    %249 = vmatpush.msra.mxu0 0.0
    %250 = vmatpush.msra.mxu0 0.0
    %251 = vmatpush.msra.mxu0 0.0
    %252 = vmatpush.msra.mxu0 0.0
    %253 = vmatpush.msra.mxu0 %v215
    %254 = vmatpush.msra.mxu0 %v171
    %255 = vmatpush.msra.mxu0 %v169
    %256 = vmatmul.f32.gmra.mxu0 %v206
    %v257 = vpop.f32.mrf.mxu0
    %v258 = vadd.f32 %v177, %v257
    %259 = vmatmul.f32.gmra.mxu0 %v208
    %v260 = vpop.f32.mrf.mxu0
    %v261 = vadd.f32 %v177, %v260
    %262 = vdwg.mxu0
    %v267 = vrot.slane %v258, 6
    %v268 = vrot.slane %v261, 6
    %vm269 = vcmask 1041408
    %v270 = vsel %vm269, %v235, %v267
    %vm271 = vcmask 1043458
    %v272 = vsel %vm271, %v235, %v267
    %v273 = vrot.slane %v272, 2
    %vm274 = vcmask 1045508
    %v275 = vsel %vm274, %v235, %v267
    %v276 = vrot.slane %v275, 4
    %vm277 = vcmask 1045504
    %v278 = vsel %vm277, %v267, %v235
    %v279 = vrot.slane %v278, 6
    %v280 = vsel %vm269, %v238, %v268
    %v281 = vsel %vm271, %v238, %v268
    %v282 = vrot.slane %v281, 2
    %v283 = vsel %vm274, %v238, %v268
    %v284 = vrot.slane %v283, 4
    %v285 = vsel %vm277, %v268, %v238
    %v286 = vrot.slane %v285, 6
    %v295 = vld [vmem:[#allocation9] sm:$0xff]
    %v296 = vld [vmem:[#allocation9 + $0x8] sm:$0xff]
    %v297 = vld [vmem:[#allocation9 + $0x10] sm:$0xff]
    %v298 = vld [vmem:[#allocation9 + $0x18] sm:$0xff]
    %v299 = vld [vmem:[#allocation9 + $0x20] sm:$0xf]
    %v300 = vld [vmem:[#allocation9 + $0x28] sm:$0xf]
    %v301 = vld [vmem:[%s6] sm:$0x3]
    %v303 = vperm.slane %v301, 0
    %v304 = vperm.slane %v301, 1
    %307 = vst [vmem:[#allocation1] ss:$4 sm:$0xff] %v160
    %s308 = scalar_lea.vmem [#allocation1], 1
    %309 = vst [vmem:[%s308] ss:$4 sm:$0xff] %v161
    %s310 = scalar_lea.vmem [#allocation1], 2
    %311 = vst [vmem:[%s310] ss:$4 sm:$0xff] %v162
    %s312 = scalar_lea.vmem [#allocation1], 3
    %313 = vst [vmem:[%s312] ss:$4 sm:$0xff] %v163
    %s314 = scalar_lea.vmem [#allocation1], 32
    %315 = vst [vmem:[%s314] ss:$4 sm:$0xff] %v164
    %s316 = scalar_lea.vmem [#allocation1], 33
    %317 = vst [vmem:[%s316] ss:$4 sm:$0xff] %v165
    %s318 = scalar_lea.vmem [#allocation1], 34
    %319 = vst [vmem:[%s318] ss:$4 sm:$0xff] %v166
    %s320 = scalar_lea.vmem [#allocation1], 35
    %321 = vst [vmem:[%s320] ss:$4 sm:$0xff] %v167
    %v322 = vld.sshfl [vmem:[#allocation1] sm:$0xff pattern:$0x73625140]
    %v323 = vld.sshfl [vmem:[#allocation1 + $0x20] sm:$0xff pattern:$0x73625140]
    %v324 = vsel %vm205, %v322, 0
    %v326 = vsel %vm205, %v323, 0
    %v329 = vsel %vm210, %v299, 0
    %v332 = vsel %vm210, %v300, 0
    %334 = vmatpush.msra.mxu0 0.0
    %335 = vmatpush.msra.mxu0 0.0
    %336 = vmatpush.msra.mxu0 0.0
    %337 = vmatpush.msra.mxu0 0.0
    %338 = vmatpush.msra.mxu0 0.0
    %339 = vmatpush.msra.mxu0 0.0
    %340 = vmatpush.msra.mxu0 0.0
    %341 = vmatpush.msra.mxu0 0.0
    %342 = vmatpush.msra.mxu0 0.0
    %343 = vmatpush.msra.mxu0 0.0
    %344 = vmatpush.msra.mxu0 0.0
    %345 = vmatpush.msra.mxu0 0.0
    %346 = vmatpush.msra.mxu0 0.0
    %347 = vmatpush.msra.mxu0 %v329
    %348 = vmatpush.msra.mxu0 %v297
    %349 = vmatpush.msra.mxu0 %v295
    %350 = vmatmul.f32.gmra.mxu0 %v324
    %v351 = vpop.f32.mrf.mxu0
    %v352 = vadd.f32 %v303, %v351
    %353 = vmatmul.f32.gmra.mxu0 %v326
    %v354 = vpop.f32.mrf.mxu0
    %v355 = vadd.f32 %v303, %v354
    %356 = vdwg.mxu0
    %357 = vmatpush.msra.mxu0 0.0
    %358 = vmatpush.msra.mxu0 0.0
    %359 = vmatpush.msra.mxu0 0.0
    %360 = vmatpush.msra.mxu0 0.0
    %361 = vmatpush.msra.mxu0 0.0
    %362 = vmatpush.msra.mxu0 0.0
    %363 = vmatpush.msra.mxu0 0.0
    %364 = vmatpush.msra.mxu0 0.0
    %365 = vmatpush.msra.mxu0 0.0
    %366 = vmatpush.msra.mxu0 0.0
    %367 = vmatpush.msra.mxu0 0.0
    %368 = vmatpush.msra.mxu0 0.0
    %369 = vmatpush.msra.mxu0 0.0
    %370 = vmatpush.msra.mxu0 %v332
    %371 = vmatpush.msra.mxu0 %v298
    %372 = vmatpush.msra.mxu0 %v296
    %373 = vmatmul.f32.gmra.mxu0 %v324
    %v374 = vpop.f32.mrf.mxu0
    %v375 = vadd.f32 %v304, %v374
    %376 = vmatmul.f32.gmra.mxu0 %v326
    %v377 = vpop.f32.mrf.mxu0
    %v378 = vadd.f32 %v304, %v377
    %379 = vdwg.mxu0
    %v384 = vrot.slane %v375, 6
    %v385 = vrot.slane %v378, 6
    %v386 = vsel %vm269, %v352, %v384
    %v387 = vsel %vm271, %v352, %v384
    %v388 = vrot.slane %v387, 2
    %v389 = vsel %vm274, %v352, %v384
    %v390 = vrot.slane %v389, 4
    %v391 = vsel %vm277, %v384, %v352
    %v392 = vrot.slane %v391, 6
    %v393 = vsel %vm269, %v355, %v385
    %v394 = vsel %vm271, %v355, %v385
    %v395 = vrot.slane %v394, 2
    %v396 = vsel %vm274, %v355, %v385
    %v397 = vrot.slane %v396, 4
    %v398 = vsel %vm277, %v385, %v355
    %v399 = vrot.slane %v398, 6
    %v408 = vld [vmem:[%s2] sm:$0xff]
    %v409 = vld [vmem:[%s2 + $0x8] sm:$0xff]
    %v410 = vld [vmem:[%s2 + $0x10] sm:$0xff]
    %v411 = vld [vmem:[%s2 + $0x18] sm:$0xff]
    %v412 = vld [vmem:[%s2 + $0x20] sm:$0xff]
    %v413 = vld [vmem:[%s2 + $0x28] sm:$0xff]
    %v414 = vld [vmem:[%s2 + $0x30] sm:$0xff]
    %v415 = vld [vmem:[%s2 + $0x38] sm:$0xff]
    %v416 = vld [vmem:[%s2 + $0x40] sm:$0xff]
    %v417 = vld [vmem:[%s2 + $0x48] sm:$0xff]
    %v418 = vld [vmem:[%s2 + $0x50] sm:$0xff]
    %v419 = vld [vmem:[%s2 + $0x58] sm:$0xff]
    %v420 = vld [vmem:[%s2 + $0x60] sm:$0xff]
    %v421 = vld [vmem:[%s2 + $0x68] sm:$0xff]
    %v422 = vld [vmem:[%s2 + $0x70] sm:$0xff]
    %v423 = vld [vmem:[%s2 + $0x78] sm:$0xff]
    %v424 = vld [vmem:[#allocation11] sm:$0xff]
    %v425 = vld [vmem:[#allocation11 + $0x8] sm:$0xff]
    %v426 = vld [vmem:[#allocation11 + $0x10] sm:$0xff]
    %v427 = vld [vmem:[#allocation11 + $0x18] sm:$0xff]
    %v428 = vld [vmem:[#allocation11 + $0x20] sm:$0xff]
    %v429 = vld [vmem:[#allocation11 + $0x28] sm:$0xff]
    %v430 = vld [vmem:[#allocation11 + $0x30] sm:$0xff]
    %v431 = vld [vmem:[#allocation11 + $0x38] sm:$0xff]
    %v432 = vld [vmem:[#allocation11 + $0x40] sm:$0xff]
    %v433 = vld [vmem:[#allocation11 + $0x48] sm:$0xff]
    %v434 = vld [vmem:[#allocation11 + $0x50] sm:$0xff]
    %v435 = vld [vmem:[#allocation11 + $0x58] sm:$0xff]
    %v436 = vld [vmem:[#allocation11 + $0x60] sm:$0xff]
    %v437 = vld [vmem:[#allocation11 + $0x68] sm:$0xff]
    %v438 = vld [vmem:[#allocation11 + $0x70] sm:$0xff]
    %v439 = vld [vmem:[#allocation11 + $0x78] sm:$0xff]
    %vm440 = vcmask 523264
    %v442 = vsel %vm440, 0.0, 0
    %444 = vmatpush.msra.mxu0 0.0
    %445 = vmatpush.msra.mxu0 0.0
    %446 = vmatpush.msra.mxu0 0.0
    %447 = vmatpush.msra.mxu0 0.0
    %448 = vmatpush.msra.mxu0 0.0
    %449 = vmatpush.msra.mxu0 0.0
    %450 = vmatpush.msra.mxu0 0.0
    %451 = vmatpush.msra.mxu0 0.0
    %452 = vmatpush.msra.mxu0 %v422
    %453 = vmatpush.msra.mxu0 %v420
    %454 = vmatpush.msra.mxu0 %v418
    %455 = vmatpush.msra.mxu0 %v416
    %456 = vmatpush.msra.mxu0 %v414
    %457 = vmatpush.msra.mxu0 %v412
    %458 = vmatpush.msra.mxu0 %v410
    %459 = vmatpush.msra.mxu0 %v408
    %460 = vmatmul.f32.gmra.mxu0 %v442
    %v461 = vpop.f32.mrf.mxu0
    %v462 = vadd.f32 0.0, %v461
    %463 = vdwg.mxu0
    %464 = vmatpush.msra.mxu0 0.0
    %465 = vmatpush.msra.mxu0 0.0
    %466 = vmatpush.msra.mxu0 0.0
    %467 = vmatpush.msra.mxu0 0.0
    %468 = vmatpush.msra.mxu0 0.0
    %469 = vmatpush.msra.mxu0 0.0
    %470 = vmatpush.msra.mxu0 0.0
    %471 = vmatpush.msra.mxu0 0.0
    %472 = vmatpush.msra.mxu0 %v423
    %473 = vmatpush.msra.mxu0 %v421
    %474 = vmatpush.msra.mxu0 %v419
    %475 = vmatpush.msra.mxu0 %v417
    %476 = vmatpush.msra.mxu0 %v415
    %477 = vmatpush.msra.mxu0 %v413
    %478 = vmatpush.msra.mxu0 %v411
    %479 = vmatpush.msra.mxu0 %v409
    %480 = vmatmul.f32.gmra.mxu0 %v442
    %v481 = vpop.f32.mrf.mxu0
    %v482 = vadd.f32 0.0, %v481
    %483 = vdwg.mxu0
    %v486 = vrot.slane %v482, 6
    %v487 = vsel %vm269, %v462, %v486
    %v489 = vadd.f32 %v270, %v487
    %v490 = vxor.u32 %v489, 2147483648
    %v491 = vmul.f32 %v490, 1.442695
    %v492 = vpow.pop %v491
    %v493 = vadd.f32 %v492, 1.0
    %v494 = vrcp.pop %v493
    %v495 = vmul.f32 %v493, %v494
    %v496 = vsub.f32 1.0, %v495
    %v497 = vmul.f32 %v494, %v496
    %v498 = vadd.f32 %v494, %v497
    %vm499 = vweird.f32 %v493
    %vm500 = vweird.f32 %v494
    %vm501 = vmor %vm499, %vm500
    %v502 = vsel %vm501, %v494, %v498
    %v503 = vand.u32 2147483647, %v493
    %vm504 = vcmp.eq.f32.partialorder %v503, 8.507059e+37
    %v505 = vand.u32 %v493, 2147483648
    %v506 = vor.u32 1.1754944e-38, %v505
    %v507 = vsel %vm504, %v506, %v502
    %v508 = vmul.f32 1.0, %v507
    %v510 = vrot.slane %v489, 2
    %v512 = vtanh.pop %v510
    %513 = vrot.lane.b32.xlu0 %v489, 64
    %v514 = vpop.permute.xlu0 %513
    %v515 = vrot.slane %v514, 2
    %v517 = vxor.u32 %v515, 2147483648
    %v518 = vmul.f32 %v517, 1.442695
    %v519 = vpow.pop %v518
    %v520 = vadd.f32 %v519, 1.0
    %v521 = vrcp.pop %v520
    %v522 = vmul.f32 %v520, %v521
    %v523 = vsub.f32 1.0, %v522
    %v524 = vmul.f32 %v521, %v523
    %v525 = vadd.f32 %v521, %v524
    %vm526 = vweird.f32 %v520
    %vm527 = vweird.f32 %v521
    %vm528 = vmor %vm526, %vm527
    %v529 = vsel %vm528, %v521, %v525
    %v530 = vand.u32 2147483647, %v520
    %vm531 = vcmp.eq.f32.partialorder %v530, 8.507059e+37
    %v532 = vand.u32 %v520, 2147483648
    %v533 = vor.u32 1.1754944e-38, %v532
    %v534 = vsel %vm531, %v533, %v529
    %v535 = vmul.f32 1.0, %v534
    %v536 = vmul.f32 %v508, 0.0
    %v537 = vmul.f32 %v508, %v512
    %539 = vrot.lane.b32.xlu0 %v537, 64
    %v540 = vpop.permute.xlu0 %539
    %v542 = vadd.f32 %v536, %v540
    %v543 = vtanh.pop %v542
    %545 = vrot.lane.b32.xlu0 %v543, 64
    %v546 = vpop.permute.xlu0 %545
    %v548 = vmul.f32 %v535, %v546
    %vm549 = vcmask 517120
    %550 = vst.msk [vmem:[#allocation2] sm:$0x3] %vm549, %v548
    %551 = vmatpush.msra.mxu0 0.0
    %552 = vmatpush.msra.mxu0 0.0
    %553 = vmatpush.msra.mxu0 0.0
    %554 = vmatpush.msra.mxu0 0.0
    %555 = vmatpush.msra.mxu0 0.0
    %556 = vmatpush.msra.mxu0 0.0
    %557 = vmatpush.msra.mxu0 0.0
    %558 = vmatpush.msra.mxu0 0.0
    %559 = vmatpush.msra.mxu0 %v438
    %560 = vmatpush.msra.mxu0 %v436
    %561 = vmatpush.msra.mxu0 %v434
    %562 = vmatpush.msra.mxu0 %v432
    %563 = vmatpush.msra.mxu0 %v430
    %564 = vmatpush.msra.mxu0 %v428
    %565 = vmatpush.msra.mxu0 %v426
    %566 = vmatpush.msra.mxu0 %v424
    %567 = vmatmul.f32.gmra.mxu0 %v442
    %v568 = vpop.f32.mrf.mxu0
    %v569 = vadd.f32 0.0, %v568
    %570 = vdwg.mxu0
    %571 = vmatpush.msra.mxu0 0.0
    %572 = vmatpush.msra.mxu0 0.0
    %573 = vmatpush.msra.mxu0 0.0
    %574 = vmatpush.msra.mxu0 0.0
    %575 = vmatpush.msra.mxu0 0.0
    %576 = vmatpush.msra.mxu0 0.0
    %577 = vmatpush.msra.mxu0 0.0
    %578 = vmatpush.msra.mxu0 0.0
    %579 = vmatpush.msra.mxu0 %v439
    %580 = vmatpush.msra.mxu0 %v437
    %581 = vmatpush.msra.mxu0 %v435
    %582 = vmatpush.msra.mxu0 %v433
    %583 = vmatpush.msra.mxu0 %v431
    %584 = vmatpush.msra.mxu0 %v429
    %585 = vmatpush.msra.mxu0 %v427
    %586 = vmatpush.msra.mxu0 %v425
    %587 = vmatmul.f32.gmra.mxu0 %v442
    %v588 = vpop.f32.mrf.mxu0
    %v589 = vadd.f32 0.0, %v588
    %590 = vdwg.mxu0
    %v593 = vrot.slane %v589, 6
    %v594 = vsel %vm269, %v569, %v593
    %v596 = vadd.f32 %v399, %v594
    %v597 = vxor.u32 %v596, 2147483648
    %v598 = vmul.f32 %v597, 1.442695
    %v599 = vpow.pop %v598
    %v600 = vadd.f32 %v599, 1.0
    %v601 = vrcp.pop %v600
    %v602 = vmul.f32 %v600, %v601
    %v603 = vsub.f32 1.0, %v602
    %v604 = vmul.f32 %v601, %v603
    %v605 = vadd.f32 %v601, %v604
    %vm606 = vweird.f32 %v600
    %vm607 = vweird.f32 %v601
    %vm608 = vmor %vm606, %vm607
    %v609 = vsel %vm608, %v601, %v605
    %v610 = vand.u32 2147483647, %v600
    %vm611 = vcmp.eq.f32.partialorder %v610, 8.507059e+37
    %v612 = vand.u32 %v600, 2147483648
    %v613 = vor.u32 1.1754944e-38, %v612
    %v614 = vsel %vm611, %v613, %v609
    %v615 = vmul.f32 1.0, %v614
    %v617 = vrot.slane %v596, 2
    %v619 = vtanh.pop %v617
    %620 = vrot.lane.b32.xlu0 %v596, 64
    %v621 = vpop.permute.xlu0 %620
    %v622 = vrot.slane %v621, 2
    %v624 = vxor.u32 %v622, 2147483648
    %v625 = vmul.f32 %v624, 1.442695
    %v626 = vpow.pop %v625
    %v627 = vadd.f32 %v626, 1.0
    %v628 = vrcp.pop %v627
    %v629 = vmul.f32 %v627, %v628
    %v630 = vsub.f32 1.0, %v629
    %v631 = vmul.f32 %v628, %v630
    %v632 = vadd.f32 %v628, %v631
    %vm633 = vweird.f32 %v627
    %vm634 = vweird.f32 %v628
    %vm635 = vmor %vm633, %vm634
    %v636 = vsel %vm635, %v628, %v632
    %v637 = vand.u32 2147483647, %v627
    %vm638 = vcmp.eq.f32.partialorder %v637, 8.507059e+37
    %v639 = vand.u32 %v627, 2147483648
    %v640 = vor.u32 1.1754944e-38, %v639
    %v641 = vsel %vm638, %v640, %v636
    %v642 = vmul.f32 1.0, %v641
    %v643 = vmul.f32 %v615, 0.0
    %v644 = vmul.f32 %v615, %v619
    %646 = vrot.lane.b32.xlu0 %v644, 64
    %v647 = vpop.permute.xlu0 %646
    %v649 = vadd.f32 %v643, %v647
    %v650 = vtanh.pop %v649
    %652 = vrot.lane.b32.xlu0 %v650, 64
    %v653 = vpop.permute.xlu0 %652
    %v655 = vmul.f32 %v642, %v653
    %s656 = scalar_lea.vmem [#allocation3], 14
    %657 = vst.msk [vmem:[%s656] sm:$0x3] %vm549, %v655
    %v659 = vsel %vm440, %v548, 0
    %661 = vmatpush.msra.mxu0 0.0
    %662 = vmatpush.msra.mxu0 0.0
    %663 = vmatpush.msra.mxu0 0.0
    %664 = vmatpush.msra.mxu0 0.0
    %665 = vmatpush.msra.mxu0 0.0
    %666 = vmatpush.msra.mxu0 0.0
    %667 = vmatpush.msra.mxu0 0.0
    %668 = vmatpush.msra.mxu0 0.0
    %669 = vmatpush.msra.mxu0 %v422
    %670 = vmatpush.msra.mxu0 %v420
    %671 = vmatpush.msra.mxu0 %v418
    %672 = vmatpush.msra.mxu0 %v416
    %673 = vmatpush.msra.mxu0 %v414
    %674 = vmatpush.msra.mxu0 %v412
    %675 = vmatpush.msra.mxu0 %v410
    %676 = vmatpush.msra.mxu0 %v408
    %677 = vmatmul.f32.gmra.mxu0 %v659
    %v678 = vpop.f32.mrf.mxu0
    %v679 = vadd.f32 0.0, %v678
    %680 = vdwg.mxu0
    %681 = vmatpush.msra.mxu0 0.0
    %682 = vmatpush.msra.mxu0 0.0
    %683 = vmatpush.msra.mxu0 0.0
    %684 = vmatpush.msra.mxu0 0.0
    %685 = vmatpush.msra.mxu0 0.0
    %686 = vmatpush.msra.mxu0 0.0
    %687 = vmatpush.msra.mxu0 0.0
    %688 = vmatpush.msra.mxu0 0.0
    %689 = vmatpush.msra.mxu0 %v423
    %690 = vmatpush.msra.mxu0 %v421
    %691 = vmatpush.msra.mxu0 %v419
    %692 = vmatpush.msra.mxu0 %v417
    %693 = vmatpush.msra.mxu0 %v415
    %694 = vmatpush.msra.mxu0 %v413
    %695 = vmatpush.msra.mxu0 %v411
    %696 = vmatpush.msra.mxu0 %v409
    %697 = vmatmul.f32.gmra.mxu0 %v659
    %v698 = vpop.f32.mrf.mxu0
    %v699 = vadd.f32 0.0, %v698
    %700 = vdwg.mxu0
    %v703 = vrot.slane %v699, 6
    %v704 = vsel %vm269, %v679, %v703
    %v706 = vadd.f32 %v273, %v704
    %v707 = vxor.u32 %v706, 2147483648
    %v708 = vmul.f32 %v707, 1.442695
    %v709 = vpow.pop %v708
    %v710 = vadd.f32 %v709, 1.0
    %v711 = vrcp.pop %v710
    %v712 = vmul.f32 %v710, %v711
    %v713 = vsub.f32 1.0, %v712
    %v714 = vmul.f32 %v711, %v713
    %v715 = vadd.f32 %v711, %v714
    %vm716 = vweird.f32 %v710
    %vm717 = vweird.f32 %v711
    %vm718 = vmor %vm716, %vm717
    %v719 = vsel %vm718, %v711, %v715
    %v720 = vand.u32 2147483647, %v710
    %vm721 = vcmp.eq.f32.partialorder %v720, 8.507059e+37
    %v722 = vand.u32 %v710, 2147483648
    %v723 = vor.u32 1.1754944e-38, %v722
    %v724 = vsel %vm721, %v723, %v719
    %v725 = vmul.f32 1.0, %v724
    %v727 = vrot.slane %v706, 2
    %v729 = vtanh.pop %v727
    %730 = vrot.lane.b32.xlu0 %v706, 64
    %v731 = vpop.permute.xlu0 %730
    %v732 = vrot.slane %v731, 2
    %v734 = vxor.u32 %v732, 2147483648
    %v735 = vmul.f32 %v734, 1.442695
    %v736 = vpow.pop %v735
    %v737 = vadd.f32 %v736, 1.0
    %v738 = vrcp.pop %v737
    %v739 = vmul.f32 %v737, %v738
    %v740 = vsub.f32 1.0, %v739
    %v741 = vmul.f32 %v738, %v740
    %v742 = vadd.f32 %v738, %v741
    %vm743 = vweird.f32 %v737
    %vm744 = vweird.f32 %v738
    %vm745 = vmor %vm743, %vm744
    %v746 = vsel %vm745, %v738, %v742
    %v747 = vand.u32 2147483647, %v737
    %vm748 = vcmp.eq.f32.partialorder %v747, 8.507059e+37
    %v749 = vand.u32 %v737, 2147483648
    %v750 = vor.u32 1.1754944e-38, %v749
    %v751 = vsel %vm748, %v750, %v746
    %v752 = vmul.f32 1.0, %v751
    %v753 = vmul.f32 %v725, %v542
    %v754 = vmul.f32 %v725, %v729
    %756 = vrot.lane.b32.xlu0 %v754, 64
    %v757 = vpop.permute.xlu0 %756
    %v759 = vadd.f32 %v753, %v757
    %v760 = vtanh.pop %v759
    %762 = vrot.lane.b32.xlu0 %v760, 64
    %v763 = vpop.permute.xlu0 %762
    %v765 = vmul.f32 %v752, %v763
    %s766 = scalar_lea.vmem [#allocation2], 2
    %767 = vst.msk [vmem:[%s766] sm:$0x3] %vm549, %v765
    %v769 = vsel %vm440, %v655, 0
    %771 = vmatpush.msra.mxu0 0.0
    %772 = vmatpush.msra.mxu0 0.0
    %773 = vmatpush.msra.mxu0 0.0
    %774 = vmatpush.msra.mxu0 0.0
    %775 = vmatpush.msra.mxu0 0.0
    %776 = vmatpush.msra.mxu0 0.0
    %777 = vmatpush.msra.mxu0 0.0
    %778 = vmatpush.msra.mxu0 0.0
    %779 = vmatpush.msra.mxu0 %v438
    %780 = vmatpush.msra.mxu0 %v436
    %781 = vmatpush.msra.mxu0 %v434
    %782 = vmatpush.msra.mxu0 %v432
    %783 = vmatpush.msra.mxu0 %v430
    %784 = vmatpush.msra.mxu0 %v428
    %785 = vmatpush.msra.mxu0 %v426
    %786 = vmatpush.msra.mxu0 %v424
    %787 = vmatmul.f32.gmra.mxu0 %v769
    %v788 = vpop.f32.mrf.mxu0
    %v789 = vadd.f32 0.0, %v788
    %790 = vdwg.mxu0
    %791 = vmatpush.msra.mxu0 0.0
    %792 = vmatpush.msra.mxu0 0.0
    %793 = vmatpush.msra.mxu0 0.0
    %794 = vmatpush.msra.mxu0 0.0
    %795 = vmatpush.msra.mxu0 0.0
    %796 = vmatpush.msra.mxu0 0.0
    %797 = vmatpush.msra.mxu0 0.0
    %798 = vmatpush.msra.mxu0 0.0
    %799 = vmatpush.msra.mxu0 %v439
    %800 = vmatpush.msra.mxu0 %v437
    %801 = vmatpush.msra.mxu0 %v435
    %802 = vmatpush.msra.mxu0 %v433
    %803 = vmatpush.msra.mxu0 %v431
    %804 = vmatpush.msra.mxu0 %v429
    %805 = vmatpush.msra.mxu0 %v427
    %806 = vmatpush.msra.mxu0 %v425
    %807 = vmatmul.f32.gmra.mxu0 %v769
    %v808 = vpop.f32.mrf.mxu0
    %v809 = vadd.f32 0.0, %v808
    %810 = vdwg.mxu0
    %v813 = vrot.slane %v809, 6
    %v814 = vsel %vm269, %v789, %v813
    %v816 = vadd.f32 %v397, %v814
    %v817 = vxor.u32 %v816, 2147483648
    %v818 = vmul.f32 %v817, 1.442695
    %v819 = vpow.pop %v818
    %v820 = vadd.f32 %v819, 1.0
    %v821 = vrcp.pop %v820
    %v822 = vmul.f32 %v820, %v821
    %v823 = vsub.f32 1.0, %v822
    %v824 = vmul.f32 %v821, %v823
    %v825 = vadd.f32 %v821, %v824
    %vm826 = vweird.f32 %v820
    %vm827 = vweird.f32 %v821
    %vm828 = vmor %vm826, %vm827
    %v829 = vsel %vm828, %v821, %v825
    %v830 = vand.u32 2147483647, %v820
    %vm831 = vcmp.eq.f32.partialorder %v830, 8.507059e+37
    %v832 = vand.u32 %v820, 2147483648
    %v833 = vor.u32 1.1754944e-38, %v832
    %v834 = vsel %vm831, %v833, %v829
    %v835 = vmul.f32 1.0, %v834
    %v837 = vrot.slane %v816, 2
    %v839 = vtanh.pop %v837
    %840 = vrot.lane.b32.xlu0 %v816, 64
    %v841 = vpop.permute.xlu0 %840
    %v842 = vrot.slane %v841, 2
    %v844 = vxor.u32 %v842, 2147483648
    %v845 = vmul.f32 %v844, 1.442695
    %v846 = vpow.pop %v845
    %v847 = vadd.f32 %v846, 1.0
    %v848 = vrcp.pop %v847
    %v849 = vmul.f32 %v847, %v848
    %v850 = vsub.f32 1.0, %v849
    %v851 = vmul.f32 %v848, %v850
    %v852 = vadd.f32 %v848, %v851
    %vm853 = vweird.f32 %v847
    %vm854 = vweird.f32 %v848
    %vm855 = vmor %vm853, %vm854
    %v856 = vsel %vm855, %v848, %v852
    %v857 = vand.u32 2147483647, %v847
    %vm858 = vcmp.eq.f32.partialorder %v857, 8.507059e+37
    %v859 = vand.u32 %v847, 2147483648
    %v860 = vor.u32 1.1754944e-38, %v859
    %v861 = vsel %vm858, %v860, %v856
    %v862 = vmul.f32 1.0, %v861
    %v863 = vmul.f32 %v835, %v649
    %v864 = vmul.f32 %v835, %v839
    %866 = vrot.lane.b32.xlu0 %v864, 64
    %v867 = vpop.permute.xlu0 %866
    %v869 = vadd.f32 %v863, %v867
    %v870 = vtanh.pop %v869
    %872 = vrot.lane.b32.xlu0 %v870, 64
    %v873 = vpop.permute.xlu0 %872
    %v875 = vmul.f32 %v862, %v873
    %s876 = scalar_lea.vmem [#allocation3], 12
    %877 = vst.msk [vmem:[%s876] sm:$0x3] %vm549, %v875
    %v879 = vsel %vm440, %v765, 0
    %881 = vmatpush.msra.mxu0 0.0
    %882 = vmatpush.msra.mxu0 0.0
    %883 = vmatpush.msra.mxu0 0.0
    %884 = vmatpush.msra.mxu0 0.0
    %885 = vmatpush.msra.mxu0 0.0
    %886 = vmatpush.msra.mxu0 0.0
    %887 = vmatpush.msra.mxu0 0.0
    %888 = vmatpush.msra.mxu0 0.0
    %889 = vmatpush.msra.mxu0 %v422
    %890 = vmatpush.msra.mxu0 %v420
    %891 = vmatpush.msra.mxu0 %v418
    %892 = vmatpush.msra.mxu0 %v416
    %893 = vmatpush.msra.mxu0 %v414
    %894 = vmatpush.msra.mxu0 %v412
    %895 = vmatpush.msra.mxu0 %v410
    %896 = vmatpush.msra.mxu0 %v408
    %897 = vmatmul.f32.gmra.mxu0 %v879
    %v898 = vpop.f32.mrf.mxu0
    %v899 = vadd.f32 0.0, %v898
    %900 = vdwg.mxu0
    %901 = vmatpush.msra.mxu0 0.0
    %902 = vmatpush.msra.mxu0 0.0
    %903 = vmatpush.msra.mxu0 0.0
    %904 = vmatpush.msra.mxu0 0.0
    %905 = vmatpush.msra.mxu0 0.0
    %906 = vmatpush.msra.mxu0 0.0
    %907 = vmatpush.msra.mxu0 0.0
    %908 = vmatpush.msra.mxu0 0.0
    %909 = vmatpush.msra.mxu0 %v423
    %910 = vmatpush.msra.mxu0 %v421
    %911 = vmatpush.msra.mxu0 %v419
    %912 = vmatpush.msra.mxu0 %v417
    %913 = vmatpush.msra.mxu0 %v415
    %914 = vmatpush.msra.mxu0 %v413
    %915 = vmatpush.msra.mxu0 %v411
    %916 = vmatpush.msra.mxu0 %v409
    %917 = vmatmul.f32.gmra.mxu0 %v879
    %v918 = vpop.f32.mrf.mxu0
    %v919 = vadd.f32 0.0, %v918
    %920 = vdwg.mxu0
    %v923 = vrot.slane %v919, 6
    %v924 = vsel %vm269, %v899, %v923
    %v926 = vadd.f32 %v276, %v924
    %v927 = vxor.u32 %v926, 2147483648
    %v928 = vmul.f32 %v927, 1.442695
    %v929 = vpow.pop %v928
    %v930 = vadd.f32 %v929, 1.0
    %v931 = vrcp.pop %v930
    %v932 = vmul.f32 %v930, %v931
    %v933 = vsub.f32 1.0, %v932
    %v934 = vmul.f32 %v931, %v933
    %v935 = vadd.f32 %v931, %v934
    %vm936 = vweird.f32 %v930
    %vm937 = vweird.f32 %v931
    %vm938 = vmor %vm936, %vm937
    %v939 = vsel %vm938, %v931, %v935
    %v940 = vand.u32 2147483647, %v930
    %vm941 = vcmp.eq.f32.partialorder %v940, 8.507059e+37
    %v942 = vand.u32 %v930, 2147483648
    %v943 = vor.u32 1.1754944e-38, %v942
    %v944 = vsel %vm941, %v943, %v939
    %v945 = vmul.f32 1.0, %v944
    %v947 = vrot.slane %v926, 2
    %v949 = vtanh.pop %v947
    %950 = vrot.lane.b32.xlu0 %v926, 64
    %v951 = vpop.permute.xlu0 %950
    %v952 = vrot.slane %v951, 2
    %v954 = vxor.u32 %v952, 2147483648
    %v955 = vmul.f32 %v954, 1.442695
    %v956 = vpow.pop %v955
    %v957 = vadd.f32 %v956, 1.0
    %v958 = vrcp.pop %v957
    %v959 = vmul.f32 %v957, %v958
    %v960 = vsub.f32 1.0, %v959
    %v961 = vmul.f32 %v958, %v960
    %v962 = vadd.f32 %v958, %v961
    %vm963 = vweird.f32 %v957
    %vm964 = vweird.f32 %v958
    %vm965 = vmor %vm963, %vm964
    %v966 = vsel %vm965, %v958, %v962
    %v967 = vand.u32 2147483647, %v957
    %vm968 = vcmp.eq.f32.partialorder %v967, 8.507059e+37
    %v969 = vand.u32 %v957, 2147483648
    %v970 = vor.u32 1.1754944e-38, %v969
    %v971 = vsel %vm968, %v970, %v966
    %v972 = vmul.f32 1.0, %v971
    %v973 = vmul.f32 %v945, %v759
    %v974 = vmul.f32 %v945, %v949
    %976 = vrot.lane.b32.xlu0 %v974, 64
    %v977 = vpop.permute.xlu0 %976
    %v979 = vadd.f32 %v973, %v977
    %v980 = vtanh.pop %v979
    %982 = vrot.lane.b32.xlu0 %v980, 64
    %v983 = vpop.permute.xlu0 %982
    %v985 = vmul.f32 %v972, %v983
    %s986 = scalar_lea.vmem [#allocation2], 4
    %987 = vst.msk [vmem:[%s986] sm:$0x3] %vm549, %v985
    %v989 = vsel %vm440, %v875, 0
    %991 = vmatpush.msra.mxu0 0.0
    %992 = vmatpush.msra.mxu0 0.0
    %993 = vmatpush.msra.mxu0 0.0
    %994 = vmatpush.msra.mxu0 0.0
    %995 = vmatpush.msra.mxu0 0.0
    %996 = vmatpush.msra.mxu0 0.0
    %997 = vmatpush.msra.mxu0 0.0
    %998 = vmatpush.msra.mxu0 0.0
    %999 = vmatpush.msra.mxu0 %v438
    %1000 = vmatpush.msra.mxu0 %v436
    %1001 = vmatpush.msra.mxu0 %v434
    %1002 = vmatpush.msra.mxu0 %v432
    %1003 = vmatpush.msra.mxu0 %v430
    %1004 = vmatpush.msra.mxu0 %v428
    %1005 = vmatpush.msra.mxu0 %v426
    %1006 = vmatpush.msra.mxu0 %v424
    %1007 = vmatmul.f32.gmra.mxu0 %v989
    %v1008 = vpop.f32.mrf.mxu0
    %v1009 = vadd.f32 0.0, %v1008
    %1010 = vdwg.mxu0
    %1011 = vmatpush.msra.mxu0 0.0
    %1012 = vmatpush.msra.mxu0 0.0
    %1013 = vmatpush.msra.mxu0 0.0
    %1014 = vmatpush.msra.mxu0 0.0
    %1015 = vmatpush.msra.mxu0 0.0
    %1016 = vmatpush.msra.mxu0 0.0
    %1017 = vmatpush.msra.mxu0 0.0
    %1018 = vmatpush.msra.mxu0 0.0
    %1019 = vmatpush.msra.mxu0 %v439
    %1020 = vmatpush.msra.mxu0 %v437
    %1021 = vmatpush.msra.mxu0 %v435
    %1022 = vmatpush.msra.mxu0 %v433
    %1023 = vmatpush.msra.mxu0 %v431
    %1024 = vmatpush.msra.mxu0 %v429
    %1025 = vmatpush.msra.mxu0 %v427
    %1026 = vmatpush.msra.mxu0 %v425
    %1027 = vmatmul.f32.gmra.mxu0 %v989
    %v1028 = vpop.f32.mrf.mxu0
    %v1029 = vadd.f32 0.0, %v1028
    %1030 = vdwg.mxu0
    %v1033 = vrot.slane %v1029, 6
    %v1034 = vsel %vm269, %v1009, %v1033
    %v1036 = vadd.f32 %v395, %v1034
    %v1037 = vxor.u32 %v1036, 2147483648
    %v1038 = vmul.f32 %v1037, 1.442695
    %v1039 = vpow.pop %v1038
    %v1040 = vadd.f32 %v1039, 1.0
    %v1041 = vrcp.pop %v1040
    %v1042 = vmul.f32 %v1040, %v1041
    %v1043 = vsub.f32 1.0, %v1042
    %v1044 = vmul.f32 %v1041, %v1043
    %v1045 = vadd.f32 %v1041, %v1044
    %vm1046 = vweird.f32 %v1040
    %vm1047 = vweird.f32 %v1041
    %vm1048 = vmor %vm1046, %vm1047
    %v1049 = vsel %vm1048, %v1041, %v1045
    %v1050 = vand.u32 2147483647, %v1040
    %vm1051 = vcmp.eq.f32.partialorder %v1050, 8.507059e+37
    %v1052 = vand.u32 %v1040, 2147483648
    %v1053 = vor.u32 1.1754944e-38, %v1052
    %v1054 = vsel %vm1051, %v1053, %v1049
    %v1055 = vmul.f32 1.0, %v1054
    %v1057 = vrot.slane %v1036, 2
    %v1059 = vtanh.pop %v1057
    %1060 = vrot.lane.b32.xlu0 %v1036, 64
    %v1061 = vpop.permute.xlu0 %1060
    %v1062 = vrot.slane %v1061, 2
    %v1064 = vxor.u32 %v1062, 2147483648
    %v1065 = vmul.f32 %v1064, 1.442695
    %v1066 = vpow.pop %v1065
    %v1067 = vadd.f32 %v1066, 1.0
    %v1068 = vrcp.pop %v1067
    %v1069 = vmul.f32 %v1067, %v1068
    %v1070 = vsub.f32 1.0, %v1069
    %v1071 = vmul.f32 %v1068, %v1070
    %v1072 = vadd.f32 %v1068, %v1071
    %vm1073 = vweird.f32 %v1067
    %vm1074 = vweird.f32 %v1068
    %vm1075 = vmor %vm1073, %vm1074
    %v1076 = vsel %vm1075, %v1068, %v1072
    %v1077 = vand.u32 2147483647, %v1067
    %vm1078 = vcmp.eq.f32.partialorder %v1077, 8.507059e+37
    %v1079 = vand.u32 %v1067, 2147483648
    %v1080 = vor.u32 1.1754944e-38, %v1079
    %v1081 = vsel %vm1078, %v1080, %v1076
    %v1082 = vmul.f32 1.0, %v1081
    %v1083 = vmul.f32 %v1055, %v869
    %v1084 = vmul.f32 %v1055, %v1059
    %1086 = vrot.lane.b32.xlu0 %v1084, 64
    %v1087 = vpop.permute.xlu0 %1086
    %v1089 = vadd.f32 %v1083, %v1087
    %v1090 = vtanh.pop %v1089
    %1092 = vrot.lane.b32.xlu0 %v1090, 64
    %v1093 = vpop.permute.xlu0 %1092
    %v1095 = vmul.f32 %v1082, %v1093
    %s1096 = scalar_lea.vmem [#allocation3], 10
    %1097 = vst.msk [vmem:[%s1096] sm:$0x3] %vm549, %v1095
    %v1099 = vsel %vm440, %v985, 0
    %1101 = vmatpush.msra.mxu0 0.0
    %1102 = vmatpush.msra.mxu0 0.0
    %1103 = vmatpush.msra.mxu0 0.0
    %1104 = vmatpush.msra.mxu0 0.0
    %1105 = vmatpush.msra.mxu0 0.0
    %1106 = vmatpush.msra.mxu0 0.0
    %1107 = vmatpush.msra.mxu0 0.0
    %1108 = vmatpush.msra.mxu0 0.0
    %1109 = vmatpush.msra.mxu0 %v422
    %1110 = vmatpush.msra.mxu0 %v420
    %1111 = vmatpush.msra.mxu0 %v418
    %1112 = vmatpush.msra.mxu0 %v416
    %1113 = vmatpush.msra.mxu0 %v414
    %1114 = vmatpush.msra.mxu0 %v412
    %1115 = vmatpush.msra.mxu0 %v410
    %1116 = vmatpush.msra.mxu0 %v408
    %1117 = vmatmul.f32.gmra.mxu0 %v1099
    %v1118 = vpop.f32.mrf.mxu0
    %v1119 = vadd.f32 0.0, %v1118
    %1120 = vdwg.mxu0
    %1121 = vmatpush.msra.mxu0 0.0
    %1122 = vmatpush.msra.mxu0 0.0
    %1123 = vmatpush.msra.mxu0 0.0
    %1124 = vmatpush.msra.mxu0 0.0
    %1125 = vmatpush.msra.mxu0 0.0
    %1126 = vmatpush.msra.mxu0 0.0
    %1127 = vmatpush.msra.mxu0 0.0
    %1128 = vmatpush.msra.mxu0 0.0
    %1129 = vmatpush.msra.mxu0 %v423
    %1130 = vmatpush.msra.mxu0 %v421
    %1131 = vmatpush.msra.mxu0 %v419
    %1132 = vmatpush.msra.mxu0 %v417
    %1133 = vmatpush.msra.mxu0 %v415
    %1134 = vmatpush.msra.mxu0 %v413
    %1135 = vmatpush.msra.mxu0 %v411
    %1136 = vmatpush.msra.mxu0 %v409
    %1137 = vmatmul.f32.gmra.mxu0 %v1099
    %v1138 = vpop.f32.mrf.mxu0
    %v1139 = vadd.f32 0.0, %v1138
    %1140 = vdwg.mxu0
    %v1143 = vrot.slane %v1139, 6
    %v1144 = vsel %vm269, %v1119, %v1143
    %v1146 = vadd.f32 %v279, %v1144
    %v1147 = vxor.u32 %v1146, 2147483648
    %v1148 = vmul.f32 %v1147, 1.442695
    %v1149 = vpow.pop %v1148
    %v1150 = vadd.f32 %v1149, 1.0
    %v1151 = vrcp.pop %v1150
    %v1152 = vmul.f32 %v1150, %v1151
    %v1153 = vsub.f32 1.0, %v1152
    %v1154 = vmul.f32 %v1151, %v1153
    %v1155 = vadd.f32 %v1151, %v1154
    %vm1156 = vweird.f32 %v1150
    %vm1157 = vweird.f32 %v1151
    %vm1158 = vmor %vm1156, %vm1157
    %v1159 = vsel %vm1158, %v1151, %v1155
    %v1160 = vand.u32 2147483647, %v1150
    %vm1161 = vcmp.eq.f32.partialorder %v1160, 8.507059e+37
    %v1162 = vand.u32 %v1150, 2147483648
    %v1163 = vor.u32 1.1754944e-38, %v1162
    %v1164 = vsel %vm1161, %v1163, %v1159
    %v1165 = vmul.f32 1.0, %v1164
    %v1167 = vrot.slane %v1146, 2
    %v1169 = vtanh.pop %v1167
    %1170 = vrot.lane.b32.xlu0 %v1146, 64
    %v1171 = vpop.permute.xlu0 %1170
    %v1172 = vrot.slane %v1171, 2
    %v1174 = vxor.u32 %v1172, 2147483648
    %v1175 = vmul.f32 %v1174, 1.442695
    %v1176 = vpow.pop %v1175
    %v1177 = vadd.f32 %v1176, 1.0
    %v1178 = vrcp.pop %v1177
    %v1179 = vmul.f32 %v1177, %v1178
    %v1180 = vsub.f32 1.0, %v1179
    %v1181 = vmul.f32 %v1178, %v1180
    %v1182 = vadd.f32 %v1178, %v1181
    %vm1183 = vweird.f32 %v1177
    %vm1184 = vweird.f32 %v1178
    %vm1185 = vmor %vm1183, %vm1184
    %v1186 = vsel %vm1185, %v1178, %v1182
    %v1187 = vand.u32 2147483647, %v1177
    %vm1188 = vcmp.eq.f32.partialorder %v1187, 8.507059e+37
    %v1189 = vand.u32 %v1177, 2147483648
    %v1190 = vor.u32 1.1754944e-38, %v1189
    %v1191 = vsel %vm1188, %v1190, %v1186
    %v1192 = vmul.f32 1.0, %v1191
    %v1193 = vmul.f32 %v1165, %v979
    %v1194 = vmul.f32 %v1165, %v1169
    %1196 = vrot.lane.b32.xlu0 %v1194, 64
    %v1197 = vpop.permute.xlu0 %1196
    %v1199 = vadd.f32 %v1193, %v1197
    %v1200 = vtanh.pop %v1199
    %1202 = vrot.lane.b32.xlu0 %v1200, 64
    %v1203 = vpop.permute.xlu0 %1202
    %v1205 = vmul.f32 %v1192, %v1203
    %s1206 = scalar_lea.vmem [#allocation2], 6
    %1207 = vst.msk [vmem:[%s1206] sm:$0x3] %vm549, %v1205
    %v1209 = vsel %vm440, %v1095, 0
    %1211 = vmatpush.msra.mxu0 0.0
    %1212 = vmatpush.msra.mxu0 0.0
    %1213 = vmatpush.msra.mxu0 0.0
    %1214 = vmatpush.msra.mxu0 0.0
    %1215 = vmatpush.msra.mxu0 0.0
    %1216 = vmatpush.msra.mxu0 0.0
    %1217 = vmatpush.msra.mxu0 0.0
    %1218 = vmatpush.msra.mxu0 0.0
    %1219 = vmatpush.msra.mxu0 %v438
    %1220 = vmatpush.msra.mxu0 %v436
    %1221 = vmatpush.msra.mxu0 %v434
    %1222 = vmatpush.msra.mxu0 %v432
    %1223 = vmatpush.msra.mxu0 %v430
    %1224 = vmatpush.msra.mxu0 %v428
    %1225 = vmatpush.msra.mxu0 %v426
    %1226 = vmatpush.msra.mxu0 %v424
    %1227 = vmatmul.f32.gmra.mxu0 %v1209
    %v1228 = vpop.f32.mrf.mxu0
    %v1229 = vadd.f32 0.0, %v1228
    %1230 = vdwg.mxu0
    %1231 = vmatpush.msra.mxu0 0.0
    %1232 = vmatpush.msra.mxu0 0.0
    %1233 = vmatpush.msra.mxu0 0.0
    %1234 = vmatpush.msra.mxu0 0.0
    %1235 = vmatpush.msra.mxu0 0.0
    %1236 = vmatpush.msra.mxu0 0.0
    %1237 = vmatpush.msra.mxu0 0.0
    %1238 = vmatpush.msra.mxu0 0.0
    %1239 = vmatpush.msra.mxu0 %v439
    %1240 = vmatpush.msra.mxu0 %v437
    %1241 = vmatpush.msra.mxu0 %v435
    %1242 = vmatpush.msra.mxu0 %v433
    %1243 = vmatpush.msra.mxu0 %v431
    %1244 = vmatpush.msra.mxu0 %v429
    %1245 = vmatpush.msra.mxu0 %v427
    %1246 = vmatpush.msra.mxu0 %v425
    %1247 = vmatmul.f32.gmra.mxu0 %v1209
    %v1248 = vpop.f32.mrf.mxu0
    %v1249 = vadd.f32 0.0, %v1248
    %1250 = vdwg.mxu0
    %v1253 = vrot.slane %v1249, 6
    %v1254 = vsel %vm269, %v1229, %v1253
    %v1256 = vadd.f32 %v393, %v1254
    %v1257 = vxor.u32 %v1256, 2147483648
    %v1258 = vmul.f32 %v1257, 1.442695
    %v1259 = vpow.pop %v1258
    %v1260 = vadd.f32 %v1259, 1.0
    %v1261 = vrcp.pop %v1260
    %v1262 = vmul.f32 %v1260, %v1261
    %v1263 = vsub.f32 1.0, %v1262
    %v1264 = vmul.f32 %v1261, %v1263
    %v1265 = vadd.f32 %v1261, %v1264
    %vm1266 = vweird.f32 %v1260
    %vm1267 = vweird.f32 %v1261
    %vm1268 = vmor %vm1266, %vm1267
    %v1269 = vsel %vm1268, %v1261, %v1265
    %v1270 = vand.u32 2147483647, %v1260
    %vm1271 = vcmp.eq.f32.partialorder %v1270, 8.507059e+37
    %v1272 = vand.u32 %v1260, 2147483648
    %v1273 = vor.u32 1.1754944e-38, %v1272
    %v1274 = vsel %vm1271, %v1273, %v1269
    %v1275 = vmul.f32 1.0, %v1274
    %v1277 = vrot.slane %v1256, 2
    %v1279 = vtanh.pop %v1277
    %1280 = vrot.lane.b32.xlu0 %v1256, 64
    %v1281 = vpop.permute.xlu0 %1280
    %v1282 = vrot.slane %v1281, 2
    %v1284 = vxor.u32 %v1282, 2147483648
    %v1285 = vmul.f32 %v1284, 1.442695
    %v1286 = vpow.pop %v1285
    %v1287 = vadd.f32 %v1286, 1.0
    %v1288 = vrcp.pop %v1287
    %v1289 = vmul.f32 %v1287, %v1288
    %v1290 = vsub.f32 1.0, %v1289
    %v1291 = vmul.f32 %v1288, %v1290
    %v1292 = vadd.f32 %v1288, %v1291
    %vm1293 = vweird.f32 %v1287
    %vm1294 = vweird.f32 %v1288
    %vm1295 = vmor %vm1293, %vm1294
    %v1296 = vsel %vm1295, %v1288, %v1292
    %v1297 = vand.u32 2147483647, %v1287
    %vm1298 = vcmp.eq.f32.partialorder %v1297, 8.507059e+37
    %v1299 = vand.u32 %v1287, 2147483648
    %v1300 = vor.u32 1.1754944e-38, %v1299
    %v1301 = vsel %vm1298, %v1300, %v1296
    %v1302 = vmul.f32 1.0, %v1301
    %v1303 = vmul.f32 %v1275, %v1089
    %v1304 = vmul.f32 %v1275, %v1279
    %1306 = vrot.lane.b32.xlu0 %v1304, 64
    %v1307 = vpop.permute.xlu0 %1306
    %v1309 = vadd.f32 %v1303, %v1307
    %v1310 = vtanh.pop %v1309
    %1312 = vrot.lane.b32.xlu0 %v1310, 64
    %v1313 = vpop.permute.xlu0 %1312
    %v1315 = vmul.f32 %v1302, %v1313
    %s1316 = scalar_lea.vmem [#allocation3], 8
    %1317 = vst.msk [vmem:[%s1316] sm:$0x3] %vm549, %v1315
    %v1319 = vsel %vm440, %v1205, 0
    %1321 = vmatpush.msra.mxu0 0.0
    %1322 = vmatpush.msra.mxu0 0.0
    %1323 = vmatpush.msra.mxu0 0.0
    %1324 = vmatpush.msra.mxu0 0.0
    %1325 = vmatpush.msra.mxu0 0.0
    %1326 = vmatpush.msra.mxu0 0.0
    %1327 = vmatpush.msra.mxu0 0.0
    %1328 = vmatpush.msra.mxu0 0.0
    %1329 = vmatpush.msra.mxu0 %v422
    %1330 = vmatpush.msra.mxu0 %v420
    %1331 = vmatpush.msra.mxu0 %v418
    %1332 = vmatpush.msra.mxu0 %v416
    %1333 = vmatpush.msra.mxu0 %v414
    %1334 = vmatpush.msra.mxu0 %v412
    %1335 = vmatpush.msra.mxu0 %v410
    %1336 = vmatpush.msra.mxu0 %v408
    %1337 = vmatmul.f32.gmra.mxu0 %v1319
    %v1338 = vpop.f32.mrf.mxu0
    %v1339 = vadd.f32 0.0, %v1338
    %1340 = vdwg.mxu0
    %1341 = vmatpush.msra.mxu0 0.0
    %1342 = vmatpush.msra.mxu0 0.0
    %1343 = vmatpush.msra.mxu0 0.0
    %1344 = vmatpush.msra.mxu0 0.0
    %1345 = vmatpush.msra.mxu0 0.0
    %1346 = vmatpush.msra.mxu0 0.0
    %1347 = vmatpush.msra.mxu0 0.0
    %1348 = vmatpush.msra.mxu0 0.0
    %1349 = vmatpush.msra.mxu0 %v423
    %1350 = vmatpush.msra.mxu0 %v421
    %1351 = vmatpush.msra.mxu0 %v419
    %1352 = vmatpush.msra.mxu0 %v417
    %1353 = vmatpush.msra.mxu0 %v415
    %1354 = vmatpush.msra.mxu0 %v413
    %1355 = vmatpush.msra.mxu0 %v411
    %1356 = vmatpush.msra.mxu0 %v409
    %1357 = vmatmul.f32.gmra.mxu0 %v1319
    %v1358 = vpop.f32.mrf.mxu0
    %v1359 = vadd.f32 0.0, %v1358
    %1360 = vdwg.mxu0
    %v1363 = vrot.slane %v1359, 6
    %v1364 = vsel %vm269, %v1339, %v1363
    %v1366 = vadd.f32 %v280, %v1364
    %v1367 = vxor.u32 %v1366, 2147483648
    %v1368 = vmul.f32 %v1367, 1.442695
    %v1369 = vpow.pop %v1368
    %v1370 = vadd.f32 %v1369, 1.0
    %v1371 = vrcp.pop %v1370
    %v1372 = vmul.f32 %v1370, %v1371
    %v1373 = vsub.f32 1.0, %v1372
    %v1374 = vmul.f32 %v1371, %v1373
    %v1375 = vadd.f32 %v1371, %v1374
    %vm1376 = vweird.f32 %v1370
    %vm1377 = vweird.f32 %v1371
    %vm1378 = vmor %vm1376, %vm1377
    %v1379 = vsel %vm1378, %v1371, %v1375
    %v1380 = vand.u32 2147483647, %v1370
    %vm1381 = vcmp.eq.f32.partialorder %v1380, 8.507059e+37
    %v1382 = vand.u32 %v1370, 2147483648
    %v1383 = vor.u32 1.1754944e-38, %v1382
    %v1384 = vsel %vm1381, %v1383, %v1379
    %v1385 = vmul.f32 1.0, %v1384
    %v1387 = vrot.slane %v1366, 2
    %v1389 = vtanh.pop %v1387
    %1390 = vrot.lane.b32.xlu0 %v1366, 64
    %v1391 = vpop.permute.xlu0 %1390
    %v1392 = vrot.slane %v1391, 2
    %v1394 = vxor.u32 %v1392, 2147483648
    %v1395 = vmul.f32 %v1394, 1.442695
    %v1396 = vpow.pop %v1395
    %v1397 = vadd.f32 %v1396, 1.0
    %v1398 = vrcp.pop %v1397
    %v1399 = vmul.f32 %v1397, %v1398
    %v1400 = vsub.f32 1.0, %v1399
    %v1401 = vmul.f32 %v1398, %v1400
    %v1402 = vadd.f32 %v1398, %v1401
    %vm1403 = vweird.f32 %v1397
    %vm1404 = vweird.f32 %v1398
    %vm1405 = vmor %vm1403, %vm1404
    %v1406 = vsel %vm1405, %v1398, %v1402
    %v1407 = vand.u32 2147483647, %v1397
    %vm1408 = vcmp.eq.f32.partialorder %v1407, 8.507059e+37
    %v1409 = vand.u32 %v1397, 2147483648
    %v1410 = vor.u32 1.1754944e-38, %v1409
    %v1411 = vsel %vm1408, %v1410, %v1406
    %v1412 = vmul.f32 1.0, %v1411
    %v1413 = vmul.f32 %v1385, %v1199
    %v1414 = vmul.f32 %v1385, %v1389
    %1416 = vrot.lane.b32.xlu0 %v1414, 64
    %v1417 = vpop.permute.xlu0 %1416
    %v1419 = vadd.f32 %v1413, %v1417
    %v1420 = vtanh.pop %v1419
    %1422 = vrot.lane.b32.xlu0 %v1420, 64
    %v1423 = vpop.permute.xlu0 %1422
    %v1425 = vmul.f32 %v1412, %v1423
    %s1426 = scalar_lea.vmem [#allocation2], 8
    %1427 = vst.msk [vmem:[%s1426] sm:$0x3] %vm549, %v1425
    %v1429 = vsel %vm440, %v1315, 0
    %1431 = vmatpush.msra.mxu0 0.0
    %1432 = vmatpush.msra.mxu0 0.0
    %1433 = vmatpush.msra.mxu0 0.0
    %1434 = vmatpush.msra.mxu0 0.0
    %1435 = vmatpush.msra.mxu0 0.0
    %1436 = vmatpush.msra.mxu0 0.0
    %1437 = vmatpush.msra.mxu0 0.0
    %1438 = vmatpush.msra.mxu0 0.0
    %1439 = vmatpush.msra.mxu0 %v438
    %1440 = vmatpush.msra.mxu0 %v436
    %1441 = vmatpush.msra.mxu0 %v434
    %1442 = vmatpush.msra.mxu0 %v432
    %1443 = vmatpush.msra.mxu0 %v430
    %1444 = vmatpush.msra.mxu0 %v428
    %1445 = vmatpush.msra.mxu0 %v426
    %1446 = vmatpush.msra.mxu0 %v424
    %1447 = vmatmul.f32.gmra.mxu0 %v1429
    %v1448 = vpop.f32.mrf.mxu0
    %v1449 = vadd.f32 0.0, %v1448
    %1450 = vdwg.mxu0
    %1451 = vmatpush.msra.mxu0 0.0
    %1452 = vmatpush.msra.mxu0 0.0
    %1453 = vmatpush.msra.mxu0 0.0
    %1454 = vmatpush.msra.mxu0 0.0
    %1455 = vmatpush.msra.mxu0 0.0
    %1456 = vmatpush.msra.mxu0 0.0
    %1457 = vmatpush.msra.mxu0 0.0
    %1458 = vmatpush.msra.mxu0 0.0
    %1459 = vmatpush.msra.mxu0 %v439
    %1460 = vmatpush.msra.mxu0 %v437
    %1461 = vmatpush.msra.mxu0 %v435
    %1462 = vmatpush.msra.mxu0 %v433
    %1463 = vmatpush.msra.mxu0 %v431
    %1464 = vmatpush.msra.mxu0 %v429
    %1465 = vmatpush.msra.mxu0 %v427
    %1466 = vmatpush.msra.mxu0 %v425
    %1467 = vmatmul.f32.gmra.mxu0 %v1429
    %v1468 = vpop.f32.mrf.mxu0
    %v1469 = vadd.f32 0.0, %v1468
    %1470 = vdwg.mxu0
    %v1473 = vrot.slane %v1469, 6
    %v1474 = vsel %vm269, %v1449, %v1473
    %v1476 = vadd.f32 %v392, %v1474
    %v1477 = vxor.u32 %v1476, 2147483648
    %v1478 = vmul.f32 %v1477, 1.442695
    %v1479 = vpow.pop %v1478
    %v1480 = vadd.f32 %v1479, 1.0
    %v1481 = vrcp.pop %v1480
    %v1482 = vmul.f32 %v1480, %v1481
    %v1483 = vsub.f32 1.0, %v1482
    %v1484 = vmul.f32 %v1481, %v1483
    %v1485 = vadd.f32 %v1481, %v1484
    %vm1486 = vweird.f32 %v1480
    %vm1487 = vweird.f32 %v1481
    %vm1488 = vmor %vm1486, %vm1487
    %v1489 = vsel %vm1488, %v1481, %v1485
    %v1490 = vand.u32 2147483647, %v1480
    %vm1491 = vcmp.eq.f32.partialorder %v1490, 8.507059e+37
    %v1492 = vand.u32 %v1480, 2147483648
    %v1493 = vor.u32 1.1754944e-38, %v1492
    %v1494 = vsel %vm1491, %v1493, %v1489
    %v1495 = vmul.f32 1.0, %v1494
    %v1497 = vrot.slane %v1476, 2
    %v1499 = vtanh.pop %v1497
    %1500 = vrot.lane.b32.xlu0 %v1476, 64
    %v1501 = vpop.permute.xlu0 %1500
    %v1502 = vrot.slane %v1501, 2
    %v1504 = vxor.u32 %v1502, 2147483648
    %v1505 = vmul.f32 %v1504, 1.442695
    %v1506 = vpow.pop %v1505
    %v1507 = vadd.f32 %v1506, 1.0
    %v1508 = vrcp.pop %v1507
    %v1509 = vmul.f32 %v1507, %v1508
    %v1510 = vsub.f32 1.0, %v1509
    %v1511 = vmul.f32 %v1508, %v1510
    %v1512 = vadd.f32 %v1508, %v1511
    %vm1513 = vweird.f32 %v1507
    %vm1514 = vweird.f32 %v1508
    %vm1515 = vmor %vm1513, %vm1514
    %v1516 = vsel %vm1515, %v1508, %v1512
    %v1517 = vand.u32 2147483647, %v1507
    %vm1518 = vcmp.eq.f32.partialorder %v1517, 8.507059e+37
    %v1519 = vand.u32 %v1507, 2147483648
    %v1520 = vor.u32 1.1754944e-38, %v1519
    %v1521 = vsel %vm1518, %v1520, %v1516
    %v1522 = vmul.f32 1.0, %v1521
    %v1523 = vmul.f32 %v1495, %v1309
    %v1524 = vmul.f32 %v1495, %v1499
    %1526 = vrot.lane.b32.xlu0 %v1524, 64
    %v1527 = vpop.permute.xlu0 %1526
    %v1529 = vadd.f32 %v1523, %v1527
    %v1530 = vtanh.pop %v1529
    %1532 = vrot.lane.b32.xlu0 %v1530, 64
    %v1533 = vpop.permute.xlu0 %1532
    %v1535 = vmul.f32 %v1522, %v1533
    %s1536 = scalar_lea.vmem [#allocation3], 6
    %1537 = vst.msk [vmem:[%s1536] sm:$0x3] %vm549, %v1535
    %v1539 = vsel %vm440, %v1425, 0
    %1541 = vmatpush.msra.mxu0 0.0
    %1542 = vmatpush.msra.mxu0 0.0
    %1543 = vmatpush.msra.mxu0 0.0
    %1544 = vmatpush.msra.mxu0 0.0
    %1545 = vmatpush.msra.mxu0 0.0
    %1546 = vmatpush.msra.mxu0 0.0
    %1547 = vmatpush.msra.mxu0 0.0
    %1548 = vmatpush.msra.mxu0 0.0
    %1549 = vmatpush.msra.mxu0 %v422
    %1550 = vmatpush.msra.mxu0 %v420
    %1551 = vmatpush.msra.mxu0 %v418
    %1552 = vmatpush.msra.mxu0 %v416
    %1553 = vmatpush.msra.mxu0 %v414
    %1554 = vmatpush.msra.mxu0 %v412
    %1555 = vmatpush.msra.mxu0 %v410
    %1556 = vmatpush.msra.mxu0 %v408
    %1557 = vmatmul.f32.gmra.mxu0 %v1539
    %v1558 = vpop.f32.mrf.mxu0
    %v1559 = vadd.f32 0.0, %v1558
    %1560 = vdwg.mxu0
    %1561 = vmatpush.msra.mxu0 0.0
    %1562 = vmatpush.msra.mxu0 0.0
    %1563 = vmatpush.msra.mxu0 0.0
    %1564 = vmatpush.msra.mxu0 0.0
    %1565 = vmatpush.msra.mxu0 0.0
    %1566 = vmatpush.msra.mxu0 0.0
    %1567 = vmatpush.msra.mxu0 0.0
    %1568 = vmatpush.msra.mxu0 0.0
    %1569 = vmatpush.msra.mxu0 %v423
    %1570 = vmatpush.msra.mxu0 %v421
    %1571 = vmatpush.msra.mxu0 %v419
    %1572 = vmatpush.msra.mxu0 %v417
    %1573 = vmatpush.msra.mxu0 %v415
    %1574 = vmatpush.msra.mxu0 %v413
    %1575 = vmatpush.msra.mxu0 %v411
    %1576 = vmatpush.msra.mxu0 %v409
    %1577 = vmatmul.f32.gmra.mxu0 %v1539
    %v1578 = vpop.f32.mrf.mxu0
    %v1579 = vadd.f32 0.0, %v1578
    %1580 = vdwg.mxu0
    %v1583 = vrot.slane %v1579, 6
    %v1584 = vsel %vm269, %v1559, %v1583
    %v1586 = vadd.f32 %v282, %v1584
    %v1587 = vxor.u32 %v1586, 2147483648
    %v1588 = vmul.f32 %v1587, 1.442695
    %v1589 = vpow.pop %v1588
    %v1590 = vadd.f32 %v1589, 1.0
    %v1591 = vrcp.pop %v1590
    %v1592 = vmul.f32 %v1590, %v1591
    %v1593 = vsub.f32 1.0, %v1592
    %v1594 = vmul.f32 %v1591, %v1593
    %v1595 = vadd.f32 %v1591, %v1594
    %vm1596 = vweird.f32 %v1590
    %vm1597 = vweird.f32 %v1591
    %vm1598 = vmor %vm1596, %vm1597
    %v1599 = vsel %vm1598, %v1591, %v1595
    %v1600 = vand.u32 2147483647, %v1590
    %vm1601 = vcmp.eq.f32.partialorder %v1600, 8.507059e+37
    %v1602 = vand.u32 %v1590, 2147483648
    %v1603 = vor.u32 1.1754944e-38, %v1602
    %v1604 = vsel %vm1601, %v1603, %v1599
    %v1605 = vmul.f32 1.0, %v1604
    %v1607 = vrot.slane %v1586, 2
    %v1609 = vtanh.pop %v1607
    %1610 = vrot.lane.b32.xlu0 %v1586, 64
    %v1611 = vpop.permute.xlu0 %1610
    %v1612 = vrot.slane %v1611, 2
    %v1614 = vxor.u32 %v1612, 2147483648
    %v1615 = vmul.f32 %v1614, 1.442695
    %v1616 = vpow.pop %v1615
    %v1617 = vadd.f32 %v1616, 1.0
    %v1618 = vrcp.pop %v1617
    %v1619 = vmul.f32 %v1617, %v1618
    %v1620 = vsub.f32 1.0, %v1619
    %v1621 = vmul.f32 %v1618, %v1620
    %v1622 = vadd.f32 %v1618, %v1621
    %vm1623 = vweird.f32 %v1617
    %vm1624 = vweird.f32 %v1618
    %vm1625 = vmor %vm1623, %vm1624
    %v1626 = vsel %vm1625, %v1618, %v1622
    %v1627 = vand.u32 2147483647, %v1617
    %vm1628 = vcmp.eq.f32.partialorder %v1627, 8.507059e+37
    %v1629 = vand.u32 %v1617, 2147483648
    %v1630 = vor.u32 1.1754944e-38, %v1629
    %v1631 = vsel %vm1628, %v1630, %v1626
    %v1632 = vmul.f32 1.0, %v1631
    %v1633 = vmul.f32 %v1605, %v1419
    %v1634 = vmul.f32 %v1605, %v1609
    %1636 = vrot.lane.b32.xlu0 %v1634, 64
    %v1637 = vpop.permute.xlu0 %1636
    %v1639 = vadd.f32 %v1633, %v1637
    %v1640 = vtanh.pop %v1639
    %1642 = vrot.lane.b32.xlu0 %v1640, 64
    %v1643 = vpop.permute.xlu0 %1642
    %v1645 = vmul.f32 %v1632, %v1643
    %s1646 = scalar_lea.vmem [#allocation2], 10
    %1647 = vst.msk [vmem:[%s1646] sm:$0x3] %vm549, %v1645
    %v1649 = vsel %vm440, %v1535, 0
    %1651 = vmatpush.msra.mxu0 0.0
    %1652 = vmatpush.msra.mxu0 0.0
    %1653 = vmatpush.msra.mxu0 0.0
    %1654 = vmatpush.msra.mxu0 0.0
    %1655 = vmatpush.msra.mxu0 0.0
    %1656 = vmatpush.msra.mxu0 0.0
    %1657 = vmatpush.msra.mxu0 0.0
    %1658 = vmatpush.msra.mxu0 0.0
    %1659 = vmatpush.msra.mxu0 %v438
    %1660 = vmatpush.msra.mxu0 %v436
    %1661 = vmatpush.msra.mxu0 %v434
    %1662 = vmatpush.msra.mxu0 %v432
    %1663 = vmatpush.msra.mxu0 %v430
    %1664 = vmatpush.msra.mxu0 %v428
    %1665 = vmatpush.msra.mxu0 %v426
    %1666 = vmatpush.msra.mxu0 %v424
    %1667 = vmatmul.f32.gmra.mxu0 %v1649
    %v1668 = vpop.f32.mrf.mxu0
    %v1669 = vadd.f32 0.0, %v1668
    %1670 = vdwg.mxu0
    %1671 = vmatpush.msra.mxu0 0.0
    %1672 = vmatpush.msra.mxu0 0.0
    %1673 = vmatpush.msra.mxu0 0.0
    %1674 = vmatpush.msra.mxu0 0.0
    %1675 = vmatpush.msra.mxu0 0.0
    %1676 = vmatpush.msra.mxu0 0.0
    %1677 = vmatpush.msra.mxu0 0.0
    %1678 = vmatpush.msra.mxu0 0.0
    %1679 = vmatpush.msra.mxu0 %v439
    %1680 = vmatpush.msra.mxu0 %v437
    %1681 = vmatpush.msra.mxu0 %v435
    %1682 = vmatpush.msra.mxu0 %v433
    %1683 = vmatpush.msra.mxu0 %v431
    %1684 = vmatpush.msra.mxu0 %v429
    %1685 = vmatpush.msra.mxu0 %v427
    %1686 = vmatpush.msra.mxu0 %v425
    %1687 = vmatmul.f32.gmra.mxu0 %v1649
    %v1688 = vpop.f32.mrf.mxu0
    %v1689 = vadd.f32 0.0, %v1688
    %1690 = vdwg.mxu0
    %v1693 = vrot.slane %v1689, 6
    %v1694 = vsel %vm269, %v1669, %v1693
    %v1696 = vadd.f32 %v390, %v1694
    %v1697 = vxor.u32 %v1696, 2147483648
    %v1698 = vmul.f32 %v1697, 1.442695
    %v1699 = vpow.pop %v1698
    %v1700 = vadd.f32 %v1699, 1.0
    %v1701 = vrcp.pop %v1700
    %v1702 = vmul.f32 %v1700, %v1701
    %v1703 = vsub.f32 1.0, %v1702
    %v1704 = vmul.f32 %v1701, %v1703
    %v1705 = vadd.f32 %v1701, %v1704
    %vm1706 = vweird.f32 %v1700
    %vm1707 = vweird.f32 %v1701
    %vm1708 = vmor %vm1706, %vm1707
    %v1709 = vsel %vm1708, %v1701, %v1705
    %v1710 = vand.u32 2147483647, %v1700
    %vm1711 = vcmp.eq.f32.partialorder %v1710, 8.507059e+37
    %v1712 = vand.u32 %v1700, 2147483648
    %v1713 = vor.u32 1.1754944e-38, %v1712
    %v1714 = vsel %vm1711, %v1713, %v1709
    %v1715 = vmul.f32 1.0, %v1714
    %v1717 = vrot.slane %v1696, 2
    %v1719 = vtanh.pop %v1717
    %1720 = vrot.lane.b32.xlu0 %v1696, 64
    %v1721 = vpop.permute.xlu0 %1720
    %v1722 = vrot.slane %v1721, 2
    %v1724 = vxor.u32 %v1722, 2147483648
    %v1725 = vmul.f32 %v1724, 1.442695
    %v1726 = vpow.pop %v1725
    %v1727 = vadd.f32 %v1726, 1.0
    %v1728 = vrcp.pop %v1727
    %v1729 = vmul.f32 %v1727, %v1728
    %v1730 = vsub.f32 1.0, %v1729
    %v1731 = vmul.f32 %v1728, %v1730
    %v1732 = vadd.f32 %v1728, %v1731
    %vm1733 = vweird.f32 %v1727
    %vm1734 = vweird.f32 %v1728
    %vm1735 = vmor %vm1733, %vm1734
    %v1736 = vsel %vm1735, %v1728, %v1732
    %v1737 = vand.u32 2147483647, %v1727
    %vm1738 = vcmp.eq.f32.partialorder %v1737, 8.507059e+37
    %v1739 = vand.u32 %v1727, 2147483648
    %v1740 = vor.u32 1.1754944e-38, %v1739
    %v1741 = vsel %vm1738, %v1740, %v1736
    %v1742 = vmul.f32 1.0, %v1741
    %v1743 = vmul.f32 %v1715, %v1529
    %v1744 = vmul.f32 %v1715, %v1719
    %1746 = vrot.lane.b32.xlu0 %v1744, 64
    %v1747 = vpop.permute.xlu0 %1746
    %v1749 = vadd.f32 %v1743, %v1747
    %v1750 = vtanh.pop %v1749
    %1752 = vrot.lane.b32.xlu0 %v1750, 64
    %v1753 = vpop.permute.xlu0 %1752
    %v1755 = vmul.f32 %v1742, %v1753
    %s1756 = scalar_lea.vmem [#allocation3], 4
    %1757 = vst.msk [vmem:[%s1756] sm:$0x3] %vm549, %v1755
    %v1759 = vsel %vm440, %v1645, 0
    %1761 = vmatpush.msra.mxu0 0.0
    %1762 = vmatpush.msra.mxu0 0.0
    %1763 = vmatpush.msra.mxu0 0.0
    %1764 = vmatpush.msra.mxu0 0.0
    %1765 = vmatpush.msra.mxu0 0.0
    %1766 = vmatpush.msra.mxu0 0.0
    %1767 = vmatpush.msra.mxu0 0.0
    %1768 = vmatpush.msra.mxu0 0.0
    %1769 = vmatpush.msra.mxu0 %v422
    %1770 = vmatpush.msra.mxu0 %v420
    %1771 = vmatpush.msra.mxu0 %v418
    %1772 = vmatpush.msra.mxu0 %v416
    %1773 = vmatpush.msra.mxu0 %v414
    %1774 = vmatpush.msra.mxu0 %v412
    %1775 = vmatpush.msra.mxu0 %v410
    %1776 = vmatpush.msra.mxu0 %v408
    %1777 = vmatmul.f32.gmra.mxu0 %v1759
    %v1778 = vpop.f32.mrf.mxu0
    %v1779 = vadd.f32 0.0, %v1778
    %1780 = vdwg.mxu0
    %1781 = vmatpush.msra.mxu0 0.0
    %1782 = vmatpush.msra.mxu0 0.0
    %1783 = vmatpush.msra.mxu0 0.0
    %1784 = vmatpush.msra.mxu0 0.0
    %1785 = vmatpush.msra.mxu0 0.0
    %1786 = vmatpush.msra.mxu0 0.0
    %1787 = vmatpush.msra.mxu0 0.0
    %1788 = vmatpush.msra.mxu0 0.0
    %1789 = vmatpush.msra.mxu0 %v423
    %1790 = vmatpush.msra.mxu0 %v421
    %1791 = vmatpush.msra.mxu0 %v419
    %1792 = vmatpush.msra.mxu0 %v417
    %1793 = vmatpush.msra.mxu0 %v415
    %1794 = vmatpush.msra.mxu0 %v413
    %1795 = vmatpush.msra.mxu0 %v411
    %1796 = vmatpush.msra.mxu0 %v409
    %1797 = vmatmul.f32.gmra.mxu0 %v1759
    %v1798 = vpop.f32.mrf.mxu0
    %v1799 = vadd.f32 0.0, %v1798
    %1800 = vdwg.mxu0
    %v1803 = vrot.slane %v1799, 6
    %v1804 = vsel %vm269, %v1779, %v1803
    %v1806 = vadd.f32 %v284, %v1804
    %v1807 = vxor.u32 %v1806, 2147483648
    %v1808 = vmul.f32 %v1807, 1.442695
    %v1809 = vpow.pop %v1808
    %v1810 = vadd.f32 %v1809, 1.0
    %v1811 = vrcp.pop %v1810
    %v1812 = vmul.f32 %v1810, %v1811
    %v1813 = vsub.f32 1.0, %v1812
    %v1814 = vmul.f32 %v1811, %v1813
    %v1815 = vadd.f32 %v1811, %v1814
    %vm1816 = vweird.f32 %v1810
    %vm1817 = vweird.f32 %v1811
    %vm1818 = vmor %vm1816, %vm1817
    %v1819 = vsel %vm1818, %v1811, %v1815
    %v1820 = vand.u32 2147483647, %v1810
    %vm1821 = vcmp.eq.f32.partialorder %v1820, 8.507059e+37
    %v1822 = vand.u32 %v1810, 2147483648
    %v1823 = vor.u32 1.1754944e-38, %v1822
    %v1824 = vsel %vm1821, %v1823, %v1819
    %v1825 = vmul.f32 1.0, %v1824
    %v1827 = vrot.slane %v1806, 2
    %v1829 = vtanh.pop %v1827
    %1830 = vrot.lane.b32.xlu0 %v1806, 64
    %v1831 = vpop.permute.xlu0 %1830
    %v1832 = vrot.slane %v1831, 2
    %v1834 = vxor.u32 %v1832, 2147483648
    %v1835 = vmul.f32 %v1834, 1.442695
    %v1836 = vpow.pop %v1835
    %v1837 = vadd.f32 %v1836, 1.0
    %v1838 = vrcp.pop %v1837
    %v1839 = vmul.f32 %v1837, %v1838
    %v1840 = vsub.f32 1.0, %v1839
    %v1841 = vmul.f32 %v1838, %v1840
    %v1842 = vadd.f32 %v1838, %v1841
    %vm1843 = vweird.f32 %v1837
    %vm1844 = vweird.f32 %v1838
    %vm1845 = vmor %vm1843, %vm1844
    %v1846 = vsel %vm1845, %v1838, %v1842
    %v1847 = vand.u32 2147483647, %v1837
    %vm1848 = vcmp.eq.f32.partialorder %v1847, 8.507059e+37
    %v1849 = vand.u32 %v1837, 2147483648
    %v1850 = vor.u32 1.1754944e-38, %v1849
    %v1851 = vsel %vm1848, %v1850, %v1846
    %v1852 = vmul.f32 1.0, %v1851
    %v1853 = vmul.f32 %v1825, %v1639
    %v1854 = vmul.f32 %v1825, %v1829
    %1856 = vrot.lane.b32.xlu0 %v1854, 64
    %v1857 = vpop.permute.xlu0 %1856
    %v1859 = vadd.f32 %v1853, %v1857
    %v1860 = vtanh.pop %v1859
    %1862 = vrot.lane.b32.xlu0 %v1860, 64
    %v1863 = vpop.permute.xlu0 %1862
    %v1865 = vmul.f32 %v1852, %v1863
    %s1866 = scalar_lea.vmem [#allocation2], 12
    %1867 = vst.msk [vmem:[%s1866] sm:$0x3] %vm549, %v1865
    %v1869 = vsel %vm440, %v1755, 0
    %1871 = vmatpush.msra.mxu0 0.0
    %1872 = vmatpush.msra.mxu0 0.0
    %1873 = vmatpush.msra.mxu0 0.0
    %1874 = vmatpush.msra.mxu0 0.0
    %1875 = vmatpush.msra.mxu0 0.0
    %1876 = vmatpush.msra.mxu0 0.0
    %1877 = vmatpush.msra.mxu0 0.0
    %1878 = vmatpush.msra.mxu0 0.0
    %1879 = vmatpush.msra.mxu0 %v438
    %1880 = vmatpush.msra.mxu0 %v436
    %1881 = vmatpush.msra.mxu0 %v434
    %1882 = vmatpush.msra.mxu0 %v432
    %1883 = vmatpush.msra.mxu0 %v430
    %1884 = vmatpush.msra.mxu0 %v428
    %1885 = vmatpush.msra.mxu0 %v426
    %1886 = vmatpush.msra.mxu0 %v424
    %1887 = vmatmul.f32.gmra.mxu0 %v1869
    %v1888 = vpop.f32.mrf.mxu0
    %v1889 = vadd.f32 0.0, %v1888
    %1890 = vdwg.mxu0
    %1891 = vmatpush.msra.mxu0 0.0
    %1892 = vmatpush.msra.mxu0 0.0
    %1893 = vmatpush.msra.mxu0 0.0
    %1894 = vmatpush.msra.mxu0 0.0
    %1895 = vmatpush.msra.mxu0 0.0
    %1896 = vmatpush.msra.mxu0 0.0
    %1897 = vmatpush.msra.mxu0 0.0
    %1898 = vmatpush.msra.mxu0 0.0
    %1899 = vmatpush.msra.mxu0 %v439
    %1900 = vmatpush.msra.mxu0 %v437
    %1901 = vmatpush.msra.mxu0 %v435
    %1902 = vmatpush.msra.mxu0 %v433
    %1903 = vmatpush.msra.mxu0 %v431
    %1904 = vmatpush.msra.mxu0 %v429
    %1905 = vmatpush.msra.mxu0 %v427
    %1906 = vmatpush.msra.mxu0 %v425
    %1907 = vmatmul.f32.gmra.mxu0 %v1869
    %v1908 = vpop.f32.mrf.mxu0
    %v1909 = vadd.f32 0.0, %v1908
    %1910 = vdwg.mxu0
    %v1913 = vrot.slane %v1909, 6
    %v1914 = vsel %vm269, %v1889, %v1913
    %v1916 = vadd.f32 %v388, %v1914
    %v1917 = vxor.u32 %v1916, 2147483648
    %v1918 = vmul.f32 %v1917, 1.442695
    %v1919 = vpow.pop %v1918
    %v1920 = vadd.f32 %v1919, 1.0
    %v1921 = vrcp.pop %v1920
    %v1922 = vmul.f32 %v1920, %v1921
    %v1923 = vsub.f32 1.0, %v1922
    %v1924 = vmul.f32 %v1921, %v1923
    %v1925 = vadd.f32 %v1921, %v1924
    %vm1926 = vweird.f32 %v1920
    %vm1927 = vweird.f32 %v1921
    %vm1928 = vmor %vm1926, %vm1927
    %v1929 = vsel %vm1928, %v1921, %v1925
    %v1930 = vand.u32 2147483647, %v1920
    %vm1931 = vcmp.eq.f32.partialorder %v1930, 8.507059e+37
    %v1932 = vand.u32 %v1920, 2147483648
    %v1933 = vor.u32 1.1754944e-38, %v1932
    %v1934 = vsel %vm1931, %v1933, %v1929
    %v1935 = vmul.f32 1.0, %v1934
    %v1937 = vrot.slane %v1916, 2
    %v1939 = vtanh.pop %v1937
    %1940 = vrot.lane.b32.xlu0 %v1916, 64
    %v1941 = vpop.permute.xlu0 %1940
    %v1942 = vrot.slane %v1941, 2
    %v1944 = vxor.u32 %v1942, 2147483648
    %v1945 = vmul.f32 %v1944, 1.442695
    %v1946 = vpow.pop %v1945
    %v1947 = vadd.f32 %v1946, 1.0
    %v1948 = vrcp.pop %v1947
    %v1949 = vmul.f32 %v1947, %v1948
    %v1950 = vsub.f32 1.0, %v1949
    %v1951 = vmul.f32 %v1948, %v1950
    %v1952 = vadd.f32 %v1948, %v1951
    %vm1953 = vweird.f32 %v1947
    %vm1954 = vweird.f32 %v1948
    %vm1955 = vmor %vm1953, %vm1954
    %v1956 = vsel %vm1955, %v1948, %v1952
    %v1957 = vand.u32 2147483647, %v1947
    %vm1958 = vcmp.eq.f32.partialorder %v1957, 8.507059e+37
    %v1959 = vand.u32 %v1947, 2147483648
    %v1960 = vor.u32 1.1754944e-38, %v1959
    %v1961 = vsel %vm1958, %v1960, %v1956
    %v1962 = vmul.f32 1.0, %v1961
    %v1963 = vmul.f32 %v1935, %v1749
    %v1964 = vmul.f32 %v1935, %v1939
    %1966 = vrot.lane.b32.xlu0 %v1964, 64
    %v1967 = vpop.permute.xlu0 %1966
    %v1969 = vadd.f32 %v1963, %v1967
    %v1970 = vtanh.pop %v1969
    %1972 = vrot.lane.b32.xlu0 %v1970, 64
    %v1973 = vpop.permute.xlu0 %1972
    %v1975 = vmul.f32 %v1962, %v1973
    %s1976 = scalar_lea.vmem [#allocation3], 2
    %1977 = vst.msk [vmem:[%s1976] sm:$0x3] %vm549, %v1975
    %v1979 = vsel %vm440, %v1865, 0
    %1981 = vmatpush.msra.mxu0 0.0
    %1982 = vmatpush.msra.mxu0 0.0
    %1983 = vmatpush.msra.mxu0 0.0
    %1984 = vmatpush.msra.mxu0 0.0
    %1985 = vmatpush.msra.mxu0 0.0
    %1986 = vmatpush.msra.mxu0 0.0
    %1987 = vmatpush.msra.mxu0 0.0
    %1988 = vmatpush.msra.mxu0 0.0
    %1989 = vmatpush.msra.mxu0 %v422
    %1990 = vmatpush.msra.mxu0 %v420
    %1991 = vmatpush.msra.mxu0 %v418
    %1992 = vmatpush.msra.mxu0 %v416
    %1993 = vmatpush.msra.mxu0 %v414
    %1994 = vmatpush.msra.mxu0 %v412
    %1995 = vmatpush.msra.mxu0 %v410
    %1996 = vmatpush.msra.mxu0 %v408
    %1997 = vmatmul.f32.gmra.mxu0 %v1979
    %v1998 = vpop.f32.mrf.mxu0
    %v1999 = vadd.f32 0.0, %v1998
    %2000 = vdwg.mxu0
    %2001 = vmatpush.msra.mxu0 0.0
    %2002 = vmatpush.msra.mxu0 0.0
    %2003 = vmatpush.msra.mxu0 0.0
    %2004 = vmatpush.msra.mxu0 0.0
    %2005 = vmatpush.msra.mxu0 0.0
    %2006 = vmatpush.msra.mxu0 0.0
    %2007 = vmatpush.msra.mxu0 0.0
    %2008 = vmatpush.msra.mxu0 0.0
    %2009 = vmatpush.msra.mxu0 %v423
    %2010 = vmatpush.msra.mxu0 %v421
    %2011 = vmatpush.msra.mxu0 %v419
    %2012 = vmatpush.msra.mxu0 %v417
    %2013 = vmatpush.msra.mxu0 %v415
    %2014 = vmatpush.msra.mxu0 %v413
    %2015 = vmatpush.msra.mxu0 %v411
    %2016 = vmatpush.msra.mxu0 %v409
    %2017 = vmatmul.f32.gmra.mxu0 %v1979
    %v2018 = vpop.f32.mrf.mxu0
    %v2019 = vadd.f32 0.0, %v2018
    %2020 = vdwg.mxu0
    %v2023 = vrot.slane %v2019, 6
    %v2024 = vsel %vm269, %v1999, %v2023
    %v2026 = vadd.f32 %v286, %v2024
    %v2027 = vxor.u32 %v2026, 2147483648
    %v2028 = vmul.f32 %v2027, 1.442695
    %v2029 = vpow.pop %v2028
    %v2030 = vadd.f32 %v2029, 1.0
    %v2031 = vrcp.pop %v2030
    %v2032 = vmul.f32 %v2030, %v2031
    %v2033 = vsub.f32 1.0, %v2032
    %v2034 = vmul.f32 %v2031, %v2033
    %v2035 = vadd.f32 %v2031, %v2034
    %vm2036 = vweird.f32 %v2030
    %vm2037 = vweird.f32 %v2031
    %vm2038 = vmor %vm2036, %vm2037
    %v2039 = vsel %vm2038, %v2031, %v2035
    %v2040 = vand.u32 2147483647, %v2030
    %vm2041 = vcmp.eq.f32.partialorder %v2040, 8.507059e+37
    %v2042 = vand.u32 %v2030, 2147483648
    %v2043 = vor.u32 1.1754944e-38, %v2042
    %v2044 = vsel %vm2041, %v2043, %v2039
    %v2045 = vmul.f32 1.0, %v2044
    %v2047 = vrot.slane %v2026, 2
    %v2049 = vtanh.pop %v2047
    %2050 = vrot.lane.b32.xlu0 %v2026, 64
    %v2051 = vpop.permute.xlu0 %2050
    %v2052 = vrot.slane %v2051, 2
    %v2054 = vxor.u32 %v2052, 2147483648
    %v2055 = vmul.f32 %v2054, 1.442695
    %v2056 = vpow.pop %v2055
    %v2057 = vadd.f32 %v2056, 1.0
    %v2058 = vrcp.pop %v2057
    %v2059 = vmul.f32 %v2057, %v2058
    %v2060 = vsub.f32 1.0, %v2059
    %v2061 = vmul.f32 %v2058, %v2060
    %v2062 = vadd.f32 %v2058, %v2061
    %vm2063 = vweird.f32 %v2057
    %vm2064 = vweird.f32 %v2058
    %vm2065 = vmor %vm2063, %vm2064
    %v2066 = vsel %vm2065, %v2058, %v2062
    %v2067 = vand.u32 2147483647, %v2057
    %vm2068 = vcmp.eq.f32.partialorder %v2067, 8.507059e+37
    %v2069 = vand.u32 %v2057, 2147483648
    %v2070 = vor.u32 1.1754944e-38, %v2069
    %v2071 = vsel %vm2068, %v2070, %v2066
    %v2072 = vmul.f32 1.0, %v2071
    %v2073 = vmul.f32 %v2045, %v1859
    %v2074 = vmul.f32 %v2045, %v2049
    %2076 = vrot.lane.b32.xlu0 %v2074, 64
    %v2077 = vpop.permute.xlu0 %2076
    %v2079 = vadd.f32 %v2073, %v2077
    %v2080 = vtanh.pop %v2079
    %2082 = vrot.lane.b32.xlu0 %v2080, 64
    %v2083 = vpop.permute.xlu0 %2082
    %v2085 = vmul.f32 %v2072, %v2083
    %s2086 = scalar_lea.vmem [#allocation2], 14
    %2087 = vst.msk [vmem:[%s2086] sm:$0x3] %vm549, %v2085
    %v2089 = vsel %vm440, %v1975, 0
    %2091 = vmatpush.msra.mxu0 0.0
    %2092 = vmatpush.msra.mxu0 0.0
    %2093 = vmatpush.msra.mxu0 0.0
    %2094 = vmatpush.msra.mxu0 0.0
    %2095 = vmatpush.msra.mxu0 0.0
    %2096 = vmatpush.msra.mxu0 0.0
    %2097 = vmatpush.msra.mxu0 0.0
    %2098 = vmatpush.msra.mxu0 0.0
    %2099 = vmatpush.msra.mxu0 %v438
    %2100 = vmatpush.msra.mxu0 %v436
    %2101 = vmatpush.msra.mxu0 %v434
    %2102 = vmatpush.msra.mxu0 %v432
    %2103 = vmatpush.msra.mxu0 %v430
    %2104 = vmatpush.msra.mxu0 %v428
    %2105 = vmatpush.msra.mxu0 %v426
    %2106 = vmatpush.msra.mxu0 %v424
    %2107 = vmatmul.f32.gmra.mxu0 %v2089
    %v2108 = vpop.f32.mrf.mxu0
    %v2109 = vadd.f32 0.0, %v2108
    %2110 = vdwg.mxu0
    %2111 = vmatpush.msra.mxu0 0.0
    %2112 = vmatpush.msra.mxu0 0.0
    %2113 = vmatpush.msra.mxu0 0.0
    %2114 = vmatpush.msra.mxu0 0.0
    %2115 = vmatpush.msra.mxu0 0.0
    %2116 = vmatpush.msra.mxu0 0.0
    %2117 = vmatpush.msra.mxu0 0.0
    %2118 = vmatpush.msra.mxu0 0.0
    %2119 = vmatpush.msra.mxu0 %v439
    %2120 = vmatpush.msra.mxu0 %v437
    %2121 = vmatpush.msra.mxu0 %v435
    %2122 = vmatpush.msra.mxu0 %v433
    %2123 = vmatpush.msra.mxu0 %v431
    %2124 = vmatpush.msra.mxu0 %v429
    %2125 = vmatpush.msra.mxu0 %v427
    %2126 = vmatpush.msra.mxu0 %v425
    %2127 = vmatmul.f32.gmra.mxu0 %v2089
    %v2128 = vpop.f32.mrf.mxu0
    %v2129 = vadd.f32 0.0, %v2128
    %2130 = vdwg.mxu0
    %v2133 = vrot.slane %v2129, 6
    %v2134 = vsel %vm269, %v2109, %v2133
    %v2136 = vadd.f32 %v386, %v2134
    %v2137 = vxor.u32 %v2136, 2147483648
    %v2138 = vmul.f32 %v2137, 1.442695
    %v2139 = vpow.pop %v2138
    %v2140 = vadd.f32 %v2139, 1.0
    %v2141 = vrcp.pop %v2140
    %v2142 = vmul.f32 %v2140, %v2141
    %v2143 = vsub.f32 1.0, %v2142
    %v2144 = vmul.f32 %v2141, %v2143
    %v2145 = vadd.f32 %v2141, %v2144
    %vm2146 = vweird.f32 %v2140
    %vm2147 = vweird.f32 %v2141
    %vm2148 = vmor %vm2146, %vm2147
    %v2149 = vsel %vm2148, %v2141, %v2145
    %v2150 = vand.u32 2147483647, %v2140
    %vm2151 = vcmp.eq.f32.partialorder %v2150, 8.507059e+37
    %v2152 = vand.u32 %v2140, 2147483648
    %v2153 = vor.u32 1.1754944e-38, %v2152
    %v2154 = vsel %vm2151, %v2153, %v2149
    %v2155 = vmul.f32 1.0, %v2154
    %v2157 = vrot.slane %v2136, 2
    %v2159 = vtanh.pop %v2157
    %2160 = vrot.lane.b32.xlu0 %v2136, 64
    %v2161 = vpop.permute.xlu0 %2160
    %v2162 = vrot.slane %v2161, 2
    %v2164 = vxor.u32 %v2162, 2147483648
    %v2165 = vmul.f32 %v2164, 1.442695
    %v2166 = vpow.pop %v2165
    %v2167 = vadd.f32 %v2166, 1.0
    %v2168 = vrcp.pop %v2167
    %v2169 = vmul.f32 %v2167, %v2168
    %v2170 = vsub.f32 1.0, %v2169
    %v2171 = vmul.f32 %v2168, %v2170
    %v2172 = vadd.f32 %v2168, %v2171
    %vm2173 = vweird.f32 %v2167
    %vm2174 = vweird.f32 %v2168
    %vm2175 = vmor %vm2173, %vm2174
    %v2176 = vsel %vm2175, %v2168, %v2172
    %v2177 = vand.u32 2147483647, %v2167
    %vm2178 = vcmp.eq.f32.partialorder %v2177, 8.507059e+37
    %v2179 = vand.u32 %v2167, 2147483648
    %v2180 = vor.u32 1.1754944e-38, %v2179
    %v2181 = vsel %vm2178, %v2180, %v2176
    %v2182 = vmul.f32 1.0, %v2181
    %v2183 = vmul.f32 %v2155, %v1969
    %v2184 = vmul.f32 %v2155, %v2159
    %2186 = vrot.lane.b32.xlu0 %v2184, 64
    %v2187 = vpop.permute.xlu0 %2186
    %v2189 = vadd.f32 %v2183, %v2187
    %v2190 = vtanh.pop %v2189
    %2192 = vrot.lane.b32.xlu0 %v2190, 64
    %v2193 = vpop.permute.xlu0 %2192
    %v2195 = vmul.f32 %v2182, %v2193
    %2196 = vst.msk [vmem:[#allocation3] sm:$0x3] %vm549, %v2195
    %v2197 = vld [vmem:[#allocation2] sm:$0x3]
    %v2198 = vld [vmem:[#allocation2 + $0x2] sm:$0x3]
    %v2199 = vld [vmem:[#allocation2 + $0x4] sm:$0x3]
    %v2200 = vld [vmem:[#allocation2 + $0x6] sm:$0x3]
    %v2201 = vld [vmem:[#allocation2 + $0x8] sm:$0x3]
    %v2202 = vld [vmem:[#allocation2 + $0xa] sm:$0x3]
    %v2203 = vld [vmem:[#allocation2 + $0xc] sm:$0x3]
    %v2204 = vld [vmem:[#allocation2 + $0xe] sm:$0x3]
    %v2205 = vld [vmem:[#allocation3] sm:$0x3]
    %v2206 = vld [vmem:[#allocation3 + $0x2] sm:$0x3]
    %v2207 = vld [vmem:[#allocation3 + $0x4] sm:$0x3]
    %v2208 = vld [vmem:[#allocation3 + $0x6] sm:$0x3]
    %v2209 = vld [vmem:[#allocation3 + $0x8] sm:$0x3]
    %v2210 = vld [vmem:[#allocation3 + $0xa] sm:$0x3]
    %v2211 = vld [vmem:[#allocation3 + $0xc] sm:$0x3]
    %v2212 = vld [vmem:[#allocation3 + $0xe] sm:$0x3]
    %v2213 = vld [vmem:[#allocation12] sm:$0xff]
    %v2214 = vld [vmem:[#allocation12 + $0x8] sm:$0xff]
    %v2215 = vld [vmem:[#allocation12 + $0x10] sm:$0xff]
    %v2216 = vld [vmem:[#allocation12 + $0x18] sm:$0xff]
    %v2217 = vld [vmem:[#allocation12 + $0x20] sm:$0xff]
    %v2218 = vld [vmem:[#allocation12 + $0x28] sm:$0xff]
    %v2219 = vld [vmem:[#allocation12 + $0x30] sm:$0xff]
    %v2220 = vld [vmem:[#allocation12 + $0x38] sm:$0xff]
    %v2221 = vld [vmem:[#allocation12 + $0x40] sm:$0xff]
    %v2222 = vld [vmem:[#allocation12 + $0x48] sm:$0xff]
    %v2223 = vld [vmem:[#allocation12 + $0x50] sm:$0xff]
    %v2224 = vld [vmem:[#allocation12 + $0x58] sm:$0xff]
    %v2225 = vld [vmem:[#allocation12 + $0x60] sm:$0xff]
    %v2226 = vld [vmem:[#allocation12 + $0x68] sm:$0xff]
    %v2227 = vld [vmem:[#allocation12 + $0x70] sm:$0xff]
    %v2228 = vld [vmem:[#allocation12 + $0x78] sm:$0xff]
    %v2229 = vld [vmem:[#allocation12 + $0x80] sm:$0xff]
    %v2230 = vld [vmem:[#allocation12 + $0x88] sm:$0xff]
    %v2231 = vld [vmem:[#allocation12 + $0x90] sm:$0xff]
    %v2232 = vld [vmem:[#allocation12 + $0x98] sm:$0xff]
    %v2233 = vld [vmem:[#allocation12 + $0xa0] sm:$0xff]
    %v2234 = vld [vmem:[#allocation12 + $0xa8] sm:$0xff]
    %v2235 = vld [vmem:[#allocation12 + $0xb0] sm:$0xff]
    %v2236 = vld [vmem:[#allocation12 + $0xb8] sm:$0xff]
    %v2237 = vld [vmem:[#allocation12 + $0xc0] sm:$0xff]
    %v2238 = vld [vmem:[#allocation12 + $0xc8] sm:$0xff]
    %v2239 = vld [vmem:[#allocation12 + $0xd0] sm:$0xff]
    %v2240 = vld [vmem:[#allocation12 + $0xd8] sm:$0xff]
    %v2241 = vld [vmem:[#allocation12 + $0xe0] sm:$0xff]
    %v2242 = vld [vmem:[#allocation12 + $0xe8] sm:$0xff]
    %v2243 = vld [vmem:[#allocation12 + $0xf0] sm:$0xff]
    %v2244 = vld [vmem:[#allocation12 + $0xf8] sm:$0xff]
    %v2245 = vld [vmem:[#allocation15] sm:$0xff]
    %v2246 = vld [vmem:[#allocation15 + $0x8] sm:$0xff]
    %v2247 = vld [vmem:[#allocation15 + $0x10] sm:$0xff]
    %v2248 = vld [vmem:[#allocation15 + $0x18] sm:$0xff]
    %v2249 = vld [vmem:[#allocation15 + $0x20] sm:$0xff]
    %v2250 = vld [vmem:[#allocation15 + $0x28] sm:$0xff]
    %v2251 = vld [vmem:[#allocation15 + $0x30] sm:$0xff]
    %v2252 = vld [vmem:[#allocation15 + $0x38] sm:$0xff]
    %v2253 = vld [vmem:[#allocation15 + $0x40] sm:$0xff]
    %v2254 = vld [vmem:[#allocation15 + $0x48] sm:$0xff]
    %v2255 = vld [vmem:[#allocation15 + $0x50] sm:$0xff]
    %v2256 = vld [vmem:[#allocation15 + $0x58] sm:$0xff]
    %v2257 = vld [vmem:[#allocation15 + $0x60] sm:$0xff]
    %v2258 = vld [vmem:[#allocation15 + $0x68] sm:$0xff]
    %v2259 = vld [vmem:[#allocation15 + $0x70] sm:$0xff]
    %v2260 = vld [vmem:[#allocation15 + $0x78] sm:$0xff]
    %v2261 = vld [vmem:[#allocation15 + $0x80] sm:$0xff]
    %v2262 = vld [vmem:[#allocation15 + $0x88] sm:$0xff]
    %v2263 = vld [vmem:[#allocation15 + $0x90] sm:$0xff]
    %v2264 = vld [vmem:[#allocation15 + $0x98] sm:$0xff]
    %v2265 = vld [vmem:[#allocation15 + $0xa0] sm:$0xff]
    %v2266 = vld [vmem:[#allocation15 + $0xa8] sm:$0xff]
    %v2267 = vld [vmem:[#allocation15 + $0xb0] sm:$0xff]
    %v2268 = vld [vmem:[#allocation15 + $0xb8] sm:$0xff]
    %v2269 = vld [vmem:[#allocation15 + $0xc0] sm:$0xff]
    %v2270 = vld [vmem:[#allocation15 + $0xc8] sm:$0xff]
    %v2271 = vld [vmem:[#allocation15 + $0xd0] sm:$0xff]
    %v2272 = vld [vmem:[#allocation15 + $0xd8] sm:$0xff]
    %v2273 = vld [vmem:[#allocation15 + $0xe0] sm:$0xff]
    %v2274 = vld [vmem:[#allocation15 + $0xe8] sm:$0xff]
    %v2275 = vld [vmem:[#allocation15 + $0xf0] sm:$0xff]
    %v2276 = vld [vmem:[#allocation15 + $0xf8] sm:$0xff]
    %2285 = vst [vmem:[#allocation1] ss:$4 sm:$0xff] %v2205
    %s2286 = scalar_lea.vmem [#allocation1], 1
    %2287 = vst [vmem:[%s2286] ss:$4 sm:$0xff] %v2206
    %s2288 = scalar_lea.vmem [#allocation1], 2
    %2289 = vst [vmem:[%s2288] ss:$4 sm:$0xff] %v2207
    %s2290 = scalar_lea.vmem [#allocation1], 3
    %2291 = vst [vmem:[%s2290] ss:$4 sm:$0xff] %v2208
    %s2292 = scalar_lea.vmem [#allocation1], 32
    %2293 = vst [vmem:[%s2292] ss:$4 sm:$0xff] %v2209
    %s2294 = scalar_lea.vmem [#allocation1], 33
    %2295 = vst [vmem:[%s2294] ss:$4 sm:$0xff] %v2210
    %s2296 = scalar_lea.vmem [#allocation1], 34
    %2297 = vst [vmem:[%s2296] ss:$4 sm:$0xff] %v2211
    %s2298 = scalar_lea.vmem [#allocation1], 35
    %2299 = vst [vmem:[%s2298] ss:$4 sm:$0xff] %v2212
    %v2300 = vld.sshfl [vmem:[#allocation1] sm:$0xff pattern:$0x73625140]
    %v2301 = vld.sshfl [vmem:[#allocation1 + $0x20] sm:$0xff pattern:$0x73625140]
    %v2302 = vsel %vm440, %v2300, 0
    %v2304 = vsel %vm440, %v2301, 0
    %2306 = vmatpush.msra.mxu0 0.0
    %2307 = vmatpush.msra.mxu0 0.0
    %2308 = vmatpush.msra.mxu0 0.0
    %2309 = vmatpush.msra.mxu0 0.0
    %2310 = vmatpush.msra.mxu0 0.0
    %2311 = vmatpush.msra.mxu0 0.0
    %2312 = vmatpush.msra.mxu0 0.0
    %2313 = vmatpush.msra.mxu0 0.0
    %2314 = vmatpush.msra.mxu0 %v2243
    %2315 = vmatpush.msra.mxu0 %v2241
    %2316 = vmatpush.msra.mxu0 %v2239
    %2317 = vmatpush.msra.mxu0 %v2237
    %2318 = vmatpush.msra.mxu0 %v2235
    %2319 = vmatpush.msra.mxu0 %v2233
    %2320 = vmatpush.msra.mxu0 %v2231
    %2321 = vmatpush.msra.mxu0 %v2229
    %2322 = vmatmul.f32.gmra.mxu0 %v2302
    %v2323 = vpop.f32.mrf.mxu0
    %v2324 = vadd.f32 0.0, %v2323
    %2325 = vmatmul.f32.gmra.mxu0 %v2304
    %v2326 = vpop.f32.mrf.mxu0
    %v2327 = vadd.f32 0.0, %v2326
    %2328 = vdwg.mxu0
    %2329 = vmatpush.msra.mxu0 0.0
    %2330 = vmatpush.msra.mxu0 0.0
    %2331 = vmatpush.msra.mxu0 0.0
    %2332 = vmatpush.msra.mxu0 0.0
    %2333 = vmatpush.msra.mxu0 0.0
    %2334 = vmatpush.msra.mxu0 0.0
    %2335 = vmatpush.msra.mxu0 0.0
    %2336 = vmatpush.msra.mxu0 0.0
    %2337 = vmatpush.msra.mxu0 %v2244
    %2338 = vmatpush.msra.mxu0 %v2242
    %2339 = vmatpush.msra.mxu0 %v2240
    %2340 = vmatpush.msra.mxu0 %v2238
    %2341 = vmatpush.msra.mxu0 %v2236
    %2342 = vmatpush.msra.mxu0 %v2234
    %2343 = vmatpush.msra.mxu0 %v2232
    %2344 = vmatpush.msra.mxu0 %v2230
    %2345 = vmatmul.f32.gmra.mxu0 %v2302
    %v2346 = vpop.f32.mrf.mxu0
    %v2347 = vadd.f32 0.0, %v2346
    %2348 = vmatmul.f32.gmra.mxu0 %v2304
    %v2349 = vpop.f32.mrf.mxu0
    %v2350 = vadd.f32 0.0, %v2349
    %2351 = vdwg.mxu0
    %2360 = vst [vmem:[#allocation1] ss:$4 sm:$0xff] %v2197
    %s2361 = scalar_lea.vmem [#allocation1], 1
    %2362 = vst [vmem:[%s2361] ss:$4 sm:$0xff] %v2198
    %s2363 = scalar_lea.vmem [#allocation1], 2
    %2364 = vst [vmem:[%s2363] ss:$4 sm:$0xff] %v2199
    %s2365 = scalar_lea.vmem [#allocation1], 3
    %2366 = vst [vmem:[%s2365] ss:$4 sm:$0xff] %v2200
    %s2367 = scalar_lea.vmem [#allocation1], 32
    %2368 = vst [vmem:[%s2367] ss:$4 sm:$0xff] %v2201
    %s2369 = scalar_lea.vmem [#allocation1], 33
    %2370 = vst [vmem:[%s2369] ss:$4 sm:$0xff] %v2202
    %s2371 = scalar_lea.vmem [#allocation1], 34
    %2372 = vst [vmem:[%s2371] ss:$4 sm:$0xff] %v2203
    %s2373 = scalar_lea.vmem [#allocation1], 35
    %2374 = vst [vmem:[%s2373] ss:$4 sm:$0xff] %v2204
    %v2375 = vld.sshfl [vmem:[#allocation1] sm:$0xff pattern:$0x73625140]
    %v2376 = vld.sshfl [vmem:[#allocation1 + $0x20] sm:$0xff pattern:$0x73625140]
    %v2377 = vsel %vm440, %v2375, 0
    %v2379 = vsel %vm440, %v2376, 0
    %2381 = vmatpush.msra.mxu0 0.0
    %2382 = vmatpush.msra.mxu0 0.0
    %2383 = vmatpush.msra.mxu0 0.0
    %2384 = vmatpush.msra.mxu0 0.0
    %2385 = vmatpush.msra.mxu0 0.0
    %2386 = vmatpush.msra.mxu0 0.0
    %2387 = vmatpush.msra.mxu0 0.0
    %2388 = vmatpush.msra.mxu0 0.0
    %2389 = vmatpush.msra.mxu0 %v2227
    %2390 = vmatpush.msra.mxu0 %v2225
    %2391 = vmatpush.msra.mxu0 %v2223
    %2392 = vmatpush.msra.mxu0 %v2221
    %2393 = vmatpush.msra.mxu0 %v2219
    %2394 = vmatpush.msra.mxu0 %v2217
    %2395 = vmatpush.msra.mxu0 %v2215
    %2396 = vmatpush.msra.mxu0 %v2213
    %2397 = vmatmul.f32.gmra.mxu0 %v2377
    %v2398 = vpop.f32.mrf.mxu0
    %v2399 = vadd.f32 %v2324, %v2398
    %2400 = vmatmul.f32.gmra.mxu0 %v2379
    %v2401 = vpop.f32.mrf.mxu0
    %v2402 = vadd.f32 %v2327, %v2401
    %2403 = vdwg.mxu0
    %2404 = vmatpush.msra.mxu0 0.0
    %2405 = vmatpush.msra.mxu0 0.0
    %2406 = vmatpush.msra.mxu0 0.0
    %2407 = vmatpush.msra.mxu0 0.0
    %2408 = vmatpush.msra.mxu0 0.0
    %2409 = vmatpush.msra.mxu0 0.0
    %2410 = vmatpush.msra.mxu0 0.0
    %2411 = vmatpush.msra.mxu0 0.0
    %2412 = vmatpush.msra.mxu0 %v2228
    %2413 = vmatpush.msra.mxu0 %v2226
    %2414 = vmatpush.msra.mxu0 %v2224
    %2415 = vmatpush.msra.mxu0 %v2222
    %2416 = vmatpush.msra.mxu0 %v2220
    %2417 = vmatpush.msra.mxu0 %v2218
    %2418 = vmatpush.msra.mxu0 %v2216
    %2419 = vmatpush.msra.mxu0 %v2214
    %2420 = vmatmul.f32.gmra.mxu0 %v2377
    %v2421 = vpop.f32.mrf.mxu0
    %v2422 = vadd.f32 %v2347, %v2421
    %2423 = vmatmul.f32.gmra.mxu0 %v2379
    %v2424 = vpop.f32.mrf.mxu0
    %v2425 = vadd.f32 %v2350, %v2424
    %2426 = vdwg.mxu0
    %v2427 = vld [vmem:[%s9] sm:$0x3]
    %v2429 = vperm.slane %v2427, 0
    %v2430 = vperm.slane %v2427, 1
    %v2433 = vadd.f32 %v2399, %v2429
    %v2434 = vadd.f32 %v2422, %v2430
    %v2435 = vadd.f32 %v2402, %v2429
    %v2436 = vadd.f32 %v2425, %v2430
    %v2441 = vrot.slane %v2434, 6
    %v2442 = vrot.slane %v2436, 6
    %v2443 = vsel %vm269, %v2433, %v2441
    %v2444 = vsel %vm271, %v2433, %v2441
    %v2445 = vrot.slane %v2444, 2
    %v2446 = vsel %vm274, %v2433, %v2441
    %v2447 = vrot.slane %v2446, 4
    %v2448 = vsel %vm277, %v2441, %v2433
    %v2449 = vrot.slane %v2448, 6
    %v2450 = vsel %vm269, %v2435, %v2442
    %v2451 = vsel %vm271, %v2435, %v2442
    %v2452 = vrot.slane %v2451, 2
    %v2453 = vsel %vm274, %v2435, %v2442
    %v2454 = vrot.slane %v2453, 4
    %v2455 = vsel %vm277, %v2442, %v2435
    %v2456 = vrot.slane %v2455, 6
    %2465 = vst [vmem:[#allocation1] ss:$4 sm:$0xff] %v2205
    %s2466 = scalar_lea.vmem [#allocation1], 1
    %2467 = vst [vmem:[%s2466] ss:$4 sm:$0xff] %v2206
    %s2468 = scalar_lea.vmem [#allocation1], 2
    %2469 = vst [vmem:[%s2468] ss:$4 sm:$0xff] %v2207
    %s2470 = scalar_lea.vmem [#allocation1], 3
    %2471 = vst [vmem:[%s2470] ss:$4 sm:$0xff] %v2208
    %s2472 = scalar_lea.vmem [#allocation1], 32
    %2473 = vst [vmem:[%s2472] ss:$4 sm:$0xff] %v2209
    %s2474 = scalar_lea.vmem [#allocation1], 33
    %2475 = vst [vmem:[%s2474] ss:$4 sm:$0xff] %v2210
    %s2476 = scalar_lea.vmem [#allocation1], 34
    %2477 = vst [vmem:[%s2476] ss:$4 sm:$0xff] %v2211
    %s2478 = scalar_lea.vmem [#allocation1], 35
    %2479 = vst [vmem:[%s2478] ss:$4 sm:$0xff] %v2212
    %v2480 = vld.sshfl [vmem:[#allocation1] sm:$0xff pattern:$0x73625140]
    %v2481 = vld.sshfl [vmem:[#allocation1 + $0x20] sm:$0xff pattern:$0x73625140]
    %v2482 = vsel %vm440, %v2480, 0
    %v2484 = vsel %vm440, %v2481, 0
    %2486 = vmatpush.msra.mxu0 0.0
    %2487 = vmatpush.msra.mxu0 0.0
    %2488 = vmatpush.msra.mxu0 0.0
    %2489 = vmatpush.msra.mxu0 0.0
    %2490 = vmatpush.msra.mxu0 0.0
    %2491 = vmatpush.msra.mxu0 0.0
    %2492 = vmatpush.msra.mxu0 0.0
    %2493 = vmatpush.msra.mxu0 0.0
    %2494 = vmatpush.msra.mxu0 %v2275
    %2495 = vmatpush.msra.mxu0 %v2273
    %2496 = vmatpush.msra.mxu0 %v2271
    %2497 = vmatpush.msra.mxu0 %v2269
    %2498 = vmatpush.msra.mxu0 %v2267
    %2499 = vmatpush.msra.mxu0 %v2265
    %2500 = vmatpush.msra.mxu0 %v2263
    %2501 = vmatpush.msra.mxu0 %v2261
    %2502 = vmatmul.f32.gmra.mxu0 %v2482
    %v2503 = vpop.f32.mrf.mxu0
    %v2504 = vadd.f32 0.0, %v2503
    %2505 = vmatmul.f32.gmra.mxu0 %v2484
    %v2506 = vpop.f32.mrf.mxu0
    %v2507 = vadd.f32 0.0, %v2506
    %2508 = vdwg.mxu0
    %2509 = vmatpush.msra.mxu0 0.0
    %2510 = vmatpush.msra.mxu0 0.0
    %2511 = vmatpush.msra.mxu0 0.0
    %2512 = vmatpush.msra.mxu0 0.0
    %2513 = vmatpush.msra.mxu0 0.0
    %2514 = vmatpush.msra.mxu0 0.0
    %2515 = vmatpush.msra.mxu0 0.0
    %2516 = vmatpush.msra.mxu0 0.0
    %2517 = vmatpush.msra.mxu0 %v2276
    %2518 = vmatpush.msra.mxu0 %v2274
    %2519 = vmatpush.msra.mxu0 %v2272
    %2520 = vmatpush.msra.mxu0 %v2270
    %2521 = vmatpush.msra.mxu0 %v2268
    %2522 = vmatpush.msra.mxu0 %v2266
    %2523 = vmatpush.msra.mxu0 %v2264
    %2524 = vmatpush.msra.mxu0 %v2262
    %2525 = vmatmul.f32.gmra.mxu0 %v2482
    %v2526 = vpop.f32.mrf.mxu0
    %v2527 = vadd.f32 0.0, %v2526
    %2528 = vmatmul.f32.gmra.mxu0 %v2484
    %v2529 = vpop.f32.mrf.mxu0
    %v2530 = vadd.f32 0.0, %v2529
    %2531 = vdwg.mxu0
    %2532 = vst [vmem:[#allocation1] ss:$4 sm:$0xff] %v2197
    %s2533 = scalar_lea.vmem [#allocation1], 1
    %2534 = vst [vmem:[%s2533] ss:$4 sm:$0xff] %v2198
    %s2535 = scalar_lea.vmem [#allocation1], 2
    %2536 = vst [vmem:[%s2535] ss:$4 sm:$0xff] %v2199
    %s2537 = scalar_lea.vmem [#allocation1], 3
    %2538 = vst [vmem:[%s2537] ss:$4 sm:$0xff] %v2200
    %s2539 = scalar_lea.vmem [#allocation1], 32
    %2540 = vst [vmem:[%s2539] ss:$4 sm:$0xff] %v2201
    %s2541 = scalar_lea.vmem [#allocation1], 33
    %2542 = vst [vmem:[%s2541] ss:$4 sm:$0xff] %v2202
    %s2543 = scalar_lea.vmem [#allocation1], 34
    %2544 = vst [vmem:[%s2543] ss:$4 sm:$0xff] %v2203
    %s2545 = scalar_lea.vmem [#allocation1], 35
    %2546 = vst [vmem:[%s2545] ss:$4 sm:$0xff] %v2204
    %v2547 = vld.sshfl [vmem:[#allocation1] sm:$0xff pattern:$0x73625140]
    %v2548 = vld.sshfl [vmem:[#allocation1 + $0x20] sm:$0xff pattern:$0x73625140]
    %v2549 = vsel %vm440, %v2547, 0
    %v2551 = vsel %vm440, %v2548, 0
    %2553 = vmatpush.msra.mxu0 0.0
    %2554 = vmatpush.msra.mxu0 0.0
    %2555 = vmatpush.msra.mxu0 0.0
    %2556 = vmatpush.msra.mxu0 0.0
    %2557 = vmatpush.msra.mxu0 0.0
    %2558 = vmatpush.msra.mxu0 0.0
    %2559 = vmatpush.msra.mxu0 0.0
    %2560 = vmatpush.msra.mxu0 0.0
    %2561 = vmatpush.msra.mxu0 %v2259
    %2562 = vmatpush.msra.mxu0 %v2257
    %2563 = vmatpush.msra.mxu0 %v2255
    %2564 = vmatpush.msra.mxu0 %v2253
    %2565 = vmatpush.msra.mxu0 %v2251
    %2566 = vmatpush.msra.mxu0 %v2249
    %2567 = vmatpush.msra.mxu0 %v2247
    %2568 = vmatpush.msra.mxu0 %v2245
    %2569 = vmatmul.f32.gmra.mxu0 %v2549
    %v2570 = vpop.f32.mrf.mxu0
    %v2571 = vadd.f32 %v2504, %v2570
    %2572 = vmatmul.f32.gmra.mxu0 %v2551
    %v2573 = vpop.f32.mrf.mxu0
    %v2574 = vadd.f32 %v2507, %v2573
    %2575 = vdwg.mxu0
    %2576 = vmatpush.msra.mxu0 0.0
    %2577 = vmatpush.msra.mxu0 0.0
    %2578 = vmatpush.msra.mxu0 0.0
    %2579 = vmatpush.msra.mxu0 0.0
    %2580 = vmatpush.msra.mxu0 0.0
    %2581 = vmatpush.msra.mxu0 0.0
    %2582 = vmatpush.msra.mxu0 0.0
    %2583 = vmatpush.msra.mxu0 0.0
    %2584 = vmatpush.msra.mxu0 %v2260
    %2585 = vmatpush.msra.mxu0 %v2258
    %2586 = vmatpush.msra.mxu0 %v2256
    %2587 = vmatpush.msra.mxu0 %v2254
    %2588 = vmatpush.msra.mxu0 %v2252
    %2589 = vmatpush.msra.mxu0 %v2250
    %2590 = vmatpush.msra.mxu0 %v2248
    %2591 = vmatpush.msra.mxu0 %v2246
    %2592 = vmatmul.f32.gmra.mxu0 %v2549
    %v2593 = vpop.f32.mrf.mxu0
    %v2594 = vadd.f32 %v2527, %v2593
    %2595 = vmatmul.f32.gmra.mxu0 %v2551
    %v2596 = vpop.f32.mrf.mxu0
    %v2597 = vadd.f32 %v2530, %v2596
    %2598 = vdwg.mxu0
    %v2599 = vld [vmem:[%s12] sm:$0x3]
    %v2601 = vperm.slane %v2599, 0
    %v2602 = vperm.slane %v2599, 1
    %v2605 = vadd.f32 %v2571, %v2601
    %v2606 = vadd.f32 %v2594, %v2602
    %v2607 = vadd.f32 %v2574, %v2601
    %v2608 = vadd.f32 %v2597, %v2602
    %v2613 = vrot.slane %v2606, 6
    %v2614 = vrot.slane %v2608, 6
    %v2615 = vsel %vm269, %v2605, %v2613
    %v2616 = vsel %vm271, %v2605, %v2613
    %v2617 = vrot.slane %v2616, 2
    %v2618 = vsel %vm274, %v2605, %v2613
    %v2619 = vrot.slane %v2618, 4
    %v2620 = vsel %vm277, %v2613, %v2605
    %v2621 = vrot.slane %v2620, 6
    %v2622 = vsel %vm269, %v2607, %v2614
    %v2623 = vsel %vm271, %v2607, %v2614
    %v2624 = vrot.slane %v2623, 2
    %v2625 = vsel %vm274, %v2607, %v2614
    %v2626 = vrot.slane %v2625, 4
    %v2627 = vsel %vm277, %v2614, %v2607
    %v2628 = vrot.slane %v2627, 6
    %v2637 = vld [vmem:[#allocation14] sm:$0xff]
    %v2638 = vld [vmem:[#allocation14 + $0x8] sm:$0xff]
    %v2639 = vld [vmem:[#allocation14 + $0x10] sm:$0xff]
    %v2640 = vld [vmem:[#allocation14 + $0x18] sm:$0xff]
    %v2641 = vld [vmem:[#allocation14 + $0x20] sm:$0xff]
    %v2642 = vld [vmem:[#allocation14 + $0x28] sm:$0xff]
    %v2643 = vld [vmem:[#allocation14 + $0x30] sm:$0xff]
    %v2644 = vld [vmem:[#allocation14 + $0x38] sm:$0xff]
    %v2645 = vld [vmem:[#allocation14 + $0x40] sm:$0xff]
    %v2646 = vld [vmem:[#allocation14 + $0x48] sm:$0xff]
    %v2647 = vld [vmem:[#allocation14 + $0x50] sm:$0xff]
    %v2648 = vld [vmem:[#allocation14 + $0x58] sm:$0xff]
    %v2649 = vld [vmem:[#allocation14 + $0x60] sm:$0xff]
    %v2650 = vld [vmem:[#allocation14 + $0x68] sm:$0xff]
    %v2651 = vld [vmem:[#allocation14 + $0x70] sm:$0xff]
    %v2652 = vld [vmem:[#allocation14 + $0x78] sm:$0xff]
    %v2653 = vld [vmem:[#allocation17] sm:$0xff]
    %v2654 = vld [vmem:[#allocation17 + $0x8] sm:$0xff]
    %v2655 = vld [vmem:[#allocation17 + $0x10] sm:$0xff]
    %v2656 = vld [vmem:[#allocation17 + $0x18] sm:$0xff]
    %v2657 = vld [vmem:[#allocation17 + $0x20] sm:$0xff]
    %v2658 = vld [vmem:[#allocation17 + $0x28] sm:$0xff]
    %v2659 = vld [vmem:[#allocation17 + $0x30] sm:$0xff]
    %v2660 = vld [vmem:[#allocation17 + $0x38] sm:$0xff]
    %v2661 = vld [vmem:[#allocation17 + $0x40] sm:$0xff]
    %v2662 = vld [vmem:[#allocation17 + $0x48] sm:$0xff]
    %v2663 = vld [vmem:[#allocation17 + $0x50] sm:$0xff]
    %v2664 = vld [vmem:[#allocation17 + $0x58] sm:$0xff]
    %v2665 = vld [vmem:[#allocation17 + $0x60] sm:$0xff]
    %v2666 = vld [vmem:[#allocation17 + $0x68] sm:$0xff]
    %v2667 = vld [vmem:[#allocation17 + $0x70] sm:$0xff]
    %v2668 = vld [vmem:[#allocation17 + $0x78] sm:$0xff]
    %2669 = vmatpush.msra.mxu0 0.0
    %2670 = vmatpush.msra.mxu0 0.0
    %2671 = vmatpush.msra.mxu0 0.0
    %2672 = vmatpush.msra.mxu0 0.0
    %2673 = vmatpush.msra.mxu0 0.0
    %2674 = vmatpush.msra.mxu0 0.0
    %2675 = vmatpush.msra.mxu0 0.0
    %2676 = vmatpush.msra.mxu0 0.0
    %2677 = vmatpush.msra.mxu0 %v2651
    %2678 = vmatpush.msra.mxu0 %v2649
    %2679 = vmatpush.msra.mxu0 %v2647
    %2680 = vmatpush.msra.mxu0 %v2645
    %2681 = vmatpush.msra.mxu0 %v2643
    %2682 = vmatpush.msra.mxu0 %v2641
    %2683 = vmatpush.msra.mxu0 %v2639
    %2684 = vmatpush.msra.mxu0 %v2637
    %2685 = vmatmul.f32.gmra.mxu0 %v442
    %v2686 = vpop.f32.mrf.mxu0
    %v2687 = vadd.f32 0.0, %v2686
    %2688 = vdwg.mxu0
    %2689 = vmatpush.msra.mxu0 0.0
    %2690 = vmatpush.msra.mxu0 0.0
    %2691 = vmatpush.msra.mxu0 0.0
    %2692 = vmatpush.msra.mxu0 0.0
    %2693 = vmatpush.msra.mxu0 0.0
    %2694 = vmatpush.msra.mxu0 0.0
    %2695 = vmatpush.msra.mxu0 0.0
    %2696 = vmatpush.msra.mxu0 0.0
    %2697 = vmatpush.msra.mxu0 %v2652
    %2698 = vmatpush.msra.mxu0 %v2650
    %2699 = vmatpush.msra.mxu0 %v2648
    %2700 = vmatpush.msra.mxu0 %v2646
    %2701 = vmatpush.msra.mxu0 %v2644
    %2702 = vmatpush.msra.mxu0 %v2642
    %2703 = vmatpush.msra.mxu0 %v2640
    %2704 = vmatpush.msra.mxu0 %v2638
    %2705 = vmatmul.f32.gmra.mxu0 %v442
    %v2706 = vpop.f32.mrf.mxu0
    %v2707 = vadd.f32 0.0, %v2706
    %2708 = vdwg.mxu0
    %v2711 = vrot.slane %v2707, 6
    %v2712 = vsel %vm269, %v2687, %v2711
    %v2714 = vadd.f32 %v2443, %v2712
    %v2715 = vxor.u32 %v2714, 2147483648
    %v2716 = vmul.f32 %v2715, 1.442695
    %v2717 = vpow.pop %v2716
    %v2718 = vadd.f32 %v2717, 1.0
    %v2719 = vrcp.pop %v2718
    %v2720 = vmul.f32 %v2718, %v2719
    %v2721 = vsub.f32 1.0, %v2720
    %v2722 = vmul.f32 %v2719, %v2721
    %v2723 = vadd.f32 %v2719, %v2722
    %vm2724 = vweird.f32 %v2718
    %vm2725 = vweird.f32 %v2719
    %vm2726 = vmor %vm2724, %vm2725
    %v2727 = vsel %vm2726, %v2719, %v2723
    %v2728 = vand.u32 2147483647, %v2718
    %vm2729 = vcmp.eq.f32.partialorder %v2728, 8.507059e+37
    %v2730 = vand.u32 %v2718, 2147483648
    %v2731 = vor.u32 1.1754944e-38, %v2730
    %v2732 = vsel %vm2729, %v2731, %v2727
    %v2733 = vmul.f32 1.0, %v2732
    %v2735 = vrot.slane %v2714, 2
    %v2737 = vtanh.pop %v2735
    %2738 = vrot.lane.b32.xlu0 %v2714, 64
    %v2739 = vpop.permute.xlu0 %2738
    %v2740 = vrot.slane %v2739, 2
    %v2742 = vxor.u32 %v2740, 2147483648
    %v2743 = vmul.f32 %v2742, 1.442695
    %v2744 = vpow.pop %v2743
    %v2745 = vadd.f32 %v2744, 1.0
    %v2746 = vrcp.pop %v2745
    %v2747 = vmul.f32 %v2745, %v2746
    %v2748 = vsub.f32 1.0, %v2747
    %v2749 = vmul.f32 %v2746, %v2748
    %v2750 = vadd.f32 %v2746, %v2749
    %vm2751 = vweird.f32 %v2745
    %vm2752 = vweird.f32 %v2746
    %vm2753 = vmor %vm2751, %vm2752
    %v2754 = vsel %vm2753, %v2746, %v2750
    %v2755 = vand.u32 2147483647, %v2745
    %vm2756 = vcmp.eq.f32.partialorder %v2755, 8.507059e+37
    %v2757 = vand.u32 %v2745, 2147483648
    %v2758 = vor.u32 1.1754944e-38, %v2757
    %v2759 = vsel %vm2756, %v2758, %v2754
    %v2760 = vmul.f32 1.0, %v2759
    %v2761 = vmul.f32 %v2733, 0.0
    %v2762 = vmul.f32 %v2733, %v2737
    %2764 = vrot.lane.b32.xlu0 %v2762, 64
    %v2765 = vpop.permute.xlu0 %2764
    %v2767 = vadd.f32 %v2761, %v2765
    %v2768 = vtanh.pop %v2767
    %2770 = vrot.lane.b32.xlu0 %v2768, 64
    %v2771 = vpop.permute.xlu0 %2770
    %v2773 = vmul.f32 %v2760, %v2771
    %2774 = vst.msk [vmem:[#allocation4] sm:$0x3] %vm549, %v2773
    %2775 = vmatpush.msra.mxu0 0.0
    %2776 = vmatpush.msra.mxu0 0.0
    %2777 = vmatpush.msra.mxu0 0.0
    %2778 = vmatpush.msra.mxu0 0.0
    %2779 = vmatpush.msra.mxu0 0.0
    %2780 = vmatpush.msra.mxu0 0.0
    %2781 = vmatpush.msra.mxu0 0.0
    %2782 = vmatpush.msra.mxu0 0.0
    %2783 = vmatpush.msra.mxu0 %v2667
    %2784 = vmatpush.msra.mxu0 %v2665
    %2785 = vmatpush.msra.mxu0 %v2663
    %2786 = vmatpush.msra.mxu0 %v2661
    %2787 = vmatpush.msra.mxu0 %v2659
    %2788 = vmatpush.msra.mxu0 %v2657
    %2789 = vmatpush.msra.mxu0 %v2655
    %2790 = vmatpush.msra.mxu0 %v2653
    %2791 = vmatmul.f32.gmra.mxu0 %v442
    %v2792 = vpop.f32.mrf.mxu0
    %v2793 = vadd.f32 0.0, %v2792
    %2794 = vdwg.mxu0
    %2795 = vmatpush.msra.mxu0 0.0
    %2796 = vmatpush.msra.mxu0 0.0
    %2797 = vmatpush.msra.mxu0 0.0
    %2798 = vmatpush.msra.mxu0 0.0
    %2799 = vmatpush.msra.mxu0 0.0
    %2800 = vmatpush.msra.mxu0 0.0
    %2801 = vmatpush.msra.mxu0 0.0
    %2802 = vmatpush.msra.mxu0 0.0
    %2803 = vmatpush.msra.mxu0 %v2668
    %2804 = vmatpush.msra.mxu0 %v2666
    %2805 = vmatpush.msra.mxu0 %v2664
    %2806 = vmatpush.msra.mxu0 %v2662
    %2807 = vmatpush.msra.mxu0 %v2660
    %2808 = vmatpush.msra.mxu0 %v2658
    %2809 = vmatpush.msra.mxu0 %v2656
    %2810 = vmatpush.msra.mxu0 %v2654
    %2811 = vmatmul.f32.gmra.mxu0 %v442
    %v2812 = vpop.f32.mrf.mxu0
    %v2813 = vadd.f32 0.0, %v2812
    %2814 = vdwg.mxu0
    %v2817 = vrot.slane %v2813, 6
    %v2818 = vsel %vm269, %v2793, %v2817
    %v2820 = vadd.f32 %v2628, %v2818
    %v2821 = vxor.u32 %v2820, 2147483648
    %v2822 = vmul.f32 %v2821, 1.442695
    %v2823 = vpow.pop %v2822
    %v2824 = vadd.f32 %v2823, 1.0
    %v2825 = vrcp.pop %v2824
    %v2826 = vmul.f32 %v2824, %v2825
    %v2827 = vsub.f32 1.0, %v2826
    %v2828 = vmul.f32 %v2825, %v2827
    %v2829 = vadd.f32 %v2825, %v2828
    %vm2830 = vweird.f32 %v2824
    %vm2831 = vweird.f32 %v2825
    %vm2832 = vmor %vm2830, %vm2831
    %v2833 = vsel %vm2832, %v2825, %v2829
    %v2834 = vand.u32 2147483647, %v2824
    %vm2835 = vcmp.eq.f32.partialorder %v2834, 8.507059e+37
    %v2836 = vand.u32 %v2824, 2147483648
    %v2837 = vor.u32 1.1754944e-38, %v2836
    %v2838 = vsel %vm2835, %v2837, %v2833
    %v2839 = vmul.f32 1.0, %v2838
    %v2841 = vrot.slane %v2820, 2
    %v2843 = vtanh.pop %v2841
    %2844 = vrot.lane.b32.xlu0 %v2820, 64
    %v2845 = vpop.permute.xlu0 %2844
    %v2846 = vrot.slane %v2845, 2
    %v2848 = vxor.u32 %v2846, 2147483648
    %v2849 = vmul.f32 %v2848, 1.442695
    %v2850 = vpow.pop %v2849
    %v2851 = vadd.f32 %v2850, 1.0
    %v2852 = vrcp.pop %v2851
    %v2853 = vmul.f32 %v2851, %v2852
    %v2854 = vsub.f32 1.0, %v2853
    %v2855 = vmul.f32 %v2852, %v2854
    %v2856 = vadd.f32 %v2852, %v2855
    %vm2857 = vweird.f32 %v2851
    %vm2858 = vweird.f32 %v2852
    %vm2859 = vmor %vm2857, %vm2858
    %v2860 = vsel %vm2859, %v2852, %v2856
    %v2861 = vand.u32 2147483647, %v2851
    %vm2862 = vcmp.eq.f32.partialorder %v2861, 8.507059e+37
    %v2863 = vand.u32 %v2851, 2147483648
    %v2864 = vor.u32 1.1754944e-38, %v2863
    %v2865 = vsel %vm2862, %v2864, %v2860
    %v2866 = vmul.f32 1.0, %v2865
    %v2867 = vmul.f32 %v2839, 0.0
    %v2868 = vmul.f32 %v2839, %v2843
    %2870 = vrot.lane.b32.xlu0 %v2868, 64
    %v2871 = vpop.permute.xlu0 %2870
    %v2873 = vadd.f32 %v2867, %v2871
    %v2874 = vtanh.pop %v2873
    %2876 = vrot.lane.b32.xlu0 %v2874, 64
    %v2877 = vpop.permute.xlu0 %2876
    %v2879 = vmul.f32 %v2866, %v2877
    %s2880 = scalar_lea.vmem [#allocation5], 14
    %2881 = vst.msk [vmem:[%s2880] sm:$0x3] %vm549, %v2879
    %v2883 = vsel %vm440, %v2773, 0
    %2885 = vmatpush.msra.mxu0 0.0
    %2886 = vmatpush.msra.mxu0 0.0
    %2887 = vmatpush.msra.mxu0 0.0
    %2888 = vmatpush.msra.mxu0 0.0
    %2889 = vmatpush.msra.mxu0 0.0
    %2890 = vmatpush.msra.mxu0 0.0
    %2891 = vmatpush.msra.mxu0 0.0
    %2892 = vmatpush.msra.mxu0 0.0
    %2893 = vmatpush.msra.mxu0 %v2651
    %2894 = vmatpush.msra.mxu0 %v2649
    %2895 = vmatpush.msra.mxu0 %v2647
    %2896 = vmatpush.msra.mxu0 %v2645
    %2897 = vmatpush.msra.mxu0 %v2643
    %2898 = vmatpush.msra.mxu0 %v2641
    %2899 = vmatpush.msra.mxu0 %v2639
    %2900 = vmatpush.msra.mxu0 %v2637
    %2901 = vmatmul.f32.gmra.mxu0 %v2883
    %v2902 = vpop.f32.mrf.mxu0
    %v2903 = vadd.f32 0.0, %v2902
    %2904 = vdwg.mxu0
    %2905 = vmatpush.msra.mxu0 0.0
    %2906 = vmatpush.msra.mxu0 0.0
    %2907 = vmatpush.msra.mxu0 0.0
    %2908 = vmatpush.msra.mxu0 0.0
    %2909 = vmatpush.msra.mxu0 0.0
    %2910 = vmatpush.msra.mxu0 0.0
    %2911 = vmatpush.msra.mxu0 0.0
    %2912 = vmatpush.msra.mxu0 0.0
    %2913 = vmatpush.msra.mxu0 %v2652
    %2914 = vmatpush.msra.mxu0 %v2650
    %2915 = vmatpush.msra.mxu0 %v2648
    %2916 = vmatpush.msra.mxu0 %v2646
    %2917 = vmatpush.msra.mxu0 %v2644
    %2918 = vmatpush.msra.mxu0 %v2642
    %2919 = vmatpush.msra.mxu0 %v2640
    %2920 = vmatpush.msra.mxu0 %v2638
    %2921 = vmatmul.f32.gmra.mxu0 %v2883
    %v2922 = vpop.f32.mrf.mxu0
    %v2923 = vadd.f32 0.0, %v2922
    %2924 = vdwg.mxu0
    %v2927 = vrot.slane %v2923, 6
    %v2928 = vsel %vm269, %v2903, %v2927
    %v2930 = vadd.f32 %v2445, %v2928
    %v2931 = vxor.u32 %v2930, 2147483648
    %v2932 = vmul.f32 %v2931, 1.442695
    %v2933 = vpow.pop %v2932
    %v2934 = vadd.f32 %v2933, 1.0
    %v2935 = vrcp.pop %v2934
    %v2936 = vmul.f32 %v2934, %v2935
    %v2937 = vsub.f32 1.0, %v2936
    %v2938 = vmul.f32 %v2935, %v2937
    %v2939 = vadd.f32 %v2935, %v2938
    %vm2940 = vweird.f32 %v2934
    %vm2941 = vweird.f32 %v2935
    %vm2942 = vmor %vm2940, %vm2941
    %v2943 = vsel %vm2942, %v2935, %v2939
    %v2944 = vand.u32 2147483647, %v2934
    %vm2945 = vcmp.eq.f32.partialorder %v2944, 8.507059e+37
    %v2946 = vand.u32 %v2934, 2147483648
    %v2947 = vor.u32 1.1754944e-38, %v2946
    %v2948 = vsel %vm2945, %v2947, %v2943
    %v2949 = vmul.f32 1.0, %v2948
    %v2951 = vrot.slane %v2930, 2
    %v2953 = vtanh.pop %v2951
    %2954 = vrot.lane.b32.xlu0 %v2930, 64
    %v2955 = vpop.permute.xlu0 %2954
    %v2956 = vrot.slane %v2955, 2
    %v2958 = vxor.u32 %v2956, 2147483648
    %v2959 = vmul.f32 %v2958, 1.442695
    %v2960 = vpow.pop %v2959
    %v2961 = vadd.f32 %v2960, 1.0
    %v2962 = vrcp.pop %v2961
    %v2963 = vmul.f32 %v2961, %v2962
    %v2964 = vsub.f32 1.0, %v2963
    %v2965 = vmul.f32 %v2962, %v2964
    %v2966 = vadd.f32 %v2962, %v2965
    %vm2967 = vweird.f32 %v2961
    %vm2968 = vweird.f32 %v2962
    %vm2969 = vmor %vm2967, %vm2968
    %v2970 = vsel %vm2969, %v2962, %v2966
    %v2971 = vand.u32 2147483647, %v2961
    %vm2972 = vcmp.eq.f32.partialorder %v2971, 8.507059e+37
    %v2973 = vand.u32 %v2961, 2147483648
    %v2974 = vor.u32 1.1754944e-38, %v2973
    %v2975 = vsel %vm2972, %v2974, %v2970
    %v2976 = vmul.f32 1.0, %v2975
    %v2977 = vmul.f32 %v2949, %v2767
    %v2978 = vmul.f32 %v2949, %v2953
    %2980 = vrot.lane.b32.xlu0 %v2978, 64
    %v2981 = vpop.permute.xlu0 %2980
    %v2983 = vadd.f32 %v2977, %v2981
    %v2984 = vtanh.pop %v2983
    %2986 = vrot.lane.b32.xlu0 %v2984, 64
    %v2987 = vpop.permute.xlu0 %2986
    %v2989 = vmul.f32 %v2976, %v2987
    %s2990 = scalar_lea.vmem [#allocation4], 2
    %2991 = vst.msk [vmem:[%s2990] sm:$0x3] %vm549, %v2989
    %v2993 = vsel %vm440, %v2879, 0
    %2995 = vmatpush.msra.mxu0 0.0
    %2996 = vmatpush.msra.mxu0 0.0
    %2997 = vmatpush.msra.mxu0 0.0
    %2998 = vmatpush.msra.mxu0 0.0
    %2999 = vmatpush.msra.mxu0 0.0
    %3000 = vmatpush.msra.mxu0 0.0
    %3001 = vmatpush.msra.mxu0 0.0
    %3002 = vmatpush.msra.mxu0 0.0
    %3003 = vmatpush.msra.mxu0 %v2667
    %3004 = vmatpush.msra.mxu0 %v2665
    %3005 = vmatpush.msra.mxu0 %v2663
    %3006 = vmatpush.msra.mxu0 %v2661
    %3007 = vmatpush.msra.mxu0 %v2659
    %3008 = vmatpush.msra.mxu0 %v2657
    %3009 = vmatpush.msra.mxu0 %v2655
    %3010 = vmatpush.msra.mxu0 %v2653
    %3011 = vmatmul.f32.gmra.mxu0 %v2993
    %v3012 = vpop.f32.mrf.mxu0
    %v3013 = vadd.f32 0.0, %v3012
    %3014 = vdwg.mxu0
    %3015 = vmatpush.msra.mxu0 0.0
    %3016 = vmatpush.msra.mxu0 0.0
    %3017 = vmatpush.msra.mxu0 0.0
    %3018 = vmatpush.msra.mxu0 0.0
    %3019 = vmatpush.msra.mxu0 0.0
    %3020 = vmatpush.msra.mxu0 0.0
    %3021 = vmatpush.msra.mxu0 0.0
    %3022 = vmatpush.msra.mxu0 0.0
    %3023 = vmatpush.msra.mxu0 %v2668
    %3024 = vmatpush.msra.mxu0 %v2666
    %3025 = vmatpush.msra.mxu0 %v2664
    %3026 = vmatpush.msra.mxu0 %v2662
    %3027 = vmatpush.msra.mxu0 %v2660
    %3028 = vmatpush.msra.mxu0 %v2658
    %3029 = vmatpush.msra.mxu0 %v2656
    %3030 = vmatpush.msra.mxu0 %v2654
    %3031 = vmatmul.f32.gmra.mxu0 %v2993
    %v3032 = vpop.f32.mrf.mxu0
    %v3033 = vadd.f32 0.0, %v3032
    %3034 = vdwg.mxu0
    %v3037 = vrot.slane %v3033, 6
    %v3038 = vsel %vm269, %v3013, %v3037
    %v3040 = vadd.f32 %v2626, %v3038
    %v3041 = vxor.u32 %v3040, 2147483648
    %v3042 = vmul.f32 %v3041, 1.442695
    %v3043 = vpow.pop %v3042
    %v3044 = vadd.f32 %v3043, 1.0
    %v3045 = vrcp.pop %v3044
    %v3046 = vmul.f32 %v3044, %v3045
    %v3047 = vsub.f32 1.0, %v3046
    %v3048 = vmul.f32 %v3045, %v3047
    %v3049 = vadd.f32 %v3045, %v3048
    %vm3050 = vweird.f32 %v3044
    %vm3051 = vweird.f32 %v3045
    %vm3052 = vmor %vm3050, %vm3051
    %v3053 = vsel %vm3052, %v3045, %v3049
    %v3054 = vand.u32 2147483647, %v3044
    %vm3055 = vcmp.eq.f32.partialorder %v3054, 8.507059e+37
    %v3056 = vand.u32 %v3044, 2147483648
    %v3057 = vor.u32 1.1754944e-38, %v3056
    %v3058 = vsel %vm3055, %v3057, %v3053
    %v3059 = vmul.f32 1.0, %v3058
    %v3061 = vrot.slane %v3040, 2
    %v3063 = vtanh.pop %v3061
    %3064 = vrot.lane.b32.xlu0 %v3040, 64
    %v3065 = vpop.permute.xlu0 %3064
    %v3066 = vrot.slane %v3065, 2
    %v3068 = vxor.u32 %v3066, 2147483648
    %v3069 = vmul.f32 %v3068, 1.442695
    %v3070 = vpow.pop %v3069
    %v3071 = vadd.f32 %v3070, 1.0
    %v3072 = vrcp.pop %v3071
    %v3073 = vmul.f32 %v3071, %v3072
    %v3074 = vsub.f32 1.0, %v3073
    %v3075 = vmul.f32 %v3072, %v3074
    %v3076 = vadd.f32 %v3072, %v3075
    %vm3077 = vweird.f32 %v3071
    %vm3078 = vweird.f32 %v3072
    %vm3079 = vmor %vm3077, %vm3078
    %v3080 = vsel %vm3079, %v3072, %v3076
    %v3081 = vand.u32 2147483647, %v3071
    %vm3082 = vcmp.eq.f32.partialorder %v3081, 8.507059e+37
    %v3083 = vand.u32 %v3071, 2147483648
    %v3084 = vor.u32 1.1754944e-38, %v3083
    %v3085 = vsel %vm3082, %v3084, %v3080
    %v3086 = vmul.f32 1.0, %v3085
    %v3087 = vmul.f32 %v3059, %v2873
    %v3088 = vmul.f32 %v3059, %v3063
    %3090 = vrot.lane.b32.xlu0 %v3088, 64
    %v3091 = vpop.permute.xlu0 %3090
    %v3093 = vadd.f32 %v3087, %v3091
    %v3094 = vtanh.pop %v3093
    %3096 = vrot.lane.b32.xlu0 %v3094, 64
    %v3097 = vpop.permute.xlu0 %3096
    %v3099 = vmul.f32 %v3086, %v3097
    %s3100 = scalar_lea.vmem [#allocation5], 12
    %3101 = vst.msk [vmem:[%s3100] sm:$0x3] %vm549, %v3099
    %v3103 = vsel %vm440, %v2989, 0
    %3105 = vmatpush.msra.mxu0 0.0
    %3106 = vmatpush.msra.mxu0 0.0
    %3107 = vmatpush.msra.mxu0 0.0
    %3108 = vmatpush.msra.mxu0 0.0
    %3109 = vmatpush.msra.mxu0 0.0
    %3110 = vmatpush.msra.mxu0 0.0
    %3111 = vmatpush.msra.mxu0 0.0
    %3112 = vmatpush.msra.mxu0 0.0
    %3113 = vmatpush.msra.mxu0 %v2651
    %3114 = vmatpush.msra.mxu0 %v2649
    %3115 = vmatpush.msra.mxu0 %v2647
    %3116 = vmatpush.msra.mxu0 %v2645
    %3117 = vmatpush.msra.mxu0 %v2643
    %3118 = vmatpush.msra.mxu0 %v2641
    %3119 = vmatpush.msra.mxu0 %v2639
    %3120 = vmatpush.msra.mxu0 %v2637
    %3121 = vmatmul.f32.gmra.mxu0 %v3103
    %v3122 = vpop.f32.mrf.mxu0
    %v3123 = vadd.f32 0.0, %v3122
    %3124 = vdwg.mxu0
    %3125 = vmatpush.msra.mxu0 0.0
    %3126 = vmatpush.msra.mxu0 0.0
    %3127 = vmatpush.msra.mxu0 0.0
    %3128 = vmatpush.msra.mxu0 0.0
    %3129 = vmatpush.msra.mxu0 0.0
    %3130 = vmatpush.msra.mxu0 0.0
    %3131 = vmatpush.msra.mxu0 0.0
    %3132 = vmatpush.msra.mxu0 0.0
    %3133 = vmatpush.msra.mxu0 %v2652
    %3134 = vmatpush.msra.mxu0 %v2650
    %3135 = vmatpush.msra.mxu0 %v2648
    %3136 = vmatpush.msra.mxu0 %v2646
    %3137 = vmatpush.msra.mxu0 %v2644
    %3138 = vmatpush.msra.mxu0 %v2642
    %3139 = vmatpush.msra.mxu0 %v2640
    %3140 = vmatpush.msra.mxu0 %v2638
    %3141 = vmatmul.f32.gmra.mxu0 %v3103
    %v3142 = vpop.f32.mrf.mxu0
    %v3143 = vadd.f32 0.0, %v3142
    %3144 = vdwg.mxu0
    %v3147 = vrot.slane %v3143, 6
    %v3148 = vsel %vm269, %v3123, %v3147
    %v3150 = vadd.f32 %v2447, %v3148
    %v3151 = vxor.u32 %v3150, 2147483648
    %v3152 = vmul.f32 %v3151, 1.442695
    %v3153 = vpow.pop %v3152
    %v3154 = vadd.f32 %v3153, 1.0
    %v3155 = vrcp.pop %v3154
    %v3156 = vmul.f32 %v3154, %v3155
    %v3157 = vsub.f32 1.0, %v3156
    %v3158 = vmul.f32 %v3155, %v3157
    %v3159 = vadd.f32 %v3155, %v3158
    %vm3160 = vweird.f32 %v3154
    %vm3161 = vweird.f32 %v3155
    %vm3162 = vmor %vm3160, %vm3161
    %v3163 = vsel %vm3162, %v3155, %v3159
    %v3164 = vand.u32 2147483647, %v3154
    %vm3165 = vcmp.eq.f32.partialorder %v3164, 8.507059e+37
    %v3166 = vand.u32 %v3154, 2147483648
    %v3167 = vor.u32 1.1754944e-38, %v3166
    %v3168 = vsel %vm3165, %v3167, %v3163
    %v3169 = vmul.f32 1.0, %v3168
    %v3171 = vrot.slane %v3150, 2
    %v3173 = vtanh.pop %v3171
    %3174 = vrot.lane.b32.xlu0 %v3150, 64
    %v3175 = vpop.permute.xlu0 %3174
    %v3176 = vrot.slane %v3175, 2
    %v3178 = vxor.u32 %v3176, 2147483648
    %v3179 = vmul.f32 %v3178, 1.442695
    %v3180 = vpow.pop %v3179
    %v3181 = vadd.f32 %v3180, 1.0
    %v3182 = vrcp.pop %v3181
    %v3183 = vmul.f32 %v3181, %v3182
    %v3184 = vsub.f32 1.0, %v3183
    %v3185 = vmul.f32 %v3182, %v3184
    %v3186 = vadd.f32 %v3182, %v3185
    %vm3187 = vweird.f32 %v3181
    %vm3188 = vweird.f32 %v3182
    %vm3189 = vmor %vm3187, %vm3188
    %v3190 = vsel %vm3189, %v3182, %v3186
    %v3191 = vand.u32 2147483647, %v3181
    %vm3192 = vcmp.eq.f32.partialorder %v3191, 8.507059e+37
    %v3193 = vand.u32 %v3181, 2147483648
    %v3194 = vor.u32 1.1754944e-38, %v3193
    %v3195 = vsel %vm3192, %v3194, %v3190
    %v3196 = vmul.f32 1.0, %v3195
    %v3197 = vmul.f32 %v3169, %v2983
    %v3198 = vmul.f32 %v3169, %v3173
    %3200 = vrot.lane.b32.xlu0 %v3198, 64
    %v3201 = vpop.permute.xlu0 %3200
    %v3203 = vadd.f32 %v3197, %v3201
    %v3204 = vtanh.pop %v3203
    %3206 = vrot.lane.b32.xlu0 %v3204, 64
    %v3207 = vpop.permute.xlu0 %3206
    %v3209 = vmul.f32 %v3196, %v3207
    %s3210 = scalar_lea.vmem [#allocation4], 4
    %3211 = vst.msk [vmem:[%s3210] sm:$0x3] %vm549, %v3209
    %v3213 = vsel %vm440, %v3099, 0
    %3215 = vmatpush.msra.mxu0 0.0
    %3216 = vmatpush.msra.mxu0 0.0
    %3217 = vmatpush.msra.mxu0 0.0
    %3218 = vmatpush.msra.mxu0 0.0
    %3219 = vmatpush.msra.mxu0 0.0
    %3220 = vmatpush.msra.mxu0 0.0
    %3221 = vmatpush.msra.mxu0 0.0
    %3222 = vmatpush.msra.mxu0 0.0
    %3223 = vmatpush.msra.mxu0 %v2667
    %3224 = vmatpush.msra.mxu0 %v2665
    %3225 = vmatpush.msra.mxu0 %v2663
    %3226 = vmatpush.msra.mxu0 %v2661
    %3227 = vmatpush.msra.mxu0 %v2659
    %3228 = vmatpush.msra.mxu0 %v2657
    %3229 = vmatpush.msra.mxu0 %v2655
    %3230 = vmatpush.msra.mxu0 %v2653
    %3231 = vmatmul.f32.gmra.mxu0 %v3213
    %v3232 = vpop.f32.mrf.mxu0
    %v3233 = vadd.f32 0.0, %v3232
    %3234 = vdwg.mxu0
    %3235 = vmatpush.msra.mxu0 0.0
    %3236 = vmatpush.msra.mxu0 0.0
    %3237 = vmatpush.msra.mxu0 0.0
    %3238 = vmatpush.msra.mxu0 0.0
    %3239 = vmatpush.msra.mxu0 0.0
    %3240 = vmatpush.msra.mxu0 0.0
    %3241 = vmatpush.msra.mxu0 0.0
    %3242 = vmatpush.msra.mxu0 0.0
    %3243 = vmatpush.msra.mxu0 %v2668
    %3244 = vmatpush.msra.mxu0 %v2666
    %3245 = vmatpush.msra.mxu0 %v2664
    %3246 = vmatpush.msra.mxu0 %v2662
    %3247 = vmatpush.msra.mxu0 %v2660
    %3248 = vmatpush.msra.mxu0 %v2658
    %3249 = vmatpush.msra.mxu0 %v2656
    %3250 = vmatpush.msra.mxu0 %v2654
    %3251 = vmatmul.f32.gmra.mxu0 %v3213
    %v3252 = vpop.f32.mrf.mxu0
    %v3253 = vadd.f32 0.0, %v3252
    %3254 = vdwg.mxu0
    %v3257 = vrot.slane %v3253, 6
    %v3258 = vsel %vm269, %v3233, %v3257
    %v3260 = vadd.f32 %v2624, %v3258
    %v3261 = vxor.u32 %v3260, 2147483648
    %v3262 = vmul.f32 %v3261, 1.442695
    %v3263 = vpow.pop %v3262
    %v3264 = vadd.f32 %v3263, 1.0
    %v3265 = vrcp.pop %v3264
    %v3266 = vmul.f32 %v3264, %v3265
    %v3267 = vsub.f32 1.0, %v3266
    %v3268 = vmul.f32 %v3265, %v3267
    %v3269 = vadd.f32 %v3265, %v3268
    %vm3270 = vweird.f32 %v3264
    %vm3271 = vweird.f32 %v3265
    %vm3272 = vmor %vm3270, %vm3271
    %v3273 = vsel %vm3272, %v3265, %v3269
    %v3274 = vand.u32 2147483647, %v3264
    %vm3275 = vcmp.eq.f32.partialorder %v3274, 8.507059e+37
    %v3276 = vand.u32 %v3264, 2147483648
    %v3277 = vor.u32 1.1754944e-38, %v3276
    %v3278 = vsel %vm3275, %v3277, %v3273
    %v3279 = vmul.f32 1.0, %v3278
    %v3281 = vrot.slane %v3260, 2
    %v3283 = vtanh.pop %v3281
    %3284 = vrot.lane.b32.xlu0 %v3260, 64
    %v3285 = vpop.permute.xlu0 %3284
    %v3286 = vrot.slane %v3285, 2
    %v3288 = vxor.u32 %v3286, 2147483648
    %v3289 = vmul.f32 %v3288, 1.442695
    %v3290 = vpow.pop %v3289
    %v3291 = vadd.f32 %v3290, 1.0
    %v3292 = vrcp.pop %v3291
    %v3293 = vmul.f32 %v3291, %v3292
    %v3294 = vsub.f32 1.0, %v3293
    %v3295 = vmul.f32 %v3292, %v3294
    %v3296 = vadd.f32 %v3292, %v3295
    %vm3297 = vweird.f32 %v3291
    %vm3298 = vweird.f32 %v3292
    %vm3299 = vmor %vm3297, %vm3298
    %v3300 = vsel %vm3299, %v3292, %v3296
    %v3301 = vand.u32 2147483647, %v3291
    %vm3302 = vcmp.eq.f32.partialorder %v3301, 8.507059e+37
    %v3303 = vand.u32 %v3291, 2147483648
    %v3304 = vor.u32 1.1754944e-38, %v3303
    %v3305 = vsel %vm3302, %v3304, %v3300
    %v3306 = vmul.f32 1.0, %v3305
    %v3307 = vmul.f32 %v3279, %v3093
    %v3308 = vmul.f32 %v3279, %v3283
    %3310 = vrot.lane.b32.xlu0 %v3308, 64
    %v3311 = vpop.permute.xlu0 %3310
    %v3313 = vadd.f32 %v3307, %v3311
    %v3314 = vtanh.pop %v3313
    %3316 = vrot.lane.b32.xlu0 %v3314, 64
    %v3317 = vpop.permute.xlu0 %3316
    %v3319 = vmul.f32 %v3306, %v3317
    %s3320 = scalar_lea.vmem [#allocation5], 10
    %3321 = vst.msk [vmem:[%s3320] sm:$0x3] %vm549, %v3319
    %v3323 = vsel %vm440, %v3209, 0
    %3325 = vmatpush.msra.mxu0 0.0
    %3326 = vmatpush.msra.mxu0 0.0
    %3327 = vmatpush.msra.mxu0 0.0
    %3328 = vmatpush.msra.mxu0 0.0
    %3329 = vmatpush.msra.mxu0 0.0
    %3330 = vmatpush.msra.mxu0 0.0
    %3331 = vmatpush.msra.mxu0 0.0
    %3332 = vmatpush.msra.mxu0 0.0
    %3333 = vmatpush.msra.mxu0 %v2651
    %3334 = vmatpush.msra.mxu0 %v2649
    %3335 = vmatpush.msra.mxu0 %v2647
    %3336 = vmatpush.msra.mxu0 %v2645
    %3337 = vmatpush.msra.mxu0 %v2643
    %3338 = vmatpush.msra.mxu0 %v2641
    %3339 = vmatpush.msra.mxu0 %v2639
    %3340 = vmatpush.msra.mxu0 %v2637
    %3341 = vmatmul.f32.gmra.mxu0 %v3323
    %v3342 = vpop.f32.mrf.mxu0
    %v3343 = vadd.f32 0.0, %v3342
    %3344 = vdwg.mxu0
    %3345 = vmatpush.msra.mxu0 0.0
    %3346 = vmatpush.msra.mxu0 0.0
    %3347 = vmatpush.msra.mxu0 0.0
    %3348 = vmatpush.msra.mxu0 0.0
    %3349 = vmatpush.msra.mxu0 0.0
    %3350 = vmatpush.msra.mxu0 0.0
    %3351 = vmatpush.msra.mxu0 0.0
    %3352 = vmatpush.msra.mxu0 0.0
    %3353 = vmatpush.msra.mxu0 %v2652
    %3354 = vmatpush.msra.mxu0 %v2650
    %3355 = vmatpush.msra.mxu0 %v2648
    %3356 = vmatpush.msra.mxu0 %v2646
    %3357 = vmatpush.msra.mxu0 %v2644
    %3358 = vmatpush.msra.mxu0 %v2642
    %3359 = vmatpush.msra.mxu0 %v2640
    %3360 = vmatpush.msra.mxu0 %v2638
    %3361 = vmatmul.f32.gmra.mxu0 %v3323
    %v3362 = vpop.f32.mrf.mxu0
    %v3363 = vadd.f32 0.0, %v3362
    %3364 = vdwg.mxu0
    %v3367 = vrot.slane %v3363, 6
    %v3368 = vsel %vm269, %v3343, %v3367
    %v3370 = vadd.f32 %v2449, %v3368
    %v3371 = vxor.u32 %v3370, 2147483648
    %v3372 = vmul.f32 %v3371, 1.442695
    %v3373 = vpow.pop %v3372
    %v3374 = vadd.f32 %v3373, 1.0
    %v3375 = vrcp.pop %v3374
    %v3376 = vmul.f32 %v3374, %v3375
    %v3377 = vsub.f32 1.0, %v3376
    %v3378 = vmul.f32 %v3375, %v3377
    %v3379 = vadd.f32 %v3375, %v3378
    %vm3380 = vweird.f32 %v3374
    %vm3381 = vweird.f32 %v3375
    %vm3382 = vmor %vm3380, %vm3381
    %v3383 = vsel %vm3382, %v3375, %v3379
    %v3384 = vand.u32 2147483647, %v3374
    %vm3385 = vcmp.eq.f32.partialorder %v3384, 8.507059e+37
    %v3386 = vand.u32 %v3374, 2147483648
    %v3387 = vor.u32 1.1754944e-38, %v3386
    %v3388 = vsel %vm3385, %v3387, %v3383
    %v3389 = vmul.f32 1.0, %v3388
    %v3391 = vrot.slane %v3370, 2
    %v3393 = vtanh.pop %v3391
    %3394 = vrot.lane.b32.xlu0 %v3370, 64
    %v3395 = vpop.permute.xlu0 %3394
    %v3396 = vrot.slane %v3395, 2
    %v3398 = vxor.u32 %v3396, 2147483648
    %v3399 = vmul.f32 %v3398, 1.442695
    %v3400 = vpow.pop %v3399
    %v3401 = vadd.f32 %v3400, 1.0
    %v3402 = vrcp.pop %v3401
    %v3403 = vmul.f32 %v3401, %v3402
    %v3404 = vsub.f32 1.0, %v3403
    %v3405 = vmul.f32 %v3402, %v3404
    %v3406 = vadd.f32 %v3402, %v3405
    %vm3407 = vweird.f32 %v3401
    %vm3408 = vweird.f32 %v3402
    %vm3409 = vmor %vm3407, %vm3408
    %v3410 = vsel %vm3409, %v3402, %v3406
    %v3411 = vand.u32 2147483647, %v3401
    %vm3412 = vcmp.eq.f32.partialorder %v3411, 8.507059e+37
    %v3413 = vand.u32 %v3401, 2147483648
    %v3414 = vor.u32 1.1754944e-38, %v3413
    %v3415 = vsel %vm3412, %v3414, %v3410
    %v3416 = vmul.f32 1.0, %v3415
    %v3417 = vmul.f32 %v3389, %v3203
    %v3418 = vmul.f32 %v3389, %v3393
    %3420 = vrot.lane.b32.xlu0 %v3418, 64
    %v3421 = vpop.permute.xlu0 %3420
    %v3423 = vadd.f32 %v3417, %v3421
    %v3424 = vtanh.pop %v3423
    %3426 = vrot.lane.b32.xlu0 %v3424, 64
    %v3427 = vpop.permute.xlu0 %3426
    %v3429 = vmul.f32 %v3416, %v3427
    %s3430 = scalar_lea.vmem [#allocation4], 6
    %3431 = vst.msk [vmem:[%s3430] sm:$0x3] %vm549, %v3429
    %v3433 = vsel %vm440, %v3319, 0
    %3435 = vmatpush.msra.mxu0 0.0
    %3436 = vmatpush.msra.mxu0 0.0
    %3437 = vmatpush.msra.mxu0 0.0
    %3438 = vmatpush.msra.mxu0 0.0
    %3439 = vmatpush.msra.mxu0 0.0
    %3440 = vmatpush.msra.mxu0 0.0
    %3441 = vmatpush.msra.mxu0 0.0
    %3442 = vmatpush.msra.mxu0 0.0
    %3443 = vmatpush.msra.mxu0 %v2667
    %3444 = vmatpush.msra.mxu0 %v2665
    %3445 = vmatpush.msra.mxu0 %v2663
    %3446 = vmatpush.msra.mxu0 %v2661
    %3447 = vmatpush.msra.mxu0 %v2659
    %3448 = vmatpush.msra.mxu0 %v2657
    %3449 = vmatpush.msra.mxu0 %v2655
    %3450 = vmatpush.msra.mxu0 %v2653
    %3451 = vmatmul.f32.gmra.mxu0 %v3433
    %v3452 = vpop.f32.mrf.mxu0
    %v3453 = vadd.f32 0.0, %v3452
    %3454 = vdwg.mxu0
    %3455 = vmatpush.msra.mxu0 0.0
    %3456 = vmatpush.msra.mxu0 0.0
    %3457 = vmatpush.msra.mxu0 0.0
    %3458 = vmatpush.msra.mxu0 0.0
    %3459 = vmatpush.msra.mxu0 0.0
    %3460 = vmatpush.msra.mxu0 0.0
    %3461 = vmatpush.msra.mxu0 0.0
    %3462 = vmatpush.msra.mxu0 0.0
    %3463 = vmatpush.msra.mxu0 %v2668
    %3464 = vmatpush.msra.mxu0 %v2666
    %3465 = vmatpush.msra.mxu0 %v2664
    %3466 = vmatpush.msra.mxu0 %v2662
    %3467 = vmatpush.msra.mxu0 %v2660
    %3468 = vmatpush.msra.mxu0 %v2658
    %3469 = vmatpush.msra.mxu0 %v2656
    %3470 = vmatpush.msra.mxu0 %v2654
    %3471 = vmatmul.f32.gmra.mxu0 %v3433
    %v3472 = vpop.f32.mrf.mxu0
    %v3473 = vadd.f32 0.0, %v3472
    %3474 = vdwg.mxu0
    %v3477 = vrot.slane %v3473, 6
    %v3478 = vsel %vm269, %v3453, %v3477
    %v3480 = vadd.f32 %v2622, %v3478
    %v3481 = vxor.u32 %v3480, 2147483648
    %v3482 = vmul.f32 %v3481, 1.442695
    %v3483 = vpow.pop %v3482
    %v3484 = vadd.f32 %v3483, 1.0
    %v3485 = vrcp.pop %v3484
    %v3486 = vmul.f32 %v3484, %v3485
    %v3487 = vsub.f32 1.0, %v3486
    %v3488 = vmul.f32 %v3485, %v3487
    %v3489 = vadd.f32 %v3485, %v3488
    %vm3490 = vweird.f32 %v3484
    %vm3491 = vweird.f32 %v3485
    %vm3492 = vmor %vm3490, %vm3491
    %v3493 = vsel %vm3492, %v3485, %v3489
    %v3494 = vand.u32 2147483647, %v3484
    %vm3495 = vcmp.eq.f32.partialorder %v3494, 8.507059e+37
    %v3496 = vand.u32 %v3484, 2147483648
    %v3497 = vor.u32 1.1754944e-38, %v3496
    %v3498 = vsel %vm3495, %v3497, %v3493
    %v3499 = vmul.f32 1.0, %v3498
    %v3501 = vrot.slane %v3480, 2
    %v3503 = vtanh.pop %v3501
    %3504 = vrot.lane.b32.xlu0 %v3480, 64
    %v3505 = vpop.permute.xlu0 %3504
    %v3506 = vrot.slane %v3505, 2
    %v3508 = vxor.u32 %v3506, 2147483648
    %v3509 = vmul.f32 %v3508, 1.442695
    %v3510 = vpow.pop %v3509
    %v3511 = vadd.f32 %v3510, 1.0
    %v3512 = vrcp.pop %v3511
    %v3513 = vmul.f32 %v3511, %v3512
    %v3514 = vsub.f32 1.0, %v3513
    %v3515 = vmul.f32 %v3512, %v3514
    %v3516 = vadd.f32 %v3512, %v3515
    %vm3517 = vweird.f32 %v3511
    %vm3518 = vweird.f32 %v3512
    %vm3519 = vmor %vm3517, %vm3518
    %v3520 = vsel %vm3519, %v3512, %v3516
    %v3521 = vand.u32 2147483647, %v3511
    %vm3522 = vcmp.eq.f32.partialorder %v3521, 8.507059e+37
    %v3523 = vand.u32 %v3511, 2147483648
    %v3524 = vor.u32 1.1754944e-38, %v3523
    %v3525 = vsel %vm3522, %v3524, %v3520
    %v3526 = vmul.f32 1.0, %v3525
    %v3527 = vmul.f32 %v3499, %v3313
    %v3528 = vmul.f32 %v3499, %v3503
    %3530 = vrot.lane.b32.xlu0 %v3528, 64
    %v3531 = vpop.permute.xlu0 %3530
    %v3533 = vadd.f32 %v3527, %v3531
    %v3534 = vtanh.pop %v3533
    %3536 = vrot.lane.b32.xlu0 %v3534, 64
    %v3537 = vpop.permute.xlu0 %3536
    %v3539 = vmul.f32 %v3526, %v3537
    %s3540 = scalar_lea.vmem [#allocation5], 8
    %3541 = vst.msk [vmem:[%s3540] sm:$0x3] %vm549, %v3539
    %v3543 = vsel %vm440, %v3429, 0
    %3545 = vmatpush.msra.mxu0 0.0
    %3546 = vmatpush.msra.mxu0 0.0
    %3547 = vmatpush.msra.mxu0 0.0
    %3548 = vmatpush.msra.mxu0 0.0
    %3549 = vmatpush.msra.mxu0 0.0
    %3550 = vmatpush.msra.mxu0 0.0
    %3551 = vmatpush.msra.mxu0 0.0
    %3552 = vmatpush.msra.mxu0 0.0
    %3553 = vmatpush.msra.mxu0 %v2651
    %3554 = vmatpush.msra.mxu0 %v2649
    %3555 = vmatpush.msra.mxu0 %v2647
    %3556 = vmatpush.msra.mxu0 %v2645
    %3557 = vmatpush.msra.mxu0 %v2643
    %3558 = vmatpush.msra.mxu0 %v2641
    %3559 = vmatpush.msra.mxu0 %v2639
    %3560 = vmatpush.msra.mxu0 %v2637
    %3561 = vmatmul.f32.gmra.mxu0 %v3543
    %v3562 = vpop.f32.mrf.mxu0
    %v3563 = vadd.f32 0.0, %v3562
    %3564 = vdwg.mxu0
    %3565 = vmatpush.msra.mxu0 0.0
    %3566 = vmatpush.msra.mxu0 0.0
    %3567 = vmatpush.msra.mxu0 0.0
    %3568 = vmatpush.msra.mxu0 0.0
    %3569 = vmatpush.msra.mxu0 0.0
    %3570 = vmatpush.msra.mxu0 0.0
    %3571 = vmatpush.msra.mxu0 0.0
    %3572 = vmatpush.msra.mxu0 0.0
    %3573 = vmatpush.msra.mxu0 %v2652
    %3574 = vmatpush.msra.mxu0 %v2650
    %3575 = vmatpush.msra.mxu0 %v2648
    %3576 = vmatpush.msra.mxu0 %v2646
    %3577 = vmatpush.msra.mxu0 %v2644
    %3578 = vmatpush.msra.mxu0 %v2642
    %3579 = vmatpush.msra.mxu0 %v2640
    %3580 = vmatpush.msra.mxu0 %v2638
    %3581 = vmatmul.f32.gmra.mxu0 %v3543
    %v3582 = vpop.f32.mrf.mxu0
    %v3583 = vadd.f32 0.0, %v3582
    %3584 = vdwg.mxu0
    %v3587 = vrot.slane %v3583, 6
    %v3588 = vsel %vm269, %v3563, %v3587
    %v3590 = vadd.f32 %v2450, %v3588
    %v3591 = vxor.u32 %v3590, 2147483648
    %v3592 = vmul.f32 %v3591, 1.442695
    %v3593 = vpow.pop %v3592
    %v3594 = vadd.f32 %v3593, 1.0
    %v3595 = vrcp.pop %v3594
    %v3596 = vmul.f32 %v3594, %v3595
    %v3597 = vsub.f32 1.0, %v3596
    %v3598 = vmul.f32 %v3595, %v3597
    %v3599 = vadd.f32 %v3595, %v3598
    %vm3600 = vweird.f32 %v3594
    %vm3601 = vweird.f32 %v3595
    %vm3602 = vmor %vm3600, %vm3601
    %v3603 = vsel %vm3602, %v3595, %v3599
    %v3604 = vand.u32 2147483647, %v3594
    %vm3605 = vcmp.eq.f32.partialorder %v3604, 8.507059e+37
    %v3606 = vand.u32 %v3594, 2147483648
    %v3607 = vor.u32 1.1754944e-38, %v3606
    %v3608 = vsel %vm3605, %v3607, %v3603
    %v3609 = vmul.f32 1.0, %v3608
    %v3611 = vrot.slane %v3590, 2
    %v3613 = vtanh.pop %v3611
    %3614 = vrot.lane.b32.xlu0 %v3590, 64
    %v3615 = vpop.permute.xlu0 %3614
    %v3616 = vrot.slane %v3615, 2
    %v3618 = vxor.u32 %v3616, 2147483648
    %v3619 = vmul.f32 %v3618, 1.442695
    %v3620 = vpow.pop %v3619
    %v3621 = vadd.f32 %v3620, 1.0
    %v3622 = vrcp.pop %v3621
    %v3623 = vmul.f32 %v3621, %v3622
    %v3624 = vsub.f32 1.0, %v3623
    %v3625 = vmul.f32 %v3622, %v3624
    %v3626 = vadd.f32 %v3622, %v3625
    %vm3627 = vweird.f32 %v3621
    %vm3628 = vweird.f32 %v3622
    %vm3629 = vmor %vm3627, %vm3628
    %v3630 = vsel %vm3629, %v3622, %v3626
    %v3631 = vand.u32 2147483647, %v3621
    %vm3632 = vcmp.eq.f32.partialorder %v3631, 8.507059e+37
    %v3633 = vand.u32 %v3621, 2147483648
    %v3634 = vor.u32 1.1754944e-38, %v3633
    %v3635 = vsel %vm3632, %v3634, %v3630
    %v3636 = vmul.f32 1.0, %v3635
    %v3637 = vmul.f32 %v3609, %v3423
    %v3638 = vmul.f32 %v3609, %v3613
    %3640 = vrot.lane.b32.xlu0 %v3638, 64
    %v3641 = vpop.permute.xlu0 %3640
    %v3643 = vadd.f32 %v3637, %v3641
    %v3644 = vtanh.pop %v3643
    %3646 = vrot.lane.b32.xlu0 %v3644, 64
    %v3647 = vpop.permute.xlu0 %3646
    %v3649 = vmul.f32 %v3636, %v3647
    %s3650 = scalar_lea.vmem [#allocation4], 8
    %3651 = vst.msk [vmem:[%s3650] sm:$0x3] %vm549, %v3649
    %v3653 = vsel %vm440, %v3539, 0
    %3655 = vmatpush.msra.mxu0 0.0
    %3656 = vmatpush.msra.mxu0 0.0
    %3657 = vmatpush.msra.mxu0 0.0
    %3658 = vmatpush.msra.mxu0 0.0
    %3659 = vmatpush.msra.mxu0 0.0
    %3660 = vmatpush.msra.mxu0 0.0
    %3661 = vmatpush.msra.mxu0 0.0
    %3662 = vmatpush.msra.mxu0 0.0
    %3663 = vmatpush.msra.mxu0 %v2667
    %3664 = vmatpush.msra.mxu0 %v2665
    %3665 = vmatpush.msra.mxu0 %v2663
    %3666 = vmatpush.msra.mxu0 %v2661
    %3667 = vmatpush.msra.mxu0 %v2659
    %3668 = vmatpush.msra.mxu0 %v2657
    %3669 = vmatpush.msra.mxu0 %v2655
    %3670 = vmatpush.msra.mxu0 %v2653
    %3671 = vmatmul.f32.gmra.mxu0 %v3653
    %v3672 = vpop.f32.mrf.mxu0
    %v3673 = vadd.f32 0.0, %v3672
    %3674 = vdwg.mxu0
    %3675 = vmatpush.msra.mxu0 0.0
    %3676 = vmatpush.msra.mxu0 0.0
    %3677 = vmatpush.msra.mxu0 0.0
    %3678 = vmatpush.msra.mxu0 0.0
    %3679 = vmatpush.msra.mxu0 0.0
    %3680 = vmatpush.msra.mxu0 0.0
    %3681 = vmatpush.msra.mxu0 0.0
    %3682 = vmatpush.msra.mxu0 0.0
    %3683 = vmatpush.msra.mxu0 %v2668
    %3684 = vmatpush.msra.mxu0 %v2666
    %3685 = vmatpush.msra.mxu0 %v2664
    %3686 = vmatpush.msra.mxu0 %v2662
    %3687 = vmatpush.msra.mxu0 %v2660
    %3688 = vmatpush.msra.mxu0 %v2658
    %3689 = vmatpush.msra.mxu0 %v2656
    %3690 = vmatpush.msra.mxu0 %v2654
    %3691 = vmatmul.f32.gmra.mxu0 %v3653
    %v3692 = vpop.f32.mrf.mxu0
    %v3693 = vadd.f32 0.0, %v3692
    %3694 = vdwg.mxu0
    %v3697 = vrot.slane %v3693, 6
    %v3698 = vsel %vm269, %v3673, %v3697
    %v3700 = vadd.f32 %v2621, %v3698
    %v3701 = vxor.u32 %v3700, 2147483648
    %v3702 = vmul.f32 %v3701, 1.442695
    %v3703 = vpow.pop %v3702
    %v3704 = vadd.f32 %v3703, 1.0
    %v3705 = vrcp.pop %v3704
    %v3706 = vmul.f32 %v3704, %v3705
    %v3707 = vsub.f32 1.0, %v3706
    %v3708 = vmul.f32 %v3705, %v3707
    %v3709 = vadd.f32 %v3705, %v3708
    %vm3710 = vweird.f32 %v3704
    %vm3711 = vweird.f32 %v3705
    %vm3712 = vmor %vm3710, %vm3711
    %v3713 = vsel %vm3712, %v3705, %v3709
    %v3714 = vand.u32 2147483647, %v3704
    %vm3715 = vcmp.eq.f32.partialorder %v3714, 8.507059e+37
    %v3716 = vand.u32 %v3704, 2147483648
    %v3717 = vor.u32 1.1754944e-38, %v3716
    %v3718 = vsel %vm3715, %v3717, %v3713
    %v3719 = vmul.f32 1.0, %v3718
    %v3721 = vrot.slane %v3700, 2
    %v3723 = vtanh.pop %v3721
    %3724 = vrot.lane.b32.xlu0 %v3700, 64
    %v3725 = vpop.permute.xlu0 %3724
    %v3726 = vrot.slane %v3725, 2
    %v3728 = vxor.u32 %v3726, 2147483648
    %v3729 = vmul.f32 %v3728, 1.442695
    %v3730 = vpow.pop %v3729
    %v3731 = vadd.f32 %v3730, 1.0
    %v3732 = vrcp.pop %v3731
    %v3733 = vmul.f32 %v3731, %v3732
    %v3734 = vsub.f32 1.0, %v3733
    %v3735 = vmul.f32 %v3732, %v3734
    %v3736 = vadd.f32 %v3732, %v3735
    %vm3737 = vweird.f32 %v3731
    %vm3738 = vweird.f32 %v3732
    %vm3739 = vmor %vm3737, %vm3738
    %v3740 = vsel %vm3739, %v3732, %v3736
    %v3741 = vand.u32 2147483647, %v3731
    %vm3742 = vcmp.eq.f32.partialorder %v3741, 8.507059e+37
    %v3743 = vand.u32 %v3731, 2147483648
    %v3744 = vor.u32 1.1754944e-38, %v3743
    %v3745 = vsel %vm3742, %v3744, %v3740
    %v3746 = vmul.f32 1.0, %v3745
    %v3747 = vmul.f32 %v3719, %v3533
    %v3748 = vmul.f32 %v3719, %v3723
    %3750 = vrot.lane.b32.xlu0 %v3748, 64
    %v3751 = vpop.permute.xlu0 %3750
    %v3753 = vadd.f32 %v3747, %v3751
    %v3754 = vtanh.pop %v3753
    %3756 = vrot.lane.b32.xlu0 %v3754, 64
    %v3757 = vpop.permute.xlu0 %3756
    %v3759 = vmul.f32 %v3746, %v3757
    %s3760 = scalar_lea.vmem [#allocation5], 6
    %3761 = vst.msk [vmem:[%s3760] sm:$0x3] %vm549, %v3759
    %v3763 = vsel %vm440, %v3649, 0
    %3765 = vmatpush.msra.mxu0 0.0
    %3766 = vmatpush.msra.mxu0 0.0
    %3767 = vmatpush.msra.mxu0 0.0
    %3768 = vmatpush.msra.mxu0 0.0
    %3769 = vmatpush.msra.mxu0 0.0
    %3770 = vmatpush.msra.mxu0 0.0
    %3771 = vmatpush.msra.mxu0 0.0
    %3772 = vmatpush.msra.mxu0 0.0
    %3773 = vmatpush.msra.mxu0 %v2651
    %3774 = vmatpush.msra.mxu0 %v2649
    %3775 = vmatpush.msra.mxu0 %v2647
    %3776 = vmatpush.msra.mxu0 %v2645
    %3777 = vmatpush.msra.mxu0 %v2643
    %3778 = vmatpush.msra.mxu0 %v2641
    %3779 = vmatpush.msra.mxu0 %v2639
    %3780 = vmatpush.msra.mxu0 %v2637
    %3781 = vmatmul.f32.gmra.mxu0 %v3763
    %v3782 = vpop.f32.mrf.mxu0
    %v3783 = vadd.f32 0.0, %v3782
    %3784 = vdwg.mxu0
    %3785 = vmatpush.msra.mxu0 0.0
    %3786 = vmatpush.msra.mxu0 0.0
    %3787 = vmatpush.msra.mxu0 0.0
    %3788 = vmatpush.msra.mxu0 0.0
    %3789 = vmatpush.msra.mxu0 0.0
    %3790 = vmatpush.msra.mxu0 0.0
    %3791 = vmatpush.msra.mxu0 0.0
    %3792 = vmatpush.msra.mxu0 0.0
    %3793 = vmatpush.msra.mxu0 %v2652
    %3794 = vmatpush.msra.mxu0 %v2650
    %3795 = vmatpush.msra.mxu0 %v2648
    %3796 = vmatpush.msra.mxu0 %v2646
    %3797 = vmatpush.msra.mxu0 %v2644
    %3798 = vmatpush.msra.mxu0 %v2642
    %3799 = vmatpush.msra.mxu0 %v2640
    %3800 = vmatpush.msra.mxu0 %v2638
    %3801 = vmatmul.f32.gmra.mxu0 %v3763
    %v3802 = vpop.f32.mrf.mxu0
    %v3803 = vadd.f32 0.0, %v3802
    %3804 = vdwg.mxu0
    %v3807 = vrot.slane %v3803, 6
    %v3808 = vsel %vm269, %v3783, %v3807
    %v3810 = vadd.f32 %v2452, %v3808
    %v3811 = vxor.u32 %v3810, 2147483648
    %v3812 = vmul.f32 %v3811, 1.442695
    %v3813 = vpow.pop %v3812
    %v3814 = vadd.f32 %v3813, 1.0
    %v3815 = vrcp.pop %v3814
    %v3816 = vmul.f32 %v3814, %v3815
    %v3817 = vsub.f32 1.0, %v3816
    %v3818 = vmul.f32 %v3815, %v3817
    %v3819 = vadd.f32 %v3815, %v3818
    %vm3820 = vweird.f32 %v3814
    %vm3821 = vweird.f32 %v3815
    %vm3822 = vmor %vm3820, %vm3821
    %v3823 = vsel %vm3822, %v3815, %v3819
    %v3824 = vand.u32 2147483647, %v3814
    %vm3825 = vcmp.eq.f32.partialorder %v3824, 8.507059e+37
    %v3826 = vand.u32 %v3814, 2147483648
    %v3827 = vor.u32 1.1754944e-38, %v3826
    %v3828 = vsel %vm3825, %v3827, %v3823
    %v3829 = vmul.f32 1.0, %v3828
    %v3831 = vrot.slane %v3810, 2
    %v3833 = vtanh.pop %v3831
    %3834 = vrot.lane.b32.xlu0 %v3810, 64
    %v3835 = vpop.permute.xlu0 %3834
    %v3836 = vrot.slane %v3835, 2
    %v3838 = vxor.u32 %v3836, 2147483648
    %v3839 = vmul.f32 %v3838, 1.442695
    %v3840 = vpow.pop %v3839
    %v3841 = vadd.f32 %v3840, 1.0
    %v3842 = vrcp.pop %v3841
    %v3843 = vmul.f32 %v3841, %v3842
    %v3844 = vsub.f32 1.0, %v3843
    %v3845 = vmul.f32 %v3842, %v3844
    %v3846 = vadd.f32 %v3842, %v3845
    %vm3847 = vweird.f32 %v3841
    %vm3848 = vweird.f32 %v3842
    %vm3849 = vmor %vm3847, %vm3848
    %v3850 = vsel %vm3849, %v3842, %v3846
    %v3851 = vand.u32 2147483647, %v3841
    %vm3852 = vcmp.eq.f32.partialorder %v3851, 8.507059e+37
    %v3853 = vand.u32 %v3841, 2147483648
    %v3854 = vor.u32 1.1754944e-38, %v3853
    %v3855 = vsel %vm3852, %v3854, %v3850
    %v3856 = vmul.f32 1.0, %v3855
    %v3857 = vmul.f32 %v3829, %v3643
    %v3858 = vmul.f32 %v3829, %v3833
    %3860 = vrot.lane.b32.xlu0 %v3858, 64
    %v3861 = vpop.permute.xlu0 %3860
    %v3863 = vadd.f32 %v3857, %v3861
    %v3864 = vtanh.pop %v3863
    %3866 = vrot.lane.b32.xlu0 %v3864, 64
    %v3867 = vpop.permute.xlu0 %3866
    %v3869 = vmul.f32 %v3856, %v3867
    %s3870 = scalar_lea.vmem [#allocation4], 10
    %3871 = vst.msk [vmem:[%s3870] sm:$0x3] %vm549, %v3869
    %v3873 = vsel %vm440, %v3759, 0
    %3875 = vmatpush.msra.mxu0 0.0
    %3876 = vmatpush.msra.mxu0 0.0
    %3877 = vmatpush.msra.mxu0 0.0
    %3878 = vmatpush.msra.mxu0 0.0
    %3879 = vmatpush.msra.mxu0 0.0
    %3880 = vmatpush.msra.mxu0 0.0
    %3881 = vmatpush.msra.mxu0 0.0
    %3882 = vmatpush.msra.mxu0 0.0
    %3883 = vmatpush.msra.mxu0 %v2667
    %3884 = vmatpush.msra.mxu0 %v2665
    %3885 = vmatpush.msra.mxu0 %v2663
    %3886 = vmatpush.msra.mxu0 %v2661
    %3887 = vmatpush.msra.mxu0 %v2659
    %3888 = vmatpush.msra.mxu0 %v2657
    %3889 = vmatpush.msra.mxu0 %v2655
    %3890 = vmatpush.msra.mxu0 %v2653
    %3891 = vmatmul.f32.gmra.mxu0 %v3873
    %v3892 = vpop.f32.mrf.mxu0
    %v3893 = vadd.f32 0.0, %v3892
    %3894 = vdwg.mxu0
    %3895 = vmatpush.msra.mxu0 0.0
    %3896 = vmatpush.msra.mxu0 0.0
    %3897 = vmatpush.msra.mxu0 0.0
    %3898 = vmatpush.msra.mxu0 0.0
    %3899 = vmatpush.msra.mxu0 0.0
    %3900 = vmatpush.msra.mxu0 0.0
    %3901 = vmatpush.msra.mxu0 0.0
    %3902 = vmatpush.msra.mxu0 0.0
    %3903 = vmatpush.msra.mxu0 %v2668
    %3904 = vmatpush.msra.mxu0 %v2666
    %3905 = vmatpush.msra.mxu0 %v2664
    %3906 = vmatpush.msra.mxu0 %v2662
    %3907 = vmatpush.msra.mxu0 %v2660
    %3908 = vmatpush.msra.mxu0 %v2658
    %3909 = vmatpush.msra.mxu0 %v2656
    %3910 = vmatpush.msra.mxu0 %v2654
    %3911 = vmatmul.f32.gmra.mxu0 %v3873
    %v3912 = vpop.f32.mrf.mxu0
    %v3913 = vadd.f32 0.0, %v3912
    %3914 = vdwg.mxu0
    %v3917 = vrot.slane %v3913, 6
    %v3918 = vsel %vm269, %v3893, %v3917
    %v3920 = vadd.f32 %v2619, %v3918
    %v3921 = vxor.u32 %v3920, 2147483648
    %v3922 = vmul.f32 %v3921, 1.442695
    %v3923 = vpow.pop %v3922
    %v3924 = vadd.f32 %v3923, 1.0
    %v3925 = vrcp.pop %v3924
    %v3926 = vmul.f32 %v3924, %v3925
    %v3927 = vsub.f32 1.0, %v3926
    %v3928 = vmul.f32 %v3925, %v3927
    %v3929 = vadd.f32 %v3925, %v3928
    %vm3930 = vweird.f32 %v3924
    %vm3931 = vweird.f32 %v3925
    %vm3932 = vmor %vm3930, %vm3931
    %v3933 = vsel %vm3932, %v3925, %v3929
    %v3934 = vand.u32 2147483647, %v3924
    %vm3935 = vcmp.eq.f32.partialorder %v3934, 8.507059e+37
    %v3936 = vand.u32 %v3924, 2147483648
    %v3937 = vor.u32 1.1754944e-38, %v3936
    %v3938 = vsel %vm3935, %v3937, %v3933
    %v3939 = vmul.f32 1.0, %v3938
    %v3941 = vrot.slane %v3920, 2
    %v3943 = vtanh.pop %v3941
    %3944 = vrot.lane.b32.xlu0 %v3920, 64
    %v3945 = vpop.permute.xlu0 %3944
    %v3946 = vrot.slane %v3945, 2
    %v3948 = vxor.u32 %v3946, 2147483648
    %v3949 = vmul.f32 %v3948, 1.442695
    %v3950 = vpow.pop %v3949
    %v3951 = vadd.f32 %v3950, 1.0
    %v3952 = vrcp.pop %v3951
    %v3953 = vmul.f32 %v3951, %v3952
    %v3954 = vsub.f32 1.0, %v3953
    %v3955 = vmul.f32 %v3952, %v3954
    %v3956 = vadd.f32 %v3952, %v3955
    %vm3957 = vweird.f32 %v3951
    %vm3958 = vweird.f32 %v3952
    %vm3959 = vmor %vm3957, %vm3958
    %v3960 = vsel %vm3959, %v3952, %v3956
    %v3961 = vand.u32 2147483647, %v3951
    %vm3962 = vcmp.eq.f32.partialorder %v3961, 8.507059e+37
    %v3963 = vand.u32 %v3951, 2147483648
    %v3964 = vor.u32 1.1754944e-38, %v3963
    %v3965 = vsel %vm3962, %v3964, %v3960
    %v3966 = vmul.f32 1.0, %v3965
    %v3967 = vmul.f32 %v3939, %v3753
    %v3968 = vmul.f32 %v3939, %v3943
    %3970 = vrot.lane.b32.xlu0 %v3968, 64
    %v3971 = vpop.permute.xlu0 %3970
    %v3973 = vadd.f32 %v3967, %v3971
    %v3974 = vtanh.pop %v3973
    %3976 = vrot.lane.b32.xlu0 %v3974, 64
    %v3977 = vpop.permute.xlu0 %3976
    %v3979 = vmul.f32 %v3966, %v3977
    %s3980 = scalar_lea.vmem [#allocation5], 4
    %3981 = vst.msk [vmem:[%s3980] sm:$0x3] %vm549, %v3979
    %v3983 = vsel %vm440, %v3869, 0
    %3985 = vmatpush.msra.mxu0 0.0
    %3986 = vmatpush.msra.mxu0 0.0
    %3987 = vmatpush.msra.mxu0 0.0
    %3988 = vmatpush.msra.mxu0 0.0
    %3989 = vmatpush.msra.mxu0 0.0
    %3990 = vmatpush.msra.mxu0 0.0
    %3991 = vmatpush.msra.mxu0 0.0
    %3992 = vmatpush.msra.mxu0 0.0
    %3993 = vmatpush.msra.mxu0 %v2651
    %3994 = vmatpush.msra.mxu0 %v2649
    %3995 = vmatpush.msra.mxu0 %v2647
    %3996 = vmatpush.msra.mxu0 %v2645
    %3997 = vmatpush.msra.mxu0 %v2643
    %3998 = vmatpush.msra.mxu0 %v2641
    %3999 = vmatpush.msra.mxu0 %v2639
    %4000 = vmatpush.msra.mxu0 %v2637
    %4001 = vmatmul.f32.gmra.mxu0 %v3983
    %v4002 = vpop.f32.mrf.mxu0
    %v4003 = vadd.f32 0.0, %v4002
    %4004 = vdwg.mxu0
    %4005 = vmatpush.msra.mxu0 0.0
    %4006 = vmatpush.msra.mxu0 0.0
    %4007 = vmatpush.msra.mxu0 0.0
    %4008 = vmatpush.msra.mxu0 0.0
    %4009 = vmatpush.msra.mxu0 0.0
    %4010 = vmatpush.msra.mxu0 0.0
    %4011 = vmatpush.msra.mxu0 0.0
    %4012 = vmatpush.msra.mxu0 0.0
    %4013 = vmatpush.msra.mxu0 %v2652
    %4014 = vmatpush.msra.mxu0 %v2650
    %4015 = vmatpush.msra.mxu0 %v2648
    %4016 = vmatpush.msra.mxu0 %v2646
    %4017 = vmatpush.msra.mxu0 %v2644
    %4018 = vmatpush.msra.mxu0 %v2642
    %4019 = vmatpush.msra.mxu0 %v2640
    %4020 = vmatpush.msra.mxu0 %v2638
    %4021 = vmatmul.f32.gmra.mxu0 %v3983
    %v4022 = vpop.f32.mrf.mxu0
    %v4023 = vadd.f32 0.0, %v4022
    %4024 = vdwg.mxu0
    %v4027 = vrot.slane %v4023, 6
    %v4028 = vsel %vm269, %v4003, %v4027
    %v4030 = vadd.f32 %v2454, %v4028
    %v4031 = vxor.u32 %v4030, 2147483648
    %v4032 = vmul.f32 %v4031, 1.442695
    %v4033 = vpow.pop %v4032
    %v4034 = vadd.f32 %v4033, 1.0
    %v4035 = vrcp.pop %v4034
    %v4036 = vmul.f32 %v4034, %v4035
    %v4037 = vsub.f32 1.0, %v4036
    %v4038 = vmul.f32 %v4035, %v4037
    %v4039 = vadd.f32 %v4035, %v4038
    %vm4040 = vweird.f32 %v4034
    %vm4041 = vweird.f32 %v4035
    %vm4042 = vmor %vm4040, %vm4041
    %v4043 = vsel %vm4042, %v4035, %v4039
    %v4044 = vand.u32 2147483647, %v4034
    %vm4045 = vcmp.eq.f32.partialorder %v4044, 8.507059e+37
    %v4046 = vand.u32 %v4034, 2147483648
    %v4047 = vor.u32 1.1754944e-38, %v4046
    %v4048 = vsel %vm4045, %v4047, %v4043
    %v4049 = vmul.f32 1.0, %v4048
    %v4051 = vrot.slane %v4030, 2
    %v4053 = vtanh.pop %v4051
    %4054 = vrot.lane.b32.xlu0 %v4030, 64
    %v4055 = vpop.permute.xlu0 %4054
    %v4056 = vrot.slane %v4055, 2
    %v4058 = vxor.u32 %v4056, 2147483648
    %v4059 = vmul.f32 %v4058, 1.442695
    %v4060 = vpow.pop %v4059
    %v4061 = vadd.f32 %v4060, 1.0
    %v4062 = vrcp.pop %v4061
    %v4063 = vmul.f32 %v4061, %v4062
    %v4064 = vsub.f32 1.0, %v4063
    %v4065 = vmul.f32 %v4062, %v4064
    %v4066 = vadd.f32 %v4062, %v4065
    %vm4067 = vweird.f32 %v4061
    %vm4068 = vweird.f32 %v4062
    %vm4069 = vmor %vm4067, %vm4068
    %v4070 = vsel %vm4069, %v4062, %v4066
    %v4071 = vand.u32 2147483647, %v4061
    %vm4072 = vcmp.eq.f32.partialorder %v4071, 8.507059e+37
    %v4073 = vand.u32 %v4061, 2147483648
    %v4074 = vor.u32 1.1754944e-38, %v4073
    %v4075 = vsel %vm4072, %v4074, %v4070
    %v4076 = vmul.f32 1.0, %v4075
    %v4077 = vmul.f32 %v4049, %v3863
    %v4078 = vmul.f32 %v4049, %v4053
    %4080 = vrot.lane.b32.xlu0 %v4078, 64
    %v4081 = vpop.permute.xlu0 %4080
    %v4083 = vadd.f32 %v4077, %v4081
    %v4084 = vtanh.pop %v4083
    %4086 = vrot.lane.b32.xlu0 %v4084, 64
    %v4087 = vpop.permute.xlu0 %4086
    %v4089 = vmul.f32 %v4076, %v4087
    %s4090 = scalar_lea.vmem [#allocation4], 12
    %4091 = vst.msk [vmem:[%s4090] sm:$0x3] %vm549, %v4089
    %v4093 = vsel %vm440, %v3979, 0
    %4095 = vmatpush.msra.mxu0 0.0
    %4096 = vmatpush.msra.mxu0 0.0
    %4097 = vmatpush.msra.mxu0 0.0
    %4098 = vmatpush.msra.mxu0 0.0
    %4099 = vmatpush.msra.mxu0 0.0
    %4100 = vmatpush.msra.mxu0 0.0
    %4101 = vmatpush.msra.mxu0 0.0
    %4102 = vmatpush.msra.mxu0 0.0
    %4103 = vmatpush.msra.mxu0 %v2667
    %4104 = vmatpush.msra.mxu0 %v2665
    %4105 = vmatpush.msra.mxu0 %v2663
    %4106 = vmatpush.msra.mxu0 %v2661
    %4107 = vmatpush.msra.mxu0 %v2659
    %4108 = vmatpush.msra.mxu0 %v2657
    %4109 = vmatpush.msra.mxu0 %v2655
    %4110 = vmatpush.msra.mxu0 %v2653
    %4111 = vmatmul.f32.gmra.mxu0 %v4093
    %v4112 = vpop.f32.mrf.mxu0
    %v4113 = vadd.f32 0.0, %v4112
    %4114 = vdwg.mxu0
    %4115 = vmatpush.msra.mxu0 0.0
    %4116 = vmatpush.msra.mxu0 0.0
    %4117 = vmatpush.msra.mxu0 0.0
    %4118 = vmatpush.msra.mxu0 0.0
    %4119 = vmatpush.msra.mxu0 0.0
    %4120 = vmatpush.msra.mxu0 0.0
    %4121 = vmatpush.msra.mxu0 0.0
    %4122 = vmatpush.msra.mxu0 0.0
    %4123 = vmatpush.msra.mxu0 %v2668
    %4124 = vmatpush.msra.mxu0 %v2666
    %4125 = vmatpush.msra.mxu0 %v2664
    %4126 = vmatpush.msra.mxu0 %v2662
    %4127 = vmatpush.msra.mxu0 %v2660
    %4128 = vmatpush.msra.mxu0 %v2658
    %4129 = vmatpush.msra.mxu0 %v2656
    %4130 = vmatpush.msra.mxu0 %v2654
    %4131 = vmatmul.f32.gmra.mxu0 %v4093
    %v4132 = vpop.f32.mrf.mxu0
    %v4133 = vadd.f32 0.0, %v4132
    %4134 = vdwg.mxu0
    %v4137 = vrot.slane %v4133, 6
    %v4138 = vsel %vm269, %v4113, %v4137
    %v4140 = vadd.f32 %v2617, %v4138
    %v4141 = vxor.u32 %v4140, 2147483648
    %v4142 = vmul.f32 %v4141, 1.442695
    %v4143 = vpow.pop %v4142
    %v4144 = vadd.f32 %v4143, 1.0
    %v4145 = vrcp.pop %v4144
    %v4146 = vmul.f32 %v4144, %v4145
    %v4147 = vsub.f32 1.0, %v4146
    %v4148 = vmul.f32 %v4145, %v4147
    %v4149 = vadd.f32 %v4145, %v4148
    %vm4150 = vweird.f32 %v4144
    %vm4151 = vweird.f32 %v4145
    %vm4152 = vmor %vm4150, %vm4151
    %v4153 = vsel %vm4152, %v4145, %v4149
    %v4154 = vand.u32 2147483647, %v4144
    %vm4155 = vcmp.eq.f32.partialorder %v4154, 8.507059e+37
    %v4156 = vand.u32 %v4144, 2147483648
    %v4157 = vor.u32 1.1754944e-38, %v4156
    %v4158 = vsel %vm4155, %v4157, %v4153
    %v4159 = vmul.f32 1.0, %v4158
    %v4161 = vrot.slane %v4140, 2
    %v4163 = vtanh.pop %v4161
    %4164 = vrot.lane.b32.xlu0 %v4140, 64
    %v4165 = vpop.permute.xlu0 %4164
    %v4166 = vrot.slane %v4165, 2
    %v4168 = vxor.u32 %v4166, 2147483648
    %v4169 = vmul.f32 %v4168, 1.442695
    %v4170 = vpow.pop %v4169
    %v4171 = vadd.f32 %v4170, 1.0
    %v4172 = vrcp.pop %v4171
    %v4173 = vmul.f32 %v4171, %v4172
    %v4174 = vsub.f32 1.0, %v4173
    %v4175 = vmul.f32 %v4172, %v4174
    %v4176 = vadd.f32 %v4172, %v4175
    %vm4177 = vweird.f32 %v4171
    %vm4178 = vweird.f32 %v4172
    %vm4179 = vmor %vm4177, %vm4178
    %v4180 = vsel %vm4179, %v4172, %v4176
    %v4181 = vand.u32 2147483647, %v4171
    %vm4182 = vcmp.eq.f32.partialorder %v4181, 8.507059e+37
    %v4183 = vand.u32 %v4171, 2147483648
    %v4184 = vor.u32 1.1754944e-38, %v4183
    %v4185 = vsel %vm4182, %v4184, %v4180
    %v4186 = vmul.f32 1.0, %v4185
    %v4187 = vmul.f32 %v4159, %v3973
    %v4188 = vmul.f32 %v4159, %v4163
    %4190 = vrot.lane.b32.xlu0 %v4188, 64
    %v4191 = vpop.permute.xlu0 %4190
    %v4193 = vadd.f32 %v4187, %v4191
    %v4194 = vtanh.pop %v4193
    %4196 = vrot.lane.b32.xlu0 %v4194, 64
    %v4197 = vpop.permute.xlu0 %4196
    %v4199 = vmul.f32 %v4186, %v4197
    %s4200 = scalar_lea.vmem [#allocation5], 2
    %4201 = vst.msk [vmem:[%s4200] sm:$0x3] %vm549, %v4199
    %v4203 = vsel %vm440, %v4089, 0
    %4205 = vmatpush.msra.mxu0 0.0
    %4206 = vmatpush.msra.mxu0 0.0
    %4207 = vmatpush.msra.mxu0 0.0
    %4208 = vmatpush.msra.mxu0 0.0
    %4209 = vmatpush.msra.mxu0 0.0
    %4210 = vmatpush.msra.mxu0 0.0
    %4211 = vmatpush.msra.mxu0 0.0
    %4212 = vmatpush.msra.mxu0 0.0
    %4213 = vmatpush.msra.mxu0 %v2651
    %4214 = vmatpush.msra.mxu0 %v2649
    %4215 = vmatpush.msra.mxu0 %v2647
    %4216 = vmatpush.msra.mxu0 %v2645
    %4217 = vmatpush.msra.mxu0 %v2643
    %4218 = vmatpush.msra.mxu0 %v2641
    %4219 = vmatpush.msra.mxu0 %v2639
    %4220 = vmatpush.msra.mxu0 %v2637
    %4221 = vmatmul.f32.gmra.mxu0 %v4203
    %v4222 = vpop.f32.mrf.mxu0
    %v4223 = vadd.f32 0.0, %v4222
    %4224 = vdwg.mxu0
    %4225 = vmatpush.msra.mxu0 0.0
    %4226 = vmatpush.msra.mxu0 0.0
    %4227 = vmatpush.msra.mxu0 0.0
    %4228 = vmatpush.msra.mxu0 0.0
    %4229 = vmatpush.msra.mxu0 0.0
    %4230 = vmatpush.msra.mxu0 0.0
    %4231 = vmatpush.msra.mxu0 0.0
    %4232 = vmatpush.msra.mxu0 0.0
    %4233 = vmatpush.msra.mxu0 %v2652
    %4234 = vmatpush.msra.mxu0 %v2650
    %4235 = vmatpush.msra.mxu0 %v2648
    %4236 = vmatpush.msra.mxu0 %v2646
    %4237 = vmatpush.msra.mxu0 %v2644
    %4238 = vmatpush.msra.mxu0 %v2642
    %4239 = vmatpush.msra.mxu0 %v2640
    %4240 = vmatpush.msra.mxu0 %v2638
    %4241 = vmatmul.f32.gmra.mxu0 %v4203
    %v4242 = vpop.f32.mrf.mxu0
    %v4243 = vadd.f32 0.0, %v4242
    %4244 = vdwg.mxu0
    %v4247 = vrot.slane %v4243, 6
    %v4248 = vsel %vm269, %v4223, %v4247
    %v4250 = vadd.f32 %v2456, %v4248
    %v4251 = vxor.u32 %v4250, 2147483648
    %v4252 = vmul.f32 %v4251, 1.442695
    %v4253 = vpow.pop %v4252
    %v4254 = vadd.f32 %v4253, 1.0
    %v4255 = vrcp.pop %v4254
    %v4256 = vmul.f32 %v4254, %v4255
    %v4257 = vsub.f32 1.0, %v4256
    %v4258 = vmul.f32 %v4255, %v4257
    %v4259 = vadd.f32 %v4255, %v4258
    %vm4260 = vweird.f32 %v4254
    %vm4261 = vweird.f32 %v4255
    %vm4262 = vmor %vm4260, %vm4261
    %v4263 = vsel %vm4262, %v4255, %v4259
    %v4264 = vand.u32 2147483647, %v4254
    %vm4265 = vcmp.eq.f32.partialorder %v4264, 8.507059e+37
    %v4266 = vand.u32 %v4254, 2147483648
    %v4267 = vor.u32 1.1754944e-38, %v4266
    %v4268 = vsel %vm4265, %v4267, %v4263
    %v4269 = vmul.f32 1.0, %v4268
    %v4271 = vrot.slane %v4250, 2
    %v4273 = vtanh.pop %v4271
    %4274 = vrot.lane.b32.xlu0 %v4250, 64
    %v4275 = vpop.permute.xlu0 %4274
    %v4276 = vrot.slane %v4275, 2
    %v4278 = vxor.u32 %v4276, 2147483648
    %v4279 = vmul.f32 %v4278, 1.442695
    %v4280 = vpow.pop %v4279
    %v4281 = vadd.f32 %v4280, 1.0
    %v4282 = vrcp.pop %v4281
    %v4283 = vmul.f32 %v4281, %v4282
    %v4284 = vsub.f32 1.0, %v4283
    %v4285 = vmul.f32 %v4282, %v4284
    %v4286 = vadd.f32 %v4282, %v4285
    %vm4287 = vweird.f32 %v4281
    %vm4288 = vweird.f32 %v4282
    %vm4289 = vmor %vm4287, %vm4288
    %v4290 = vsel %vm4289, %v4282, %v4286
    %v4291 = vand.u32 2147483647, %v4281
    %vm4292 = vcmp.eq.f32.partialorder %v4291, 8.507059e+37
    %v4293 = vand.u32 %v4281, 2147483648
    %v4294 = vor.u32 1.1754944e-38, %v4293
    %v4295 = vsel %vm4292, %v4294, %v4290
    %v4296 = vmul.f32 1.0, %v4295
    %v4297 = vmul.f32 %v4269, %v4083
    %v4298 = vmul.f32 %v4269, %v4273
    %4300 = vrot.lane.b32.xlu0 %v4298, 64
    %v4301 = vpop.permute.xlu0 %4300
    %v4303 = vadd.f32 %v4297, %v4301
    %v4304 = vtanh.pop %v4303
    %4306 = vrot.lane.b32.xlu0 %v4304, 64
    %v4307 = vpop.permute.xlu0 %4306
    %v4309 = vmul.f32 %v4296, %v4307
    %s4310 = scalar_lea.vmem [#allocation4], 14
    %4311 = vst.msk [vmem:[%s4310] sm:$0x3] %vm549, %v4309
    %v4313 = vsel %vm440, %v4199, 0
    %4315 = vmatpush.msra.mxu0 0.0
    %4316 = vmatpush.msra.mxu0 0.0
    %4317 = vmatpush.msra.mxu0 0.0
    %4318 = vmatpush.msra.mxu0 0.0
    %4319 = vmatpush.msra.mxu0 0.0
    %4320 = vmatpush.msra.mxu0 0.0
    %4321 = vmatpush.msra.mxu0 0.0
    %4322 = vmatpush.msra.mxu0 0.0
    %4323 = vmatpush.msra.mxu0 %v2667
    %4324 = vmatpush.msra.mxu0 %v2665
    %4325 = vmatpush.msra.mxu0 %v2663
    %4326 = vmatpush.msra.mxu0 %v2661
    %4327 = vmatpush.msra.mxu0 %v2659
    %4328 = vmatpush.msra.mxu0 %v2657
    %4329 = vmatpush.msra.mxu0 %v2655
    %4330 = vmatpush.msra.mxu0 %v2653
    %4331 = vmatmul.f32.gmra.mxu0 %v4313
    %v4332 = vpop.f32.mrf.mxu0
    %v4333 = vadd.f32 0.0, %v4332
    %4334 = vdwg.mxu0
    %4335 = vmatpush.msra.mxu0 0.0
    %4336 = vmatpush.msra.mxu0 0.0
    %4337 = vmatpush.msra.mxu0 0.0
    %4338 = vmatpush.msra.mxu0 0.0
    %4339 = vmatpush.msra.mxu0 0.0
    %4340 = vmatpush.msra.mxu0 0.0
    %4341 = vmatpush.msra.mxu0 0.0
    %4342 = vmatpush.msra.mxu0 0.0
    %4343 = vmatpush.msra.mxu0 %v2668
    %4344 = vmatpush.msra.mxu0 %v2666
    %4345 = vmatpush.msra.mxu0 %v2664
    %4346 = vmatpush.msra.mxu0 %v2662
    %4347 = vmatpush.msra.mxu0 %v2660
    %4348 = vmatpush.msra.mxu0 %v2658
    %4349 = vmatpush.msra.mxu0 %v2656
    %4350 = vmatpush.msra.mxu0 %v2654
    %4351 = vmatmul.f32.gmra.mxu0 %v4313
    %v4352 = vpop.f32.mrf.mxu0
    %v4353 = vadd.f32 0.0, %v4352
    %4354 = vdwg.mxu0
    %v4357 = vrot.slane %v4353, 6
    %v4358 = vsel %vm269, %v4333, %v4357
    %v4360 = vadd.f32 %v2615, %v4358
    %v4361 = vxor.u32 %v4360, 2147483648
    %v4362 = vmul.f32 %v4361, 1.442695
    %v4363 = vpow.pop %v4362
    %v4364 = vadd.f32 %v4363, 1.0
    %v4365 = vrcp.pop %v4364
    %v4366 = vmul.f32 %v4364, %v4365
    %v4367 = vsub.f32 1.0, %v4366
    %v4368 = vmul.f32 %v4365, %v4367
    %v4369 = vadd.f32 %v4365, %v4368
    %vm4370 = vweird.f32 %v4364
    %vm4371 = vweird.f32 %v4365
    %vm4372 = vmor %vm4370, %vm4371
    %v4373 = vsel %vm4372, %v4365, %v4369
    %v4374 = vand.u32 2147483647, %v4364
    %vm4375 = vcmp.eq.f32.partialorder %v4374, 8.507059e+37
    %v4376 = vand.u32 %v4364, 2147483648
    %v4377 = vor.u32 1.1754944e-38, %v4376
    %v4378 = vsel %vm4375, %v4377, %v4373
    %v4379 = vmul.f32 1.0, %v4378
    %v4381 = vrot.slane %v4360, 2
    %v4383 = vtanh.pop %v4381
    %4384 = vrot.lane.b32.xlu0 %v4360, 64
    %v4385 = vpop.permute.xlu0 %4384
    %v4386 = vrot.slane %v4385, 2
    %v4388 = vxor.u32 %v4386, 2147483648
    %v4389 = vmul.f32 %v4388, 1.442695
    %v4390 = vpow.pop %v4389
    %v4391 = vadd.f32 %v4390, 1.0
    %v4392 = vrcp.pop %v4391
    %v4393 = vmul.f32 %v4391, %v4392
    %v4394 = vsub.f32 1.0, %v4393
    %v4395 = vmul.f32 %v4392, %v4394
    %v4396 = vadd.f32 %v4392, %v4395
    %vm4397 = vweird.f32 %v4391
    %vm4398 = vweird.f32 %v4392
    %vm4399 = vmor %vm4397, %vm4398
    %v4400 = vsel %vm4399, %v4392, %v4396
    %v4401 = vand.u32 2147483647, %v4391
    %vm4402 = vcmp.eq.f32.partialorder %v4401, 8.507059e+37
    %v4403 = vand.u32 %v4391, 2147483648
    %v4404 = vor.u32 1.1754944e-38, %v4403
    %v4405 = vsel %vm4402, %v4404, %v4400
    %v4406 = vmul.f32 1.0, %v4405
    %v4407 = vmul.f32 %v4379, %v4193
    %v4408 = vmul.f32 %v4379, %v4383
    %4410 = vrot.lane.b32.xlu0 %v4408, 64
    %v4411 = vpop.permute.xlu0 %4410
    %v4413 = vadd.f32 %v4407, %v4411
    %v4414 = vtanh.pop %v4413
    %4416 = vrot.lane.b32.xlu0 %v4414, 64
    %v4417 = vpop.permute.xlu0 %4416
    %v4419 = vmul.f32 %v4406, %v4417
    %4420 = vst.msk [vmem:[#allocation5] sm:$0x3] %vm549, %v4419
    %v4421 = vld [vmem:[#allocation4] sm:$0x3]
    %v4422 = vld [vmem:[#allocation4 + $0x2] sm:$0x3]
    %v4423 = vld [vmem:[#allocation4 + $0x4] sm:$0x3]
    %v4424 = vld [vmem:[#allocation4 + $0x6] sm:$0x3]
    %v4425 = vld [vmem:[#allocation4 + $0x8] sm:$0x3]
    %v4426 = vld [vmem:[#allocation4 + $0xa] sm:$0x3]
    %v4427 = vld [vmem:[#allocation4 + $0xc] sm:$0x3]
    %v4428 = vld [vmem:[#allocation4 + $0xe] sm:$0x3]
    %v4429 = vld [vmem:[#allocation5] sm:$0x3]
    %v4430 = vld [vmem:[#allocation5 + $0x2] sm:$0x3]
    %v4431 = vld [vmem:[#allocation5 + $0x4] sm:$0x3]
    %v4432 = vld [vmem:[#allocation5 + $0x6] sm:$0x3]
    %v4433 = vld [vmem:[#allocation5 + $0x8] sm:$0x3]
    %v4434 = vld [vmem:[#allocation5 + $0xa] sm:$0x3]
    %v4435 = vld [vmem:[#allocation5 + $0xc] sm:$0x3]
    %v4436 = vld [vmem:[#allocation5 + $0xe] sm:$0x3]
    %v4437 = vld [vmem:[%s13] sm:$0xff]
    %v4438 = vld [vmem:[%s13 + $0x8] sm:$0xff]
    %v4439 = vld [vmem:[%s13 + $0x10] sm:$0xff]
    %v4440 = vld [vmem:[%s13 + $0x18] sm:$0xff]
    %v4441 = vld [vmem:[%s13 + $0x20] sm:$0xff]
    %v4442 = vld [vmem:[%s13 + $0x28] sm:$0xff]
    %v4443 = vld [vmem:[%s13 + $0x30] sm:$0xff]
    %v4444 = vld [vmem:[%s13 + $0x38] sm:$0xff]
    %v4445 = vld [vmem:[%s13 + $0x40] sm:$0xff]
    %v4446 = vld [vmem:[%s13 + $0x48] sm:$0xff]
    %v4447 = vld [vmem:[%s13 + $0x50] sm:$0xff]
    %v4448 = vld [vmem:[%s13 + $0x58] sm:$0xff]
    %v4449 = vld [vmem:[%s13 + $0x60] sm:$0xff]
    %v4450 = vld [vmem:[%s13 + $0x68] sm:$0xff]
    %v4451 = vld [vmem:[%s13 + $0x70] sm:$0xff]
    %v4452 = vld [vmem:[%s13 + $0x78] sm:$0xff]
    %4461 = vst [vmem:[#allocation1] ss:$4 sm:$0xff] %v4429
    %s4462 = scalar_lea.vmem [#allocation1], 1
    %4463 = vst [vmem:[%s4462] ss:$4 sm:$0xff] %v4430
    %s4464 = scalar_lea.vmem [#allocation1], 2
    %4465 = vst [vmem:[%s4464] ss:$4 sm:$0xff] %v4431
    %s4466 = scalar_lea.vmem [#allocation1], 3
    %4467 = vst [vmem:[%s4466] ss:$4 sm:$0xff] %v4432
    %s4468 = scalar_lea.vmem [#allocation1], 32
    %4469 = vst [vmem:[%s4468] ss:$4 sm:$0xff] %v4433
    %s4470 = scalar_lea.vmem [#allocation1], 33
    %4471 = vst [vmem:[%s4470] ss:$4 sm:$0xff] %v4434
    %s4472 = scalar_lea.vmem [#allocation1], 34
    %4473 = vst [vmem:[%s4472] ss:$4 sm:$0xff] %v4435
    %s4474 = scalar_lea.vmem [#allocation1], 35
    %4475 = vst [vmem:[%s4474] ss:$4 sm:$0xff] %v4436
    %v4476 = vld.sshfl [vmem:[#allocation1] sm:$0xff pattern:$0x73625140]
    %v4477 = vld.sshfl [vmem:[#allocation1 + $0x20] sm:$0xff pattern:$0x73625140]
    %v4478 = vsel %vm440, %v4476, 0
    %v4480 = vsel %vm440, %v4477, 0
    %4482 = vmatpush.msra.mxu0 0.0
    %4483 = vmatpush.msra.mxu0 0.0
    %4484 = vmatpush.msra.mxu0 0.0
    %4485 = vmatpush.msra.mxu0 0.0
    %4486 = vmatpush.msra.mxu0 0.0
    %4487 = vmatpush.msra.mxu0 0.0
    %4488 = vmatpush.msra.mxu0 0.0
    %4489 = vmatpush.msra.mxu0 0.0
    %4490 = vmatpush.msra.mxu0 %v4452
    %4491 = vmatpush.msra.mxu0 %v4451
    %4492 = vmatpush.msra.mxu0 %v4450
    %4493 = vmatpush.msra.mxu0 %v4449
    %4494 = vmatpush.msra.mxu0 %v4448
    %4495 = vmatpush.msra.mxu0 %v4447
    %4496 = vmatpush.msra.mxu0 %v4446
    %4497 = vmatpush.msra.mxu0 %v4445
    %4498 = vmatmul.f32.gmra.mxu0 %v4478
    %v4499 = vpop.f32.mrf.mxu0
    %v4500 = vadd.f32 0.0, %v4499
    %4501 = vmatmul.f32.gmra.mxu0 %v4480
    %v4502 = vpop.f32.mrf.mxu0
    %v4503 = vadd.f32 0.0, %v4502
    %4504 = vdwg.mxu0
    %4513 = vst [vmem:[#allocation1] ss:$4 sm:$0xff] %v4421
    %s4514 = scalar_lea.vmem [#allocation1], 1
    %4515 = vst [vmem:[%s4514] ss:$4 sm:$0xff] %v4422
    %s4516 = scalar_lea.vmem [#allocation1], 2
    %4517 = vst [vmem:[%s4516] ss:$4 sm:$0xff] %v4423
    %s4518 = scalar_lea.vmem [#allocation1], 3
    %4519 = vst [vmem:[%s4518] ss:$4 sm:$0xff] %v4424
    %s4520 = scalar_lea.vmem [#allocation1], 32
    %4521 = vst [vmem:[%s4520] ss:$4 sm:$0xff] %v4425
    %s4522 = scalar_lea.vmem [#allocation1], 33
    %4523 = vst [vmem:[%s4522] ss:$4 sm:$0xff] %v4426
    %s4524 = scalar_lea.vmem [#allocation1], 34
    %4525 = vst [vmem:[%s4524] ss:$4 sm:$0xff] %v4427
    %s4526 = scalar_lea.vmem [#allocation1], 35
    %4527 = vst [vmem:[%s4526] ss:$4 sm:$0xff] %v4428
    %v4528 = vld.sshfl [vmem:[#allocation1] sm:$0xff pattern:$0x73625140]
    %v4529 = vld.sshfl [vmem:[#allocation1 + $0x20] sm:$0xff pattern:$0x73625140]
    %v4530 = vsel %vm440, %v4528, 0
    %v4532 = vsel %vm440, %v4529, 0
    %4534 = vmatpush.msra.mxu0 0.0
    %4535 = vmatpush.msra.mxu0 0.0
    %4536 = vmatpush.msra.mxu0 0.0
    %4537 = vmatpush.msra.mxu0 0.0
    %4538 = vmatpush.msra.mxu0 0.0
    %4539 = vmatpush.msra.mxu0 0.0
    %4540 = vmatpush.msra.mxu0 0.0
    %4541 = vmatpush.msra.mxu0 0.0
    %4542 = vmatpush.msra.mxu0 %v4444
    %4543 = vmatpush.msra.mxu0 %v4443
    %4544 = vmatpush.msra.mxu0 %v4442
    %4545 = vmatpush.msra.mxu0 %v4441
    %4546 = vmatpush.msra.mxu0 %v4440
    %4547 = vmatpush.msra.mxu0 %v4439
    %4548 = vmatpush.msra.mxu0 %v4438
    %4549 = vmatpush.msra.mxu0 %v4437
    %4550 = vmatmul.f32.gmra.mxu0 %v4530
    %v4551 = vpop.f32.mrf.mxu0
    %v4552 = vadd.f32 %v4500, %v4551
    %4553 = vmatmul.f32.gmra.mxu0 %v4532
    %v4554 = vpop.f32.mrf.mxu0
    %v4555 = vadd.f32 %v4503, %v4554
    %4556 = vdwg.mxu0
    %v4557 = vld [vmem:[%s14] sm:$0x1]
    %v4559 = vperm.slane %v4557, 0
    %v4561 = vadd.f32 %v4552, %v4559
    %v4562 = vadd.f32 %v4555, %v4559
    %v4565 = vrot.slane %v4561, 2
    %v4566 = vrot.slane %v4561, 4
    %v4567 = vrot.slane %v4561, 6
    %v4568 = vrot.slane %v4562, 2
    %v4569 = vrot.slane %v4562, 4
    %v4570 = vrot.slane %v4562, 6
    %vm4577 = vcmask 189440
    %4578 = vst.msk [vmem:[#allocation18] sm:$0x3] %vm4577, %v4561
    %4579 = vst.msk [vmem:[#allocation18 + $0x2] sm:$0x3] %vm4577, %v4565
    %4580 = vst.msk [vmem:[#allocation18 + $0x4] sm:$0x3] %vm4577, %v4566
    %4581 = vst.msk [vmem:[#allocation18 + $0x6] sm:$0x3] %vm4577, %v4567
    %4582 = vst.msk [vmem:[#allocation18 + $0x8] sm:$0x3] %vm4577, %v4562
    %4583 = vst.msk [vmem:[#allocation18 + $0xa] sm:$0x3] %vm4577, %v4568
    %4584 = vst.msk [vmem:[#allocation18 + $0xc] sm:$0x3] %vm4577, %v4569
    %4585 = vst.msk [vmem:[#allocation18 + $0xe] sm:$0x3] %vm4577, %v4570
    // Predicated region
    $region90: #{tpu_custom_call.1} parent=1 // pred_check
      _
    $region91: #{tpu_custom_call.1} parent=1 // pred_check_branch
      %4587 = sbr.rel (0) target = $region93
    $region92: #{tpu_custom_call.1} parent=1 // pred_region
      %4589 = vsyncadd [#allocation8], 0
      %s4590 = sshll.u32 [#allocation18], 4
      %s4591 = int_to_ptr.vmem [resolvable:$true] %s4590
      %s4592 = sshll.u32 %s15, 4
      %s4593 = int_to_ptr.hbm [resolvable:$true] %s4592
      %4598 = dma.vmem_to_hbm [thread:$0]  %s4591, 256, %s4593, [#allocation8], 32, 32, 2
    $region93: #{tpu_custom_call.1} parent=1 // pred_fallthru
      _
    // Predicated region
    $region94: #{tpu_custom_call.1} parent=1 // pred_check
      _
    $region95: #{tpu_custom_call.1} parent=1 // pred_check_branch
      %4600 = sbr.rel (0) target = $region97
    $region96: #{tpu_custom_call.1} parent=1 // pred_region
      %4602 = dma.done [#allocation8], 256
    $region97: #{tpu_custom_call.1} parent=1 // pred_fallthru
      _
    %4603 = vsyncpa [#allocation7], 1
    %4604 = vsyncpa [#allocation10], 1
    %4605 = vsyncpa [#allocation13], 1
    %4606 = vsyncpa [#allocation16], 1
    %4607 = vsyncpa [#allocation8], 1

</llo_original>
